<compile_context>
chip_gen: v6e
topology: v6e:2x2x1
jax: 0.10.0
libtpu: 0.0.40
codegen_flags: <defaults>
</compile_context>

<pallas_src>
import functools

import jax
import jax.numpy as jnp
from jax.experimental import pallas as pl
from jax.experimental.pallas import tpu as pltpu

EPS = 1e-5            # nn.BatchNorm1d default eps
LANE = 128            # TPU lane width
SUBLANE = 8           # f32 sublane tile
H1, H2 = 512, 128     # hidden widths fixed by the module

_VMEM_BUDGET = 40 * 1024 * 1024   # conservative residency budget (fits v7x 64 MiB VMEM)
_VMEM_LIMIT = 48 * 1024 * 1024    # explicit scoped-VMEM limit (safe on v5e/v6e/v7x)


# ---------------------------------------------------------------------------
# helpers
# ---------------------------------------------------------------------------
def _round_up(v, m):
    return (v + m - 1) // m * m


def _pad_axis(a, multiple, axis):
    size = a.shape[axis]
    pad = _round_up(size, multiple) - size
    if pad == 0:
        return a
    cfg = [(0, 0)] * a.ndim
    cfg[axis] = (0, pad)
    return jnp.pad(a, cfg)


def _fused_vmem_estimate(n_pad, cin_pad, cout_pad):
    """Rough upper bound (bytes) on VMEM residency of the fused kernel."""
    act = n_pad * (2 * cin_pad            # x (bf16)
                   + 4 * H1 + 2 * H1      # y1 (f32) + h1 (bf16)
                   + 4 * H2 + 2 * H2      # y2 (f32) + h2 (bf16)
                   + 4 * cout_pad         # y3 (f32)
                   + 4 * cout_pad         # output (f32)
                   + 4)                   # row mask (f32)
    wts = 2 * (cin_pad * H1 + H1 * H2 + H2 * cout_pad) + 8 * (H1 + H2 + cout_pad)
    return act + wts


# ---------------------------------------------------------------------------
# fused kernel: three (matmul -> batch-stat BN -> ReLU) stages, all VMEM-resident
# ---------------------------------------------------------------------------
def _fused_mlp_kernel(x_ref, mask_ref,
                      w1_ref, g1_ref, b1_ref,
                      w2_ref, g2_ref, b2_ref,
                      w3_ref, g3_ref, b3_ref,
                      o_ref, *, inv_n):
    """Whole MLPBlock forward on one VMEM-resident batch slab.

    x_ref   : (Np, Cin_pad)  bf16  lane-padded, batch zero-padded input
    mask_ref: (Np, 1)        f32   1.0 for real rows, 0.0 for batch padding rows
    wK_ref  : bf16 weights (Linear biases dropped: they cancel under batch-stat BN)
    gK/bK   : (1, C) f32 BatchNorm affine parameters
    o_ref   : (Np, Cout_pad) f32   lane-dense output (true columns sliced outside)
    """
    def bn_relu(y, g_ref, b_ref):
        # Full-batch one-pass statistics in f32.  Zero-padded batch rows are exactly zero
        # at this point, so they contribute nothing to sum / sum-of-squares; inv_n uses the
        # true batch size.
        ssum = jnp.sum(y, axis=0, keepdims=True)
        ssq = jnp.sum(y * y, axis=0, keepdims=True)
        mean = ssum * inv_n
        var = jnp.maximum(ssq * inv_n - mean * mean, 0.0)   # clamp one-pass cancellation
        scale = g_ref[...] * jax.lax.rsqrt(var + EPS)
        shift = b_ref[...] - mean * scale
        return jnp.maximum(y * scale + shift, 0.0)

    mask = mask_ref[...]                                     # (Np, 1) f32

    # Layer 1: x is already bf16; padded rows of x are zero -> y1 padded rows are zero.
    y1 = jnp.dot(x_ref[...], w1_ref[...], preferred_element_type=jnp.float32)
    # Re-zero padded rows after BN+ReLU so they stay out of layer-2 statistics.
    h1 = (bn_relu(y1, g1_ref, b1_ref) * mask).astype(jnp.bfloat16)

    y2 = jnp.dot(h1, w2_ref[...], preferred_element_type=jnp.float32)
    h2 = (bn_relu(y2, g2_ref, b2_ref) * mask).astype(jnp.bfloat16)

    y3 = jnp.dot(h2, w3_ref[...], preferred_element_type=jnp.float32)
    o_ref[...] = bn_relu(y3, g3_ref, b3_ref)


# ---------------------------------------------------------------------------
# forward wrapper
# ---------------------------------------------------------------------------
def mlp_block(x, prepped, *, out_channels):
    """Forward pass equivalent to MLPBlock with training-mode (batch-statistics) BatchNorm."""
    n = x.shape[0]
    n_pad = _round_up(max(n, SUBLANE), SUBLANE)
    cin_pad = prepped["w1"].shape[0]
    cout_pad = prepped["w3"].shape[1]

    if 2 * _fused_vmem_estimate(n_pad, cin_pad, cout_pad) > _VMEM_BUDGET:
        # TODO(synk): large batches need the batch-tiled per-layer variant; not included here.
        raise NotImplementedError("batch too large for the fused VMEM-resident kernel")

    # Lane-pad features, zero-pad batch rows, pre-cast to bf16 (halves the input DMA).
    x_p = _pad_axis(x.astype(jnp.float32), LANE, axis=1)
    x_p = jnp.pad(x_p, ((0, n_pad - n), (0, 0))).astype(jnp.bfloat16)
    # 1.0 for real rows, 0.0 for padded rows (keeps every layer's batch statistics exact).
    row_mask = (jnp.arange(n_pad, dtype=jnp.int32) < n).astype(jnp.float32).reshape(n_pad, 1)

    def full(shape):
        return pl.BlockSpec(shape, lambda i: (0,) * len(shape))

    args = (x_p, row_mask,
            prepped["w1"], prepped["g1"], prepped["be1"],
            prepped["w2"], prepped["g2"], prepped["be2"],
            prepped["w3"], prepped["g3"], prepped["be3"])

    out_p = pl.pallas_call(
        functools.partial(_fused_mlp_kernel, inv_n=1.0 / n),
        out_shape=jax.ShapeDtypeStruct((n_pad, cout_pad), jnp.float32),
        grid=(1,),
        in_specs=[full(a.shape) for a in args],
        out_specs=full((n_pad, cout_pad)),
        compiler_params=pltpu.CompilerParams(
            dimension_semantics=("arbitrary",),
            vmem_limit_bytes=_VMEM_LIMIT),
    )(*args)

    return out_p[:n, :out_channels]


# ---------------------------------------------------------------------------
# parameters
# ---------------------------------------------------------------------------
def init_params(key, in_channels, out_channels):
    """f32 parameters matching the PyTorch module (Linear weight stored as (C_in, C_out)).

    BatchNorm affine params are randomized here (PyTorch init is gamma=1, beta=0) so the
    numerical checks below are non-trivial."""
    dims = [(in_channels, H1), (H1, H2), (H2, out_channels)]
    params = {}
    for i, (cin, cout) in enumerate(dims, start=1):
        key, kw, kb, kg, kbe = jax.random.split(key, 5)
        bound = 1.0 / jnp.sqrt(jnp.float32(cin))
        params[f"w{i}"] = jax.random.uniform(kw, (cin, cout), jnp.float32, -bound, bound)
        params[f"b{i}"] = jax.random.uniform(kb, (cout,), jnp.float32, -bound, bound)
        params[f"g{i}"] = jax.random.uniform(kg, (cout,), jnp.float32, 0.5, 1.5)
        params[f"be{i}"] = jax.random.uniform(kbe, (cout,), jnp.float32, -0.5, 0.5)
    return params


def prepare_params(params):
    """Kernel-ready params: bf16 weights, lane-padded narrow dims, (1, C) f32 BN affines.

    Linear biases are dropped: training-mode BatchNorm subtracts the per-feature batch mean,
    so a constant per-feature bias cancels exactly and never affects the forward output."""
    return {
        "w1": _pad_axis(params["w1"], LANE, axis=0).astype(jnp.bfloat16),
        "w2": params["w2"].astype(jnp.bfloat16),
        "w3": _pad_axis(params["w3"], LANE, axis=1).astype(jnp.bfloat16),
        "g1": params["g1"].reshape(1, -1), "be1": params["be1"].reshape(1, -1),
        "g2": params["g2"].reshape(1, -1), "be2": params["be2"].reshape(1, -1),
        "g3": _pad_axis(params["g3"], LANE, axis=0).reshape(1, -1),
        "be3": _pad_axis(params["be3"], LANE, axis=0).reshape(1, -1),
    }


# ---------------------------------------------------------------------------
# references
# ---------------------------------------------------------------------------
def _reference_f32(x, params):
    """PyTorch-semantics reference: f32 Linear (+bias), two-pass batch statistics, ReLU."""
    h = x
    for i in (1, 2, 3):
        y = h @ params[f"w{i}"] + params[f"b{i}"]
        mean = jnp.mean(y, axis=0, keepdims=True)
        var = jnp.mean((y - mean) ** 2, axis=0, keepdims=True)
        y = (y - mean) / jnp.sqrt(var + EPS) * params[f"g{i}"] + params[f"be{i}"]
        h = jnp.maximum(y, 0.0)
    return h


def _reference_kernel_math(x, prepped, out_channels):
    """Mirrors the kernel math (bf16 matmuls, folded one-pass BN, no bias) in plain XLA."""
    n = x.shape[0]
    h = _pad_axis(x.astype(jnp.float32), LANE, axis=1)
    for w, g, be in ((prepped["w1"], prepped["g1"], prepped["be1"]),
                     (prepped["w2"], prepped["g2"], prepped["be2"]),
                     (prepped["w3"], prepped["g3"], prepped["be3"])):
        y = jnp.dot(h.astype(jnp.bfloat16), w, preferred_element_type=jnp.float32)
        mean = jnp.sum(y, axis=0, keepdims=True) / n
        var = jnp.maximum(jnp.sum(y * y, axis=0, keepdims=True) / n - mean * mean, 0.0)
        s = g * jax.lax.rsqrt(var + EPS)
        t = be - mean * s
        h = jnp.maximum(y * s + t, 0.0)
    return h[:, :out_channels]


# ---------------------------------------------------------------------------
# demo / check
# ---------------------------------------------------------------------------
if __name__ == "__main__":
    in_channels, out_channels = 32, 16
    key = jax.random.PRNGKey(0)
    key, kp = jax.random.split(key)
    params = init_params(kp, in_channels, out_channels)
    prepped = prepare_params(params)

    fwd = jax.jit(functools.partial(mlp_block, out_channels=out_channels))

    # 256 exercises the plain path; 250 exercises batch zero-padding + the row mask.
    for batch in (256, 250):
        key, kx = jax.random.split(key)
        x = jax.random.normal(kx, (batch, in_channels), jnp.float32)

        out = jax.block_until_ready(fwd(x, prepped))
        assert out.shape == (batch, out_channels), out.shape
        assert bool(jnp.all(jnp.isfinite(out)))

        # Mirror of the exact kernel math in plain XLA (bf16 MXU, folded BN, no bias):
        # differences come only from accumulation order, so this is a tight functional check,
        # with tolerance sized generously for bf16 matmul paths.
        ref_mirror = _reference_kernel_math(x, prepped, out_channels)
        err_mirror = float(jnp.max(jnp.abs(out - ref_mirror)))
        assert err_mirror < 5e-2, f"kernel-math mirror mismatch (batch={batch}): {err_mirror}"

        # PyTorch-semantics f32 reference (with Linear biases, two-pass variance); slack
        # covers bf16 MXU inputs compounding over three layers.
        ref_f32 = _reference_f32(x, params)
        err_f32 = float(jnp.max(jnp.abs(out - ref_f32)))
        assert err_f32 < 2e-1, f"f32 reference mismatch (batch={batch}): {err_f32}"

    print("KERNEL_OK")
</pallas_src>

<mosaic_0001>
module attributes {stable_mosaic.version = 11 : i64} {
  func.func @_fused_mlp_kernel(%arg0: i32, %arg1: memref<256x128xbf16, #tpu.memory_space<vmem>>, %arg2: memref<256x1xf32, #tpu.memory_space<vmem>>, %arg3: memref<128x512xbf16, #tpu.memory_space<vmem>>, %arg4: memref<1x512xf32, #tpu.memory_space<vmem>>, %arg5: memref<1x512xf32, #tpu.memory_space<vmem>>, %arg6: memref<512x128xbf16, #tpu.memory_space<vmem>>, %arg7: memref<1x128xf32, #tpu.memory_space<vmem>>, %arg8: memref<1x128xf32, #tpu.memory_space<vmem>>, %arg9: memref<128x128xbf16, #tpu.memory_space<vmem>>, %arg10: memref<1x128xf32, #tpu.memory_space<vmem>>, %arg11: memref<1x128xf32, #tpu.memory_space<vmem>>, %arg12: memref<256x128xf32, #tpu.memory_space<vmem>>) attributes {dimension_semantics = [#tpu.dimension_semantics<arbitrary>], iteration_bounds = array<i64: 1>, scalar_prefetch = 0 : i64, scratch_operands = 0 : i64, tpu.core_type = #tpu.core_type<tc>, window_params = [{pipeline_mode = #tpu.pipeline_mode<synchronous>, transform_indices = @transform_0, window_bounds = array<i64: 256, 128>}, {pipeline_mode = #tpu.pipeline_mode<synchronous>, transform_indices = @transform_1, window_bounds = array<i64: 256, 1>}, {pipeline_mode = #tpu.pipeline_mode<synchronous>, transform_indices = @transform_2, window_bounds = array<i64: 128, 512>}, {pipeline_mode = #tpu.pipeline_mode<synchronous>, transform_indices = @transform_3, window_bounds = array<i64: 1, 512>}, {pipeline_mode = #tpu.pipeline_mode<synchronous>, transform_indices = @transform_4, window_bounds = array<i64: 1, 512>}, {pipeline_mode = #tpu.pipeline_mode<synchronous>, transform_indices = @transform_5, window_bounds = array<i64: 512, 128>}, {pipeline_mode = #tpu.pipeline_mode<synchronous>, transform_indices = @transform_6, window_bounds = array<i64: 1, 128>}, {pipeline_mode = #tpu.pipeline_mode<synchronous>, transform_indices = @transform_7, window_bounds = array<i64: 1, 128>}, {pipeline_mode = #tpu.pipeline_mode<synchronous>, transform_indices = @transform_8, window_bounds = array<i64: 128, 128>}, {pipeline_mode = #tpu.pipeline_mode<synchronous>, transform_indices = @transform_9, window_bounds = array<i64: 1, 128>}, {pipeline_mode = #tpu.pipeline_mode<synchronous>, transform_indices = @transform_10, window_bounds = array<i64: 1, 128>}, {pipeline_mode = #tpu.pipeline_mode<synchronous>, transform_indices = @transform_11, window_bounds = array<i64: 256, 128>}]} {
    %c0 = arith.constant 0 : index
    %c0_0 = arith.constant 0 : index
    %0 = vector.load %arg2[%c0, %c0_0] : memref<256x1xf32, #tpu.memory_space<vmem>>, vector<256x1xf32>
    %c0_1 = arith.constant 0 : index
    %c0_2 = arith.constant 0 : index
    %1 = vector.load %arg1[%c0_1, %c0_2] : memref<256x128xbf16, #tpu.memory_space<vmem>>, vector<256x128xbf16>
    %c0_3 = arith.constant 0 : index
    %c0_4 = arith.constant 0 : index
    %2 = vector.load %arg3[%c0_3, %c0_4] : memref<128x512xbf16, #tpu.memory_space<vmem>>, vector<128x512xbf16>
    %cst = arith.constant dense<0.000000e+00> : vector<256x512xf32>
    %3 = tpu.matmul %1, %2, %cst {dimension_numbers = #tpu.dot_dimension_numbers<[1], [0], [0], [1], [0, 0, 1, 1], [], []>} : vector<256x128xbf16>, vector<128x512xbf16>, vector<256x512xf32> -> vector<256x512xf32>
    %cst_5 = arith.constant dense<0.000000e+00> : vector<512xf32>
    %4 = vector.multi_reduction <add>, %3, %cst_5 [0] : vector<256x512xf32> to vector<512xf32>
    %5 = vector.shape_cast %4 : vector<512xf32> to vector<1x512xf32>
    %6 = arith.mulf %3, %3 : vector<256x512xf32>
    %cst_6 = arith.constant dense<0.000000e+00> : vector<512xf32>
    %7 = vector.multi_reduction <add>, %6, %cst_6 [0] : vector<256x512xf32> to vector<512xf32>
    %8 = vector.shape_cast %7 : vector<512xf32> to vector<1x512xf32>
    %cst_7 = arith.constant 3.906250e-03 : f32
    %9 = vector.broadcast %cst_7 : f32 to vector<1x512xf32>
    %10 = arith.mulf %5, %9 : vector<1x512xf32>
    %cst_8 = arith.constant 3.906250e-03 : f32
    %11 = vector.broadcast %cst_8 : f32 to vector<1x512xf32>
    %12 = arith.mulf %8, %11 : vector<1x512xf32>
    %13 = arith.mulf %10, %10 : vector<1x512xf32>
    %14 = arith.subf %12, %13 : vector<1x512xf32>
    %cst_9 = arith.constant 0.000000e+00 : f32
    %15 = vector.broadcast %cst_9 : f32 to vector<1x512xf32>
    %16 = arith.maximumf %14, %15 : vector<1x512xf32>
    %c0_10 = arith.constant 0 : index
    %c0_11 = arith.constant 0 : index
    %17 = vector.load %arg4[%c0_10, %c0_11] : memref<1x512xf32, #tpu.memory_space<vmem>>, vector<1x512xf32>
    %cst_12 = arith.constant 9.99999974E-6 : f32
    %18 = vector.broadcast %cst_12 : f32 to vector<1x512xf32>
    %19 = arith.addf %16, %18 : vector<1x512xf32>
    %20 = math.rsqrt %19 : vector<1x512xf32>
    %21 = arith.mulf %17, %20 : vector<1x512xf32>
    %c0_13 = arith.constant 0 : index
    %c0_14 = arith.constant 0 : index
    %22 = vector.load %arg5[%c0_13, %c0_14] : memref<1x512xf32, #tpu.memory_space<vmem>>, vector<1x512xf32>
    %23 = arith.mulf %10, %21 : vector<1x512xf32>
    %24 = arith.subf %22, %23 : vector<1x512xf32>
    %25 = vector.broadcast %21 : vector<1x512xf32> to vector<256x512xf32>
    %26 = arith.mulf %3, %25 : vector<256x512xf32>
    %27 = vector.broadcast %24 : vector<1x512xf32> to vector<256x512xf32>
    %28 = arith.addf %26, %27 : vector<256x512xf32>
    %cst_15 = arith.constant 0.000000e+00 : f32
    %29 = vector.broadcast %cst_15 : f32 to vector<256x512xf32>
    %30 = arith.maximumf %28, %29 : vector<256x512xf32>
    %31 = vector.broadcast %0 : vector<256x1xf32> to vector<256x512xf32>
    %32 = arith.mulf %30, %31 : vector<256x512xf32>
    %33 = arith.truncf %32 : vector<256x512xf32> to vector<256x512xbf16>
    %c0_16 = arith.constant 0 : index
    %c0_17 = arith.constant 0 : index
    %34 = vector.load %arg6[%c0_16, %c0_17] : memref<512x128xbf16, #tpu.memory_space<vmem>>, vector<512x128xbf16>
    %cst_18 = arith.constant dense<0.000000e+00> : vector<256x128xf32>
    %35 = tpu.matmul %33, %34, %cst_18 {dimension_numbers = #tpu.dot_dimension_numbers<[1], [0], [0], [1], [0, 0, 1, 1], [], []>} : vector<256x512xbf16>, vector<512x128xbf16>, vector<256x128xf32> -> vector<256x128xf32>
    %cst_19 = arith.constant dense<0.000000e+00> : vector<128xf32>
    %36 = vector.multi_reduction <add>, %35, %cst_19 [0] : vector<256x128xf32> to vector<128xf32>
    %37 = vector.shape_cast %36 : vector<128xf32> to vector<1x128xf32>
    %38 = arith.mulf %35, %35 : vector<256x128xf32>
    %cst_20 = arith.constant dense<0.000000e+00> : vector<128xf32>
    %39 = vector.multi_reduction <add>, %38, %cst_20 [0] : vector<256x128xf32> to vector<128xf32>
    %40 = vector.shape_cast %39 : vector<128xf32> to vector<1x128xf32>
    %cst_21 = arith.constant 3.906250e-03 : f32
    %41 = vector.broadcast %cst_21 : f32 to vector<1x128xf32>
    %42 = arith.mulf %37, %41 : vector<1x128xf32>
    %cst_22 = arith.constant 3.906250e-03 : f32
    %43 = vector.broadcast %cst_22 : f32 to vector<1x128xf32>
    %44 = arith.mulf %40, %43 : vector<1x128xf32>
    %45 = arith.mulf %42, %42 : vector<1x128xf32>
    %46 = arith.subf %44, %45 : vector<1x128xf32>
    %cst_23 = arith.constant 0.000000e+00 : f32
    %47 = vector.broadcast %cst_23 : f32 to vector<1x128xf32>
    %48 = arith.maximumf %46, %47 : vector<1x128xf32>
    %c0_24 = arith.constant 0 : index
    %c0_25 = arith.constant 0 : index
    %49 = vector.load %arg7[%c0_24, %c0_25] : memref<1x128xf32, #tpu.memory_space<vmem>>, vector<1x128xf32>
    %cst_26 = arith.constant 9.99999974E-6 : f32
    %50 = vector.broadcast %cst_26 : f32 to vector<1x128xf32>
    %51 = arith.addf %48, %50 : vector<1x128xf32>
    %52 = math.rsqrt %51 : vector<1x128xf32>
    %53 = arith.mulf %49, %52 : vector<1x128xf32>
    %c0_27 = arith.constant 0 : index
    %c0_28 = arith.constant 0 : index
    %54 = vector.load %arg8[%c0_27, %c0_28] : memref<1x128xf32, #tpu.memory_space<vmem>>, vector<1x128xf32>
    %55 = arith.mulf %42, %53 : vector<1x128xf32>
    %56 = arith.subf %54, %55 : vector<1x128xf32>
    %57 = vector.broadcast %53 : vector<1x128xf32> to vector<256x128xf32>
    %58 = arith.mulf %35, %57 : vector<256x128xf32>
    %59 = vector.broadcast %56 : vector<1x128xf32> to vector<256x128xf32>
    %60 = arith.addf %58, %59 : vector<256x128xf32>
    %cst_29 = arith.constant 0.000000e+00 : f32
    %61 = vector.broadcast %cst_29 : f32 to vector<256x128xf32>
    %62 = arith.maximumf %60, %61 : vector<256x128xf32>
    %63 = vector.broadcast %0 : vector<256x1xf32> to vector<256x128xf32>
    %64 = arith.mulf %62, %63 : vector<256x128xf32>
    %65 = arith.truncf %64 : vector<256x128xf32> to vector<256x128xbf16>
    %c0_30 = arith.constant 0 : index
    %c0_31 = arith.constant 0 : index
    %66 = vector.load %arg9[%c0_30, %c0_31] : memref<128x128xbf16, #tpu.memory_space<vmem>>, vector<128x128xbf16>
    %cst_32 = arith.constant dense<0.000000e+00> : vector<256x128xf32>
    %67 = tpu.matmul %65, %66, %cst_32 {dimension_numbers = #tpu.dot_dimension_numbers<[1], [0], [0], [1], [0, 0, 1, 1], [], []>} : vector<256x128xbf16>, vector<128x128xbf16>, vector<256x128xf32> -> vector<256x128xf32>
    %cst_33 = arith.constant dense<0.000000e+00> : vector<128xf32>
    %68 = vector.multi_reduction <add>, %67, %cst_33 [0] : vector<256x128xf32> to vector<128xf32>
    %69 = vector.shape_cast %68 : vector<128xf32> to vector<1x128xf32>
    %70 = arith.mulf %67, %67 : vector<256x128xf32>
    %cst_34 = arith.constant dense<0.000000e+00> : vector<128xf32>
    %71 = vector.multi_reduction <add>, %70, %cst_34 [0] : vector<256x128xf32> to vector<128xf32>
    %72 = vector.shape_cast %71 : vector<128xf32> to vector<1x128xf32>
    %cst_35 = arith.constant 3.906250e-03 : f32
    %73 = vector.broadcast %cst_35 : f32 to vector<1x128xf32>
    %74 = arith.mulf %69, %73 : vector<1x128xf32>
    %cst_36 = arith.constant 3.906250e-03 : f32
    %75 = vector.broadcast %cst_36 : f32 to vector<1x128xf32>
    %76 = arith.mulf %72, %75 : vector<1x128xf32>
    %77 = arith.mulf %74, %74 : vector<1x128xf32>
    %78 = arith.subf %76, %77 : vector<1x128xf32>
    %cst_37 = arith.constant 0.000000e+00 : f32
    %79 = vector.broadcast %cst_37 : f32 to vector<1x128xf32>
    %80 = arith.maximumf %78, %79 : vector<1x128xf32>
    %c0_38 = arith.constant 0 : index
    %c0_39 = arith.constant 0 : index
    %81 = vector.load %arg10[%c0_38, %c0_39] : memref<1x128xf32, #tpu.memory_space<vmem>>, vector<1x128xf32>
    %cst_40 = arith.constant 9.99999974E-6 : f32
    %82 = vector.broadcast %cst_40 : f32 to vector<1x128xf32>
    %83 = arith.addf %80, %82 : vector<1x128xf32>
    %84 = math.rsqrt %83 : vector<1x128xf32>
    %85 = arith.mulf %81, %84 : vector<1x128xf32>
    %c0_41 = arith.constant 0 : index
    %c0_42 = arith.constant 0 : index
    %86 = vector.load %arg11[%c0_41, %c0_42] : memref<1x128xf32, #tpu.memory_space<vmem>>, vector<1x128xf32>
    %87 = arith.mulf %74, %85 : vector<1x128xf32>
    %88 = arith.subf %86, %87 : vector<1x128xf32>
    %89 = vector.broadcast %85 : vector<1x128xf32> to vector<256x128xf32>
    %90 = arith.mulf %67, %89 : vector<256x128xf32>
    %91 = vector.broadcast %88 : vector<1x128xf32> to vector<256x128xf32>
    %92 = arith.addf %90, %91 : vector<256x128xf32>
    %cst_43 = arith.constant 0.000000e+00 : f32
    %93 = vector.broadcast %cst_43 : f32 to vector<256x128xf32>
    %94 = arith.maximumf %92, %93 : vector<256x128xf32>
    %c0_44 = arith.constant 0 : index
    %c0_45 = arith.constant 0 : index
    %95 = vector.load %arg12[%c0_44, %c0_45] : memref<256x128xf32, #tpu.memory_space<vmem>>, vector<256x128xf32>
    tpu.vector_store %arg12[%c0_44, %c0_45], %94 {strides = array<i32>} : memref<256x128xf32, #tpu.memory_space<vmem>>, vector<256x128xf32>,
    return
  }
  func.func @transform_0(%arg0: i32) -> (i32, i32) {
    %c0_i32 = arith.constant 0 : i32
    %c0_i32_0 = arith.constant 0 : i32
    %c0_i32_1 = arith.constant 0 : i32
    return %c0_i32, %c0_i32_0 : i32, i32
  }
  func.func @transform_1(%arg0: i32) -> (i32, i32) {
    %c0_i32 = arith.constant 0 : i32
    %c0_i32_0 = arith.constant 0 : i32
    %c0_i32_1 = arith.constant 0 : i32
    return %c0_i32, %c0_i32_0 : i32, i32
  }
  func.func @transform_2(%arg0: i32) -> (i32, i32) {
    %c0_i32 = arith.constant 0 : i32
    %c0_i32_0 = arith.constant 0 : i32
    %c0_i32_1 = arith.constant 0 : i32
    return %c0_i32, %c0_i32_0 : i32, i32
  }
  func.func @transform_3(%arg0: i32) -> (i32, i32) {
    %c0_i32 = arith.constant 0 : i32
    %c0_i32_0 = arith.constant 0 : i32
    %c0_i32_1 = arith.constant 0 : i32
    return %c0_i32, %c0_i32_0 : i32, i32
  }
  func.func @transform_4(%arg0: i32) -> (i32, i32) {
    %c0_i32 = arith.constant 0 : i32
    %c0_i32_0 = arith.constant 0 : i32
    %c0_i32_1 = arith.constant 0 : i32
    return %c0_i32, %c0_i32_0 : i32, i32
  }
  func.func @transform_5(%arg0: i32) -> (i32, i32) {
    %c0_i32 = arith.constant 0 : i32
    %c0_i32_0 = arith.constant 0 : i32
    %c0_i32_1 = arith.constant 0 : i32
    return %c0_i32, %c0_i32_0 : i32, i32
  }
  func.func @transform_6(%arg0: i32) -> (i32, i32) {
    %c0_i32 = arith.constant 0 : i32
    %c0_i32_0 = arith.constant 0 : i32
    %c0_i32_1 = arith.constant 0 : i32
    return %c0_i32, %c0_i32_0 : i32, i32
  }
  func.func @transform_7(%arg0: i32) -> (i32, i32) {
    %c0_i32 = arith.constant 0 : i32
    %c0_i32_0 = arith.constant 0 : i32
    %c0_i32_1 = arith.constant 0 : i32
    return %c0_i32, %c0_i32_0 : i32, i32
  }
  func.func @transform_8(%arg0: i32) -> (i32, i32) {
    %c0_i32 = arith.constant 0 : i32
    %c0_i32_0 = arith.constant 0 : i32
    %c0_i32_1 = arith.constant 0 : i32
    return %c0_i32, %c0_i32_0 : i32, i32
  }
  func.func @transform_9(%arg0: i32) -> (i32, i32) {
    %c0_i32 = arith.constant 0 : i32
    %c0_i32_0 = arith.constant 0 : i32
    %c0_i32_1 = arith.constant 0 : i32
    return %c0_i32, %c0_i32_0 : i32, i32
  }
  func.func @transform_10(%arg0: i32) -> (i32, i32) {
    %c0_i32 = arith.constant 0 : i32
    %c0_i32_0 = arith.constant 0 : i32
    %c0_i32_1 = arith.constant 0 : i32
    return %c0_i32, %c0_i32_0 : i32, i32
  }
  func.func @transform_11(%arg0: i32) -> (i32, i32) {
    %c0_i32 = arith.constant 0 : i32
    %c0_i32_0 = arith.constant 0 : i32
    %c0_i32_1 = arith.constant 0 : i32
    return %c0_i32, %c0_i32_0 : i32, i32
  }
}

</mosaic_0001>

<llo_original>
// kernel: mlp_block.1
$region0: #{mlp_block.1}
  #allocation0 [shape = 'u32[]', space=smem, size = 0x4, offset = 0x4, fixed_abs, tag = 'smem constant byte address 0x4 - core index']
  #allocation1 [shape = 'u32[144,128]{1,0:T(1,128)}', space=vmem, size = 0x12000, scoped, tag = 'internal scratch']
  %s0 = inlined_call_operand.vmem [shape: bf16[256,128], index: 0, kind: input, shape index: {}]
  %s1 = inlined_call_operand.vmem [shape: f32[256,1], index: 1, kind: input, shape index: {}]
  %s2 = inlined_call_operand.vmem [shape: bf16[128,512], index: 2, kind: input, shape index: {}]
  %s3 = inlined_call_operand.vmem [shape: f32[1,512], index: 3, kind: input, shape index: {}]
  %s4 = inlined_call_operand.vmem [shape: f32[1,512], index: 4, kind: input, shape index: {}]
  %s5 = inlined_call_operand.vmem [shape: bf16[512,128], index: 5, kind: input, shape index: {}]
  %s6 = inlined_call_operand.vmem [shape: f32[1,128], index: 6, kind: input, shape index: {}]
  %s7 = inlined_call_operand.vmem [shape: f32[1,128], index: 7, kind: input, shape index: {}]
  %s8 = inlined_call_operand.vmem [shape: bf16[128,128], index: 8, kind: input, shape index: {}]
  %s9 = inlined_call_operand.vmem [shape: f32[1,128], index: 9, kind: input, shape index: {}]
  %s10 = inlined_call_operand.vmem [shape: f32[1,128], index: 10, kind: input, shape index: {}]
  %s11 = inlined_call_operand.vmem [shape: f32[256,128], index: 11, kind: output, shape index: {}]
  %s12 = sld [smem:[#allocation0]]
  $region54: #{mlp_block.1} parent=0
    _
  %s14 = ssub.s32 1, %s12
  %s15 = scalar_select 0, %s14, %s12
  // Predicated region
  $region2: #{mlp_block.1} parent=0 // pred_check
    _
  $region3: #{mlp_block.1} parent=0 // pred_check_branch
    %17 = sbr.rel (0) target = $region5
  $region4: #{mlp_block.1} parent=0 // pred_region
    _
  $region5: #{mlp_block.1} parent=0 // pred_fallthru
    _
  // Predicated region
  $region6: #{mlp_block.1} parent=0 // pred_check
    _
  $region7: #{mlp_block.1} parent=0 // pred_check_branch
    %19 = sbr.rel (0) target = $region9
  $region8: #{mlp_block.1} parent=0 // pred_region
    _
  $region9: #{mlp_block.1} parent=0 // pred_fallthru
    _
  // Predicated region
  $region10: #{mlp_block.1} parent=0 // pred_check
    _
  $region11: #{mlp_block.1} parent=0 // pred_check_branch
    %21 = sbr.rel (0) target = $region13
  $region12: #{mlp_block.1} parent=0 // pred_region
    _
  $region13: #{mlp_block.1} parent=0 // pred_fallthru
    _
  // Predicated region
  $region14: #{mlp_block.1} parent=0 // pred_check
    _
  $region15: #{mlp_block.1} parent=0 // pred_check_branch
    %23 = sbr.rel (0) target = $region17
  $region16: #{mlp_block.1} parent=0 // pred_region
    _
  $region17: #{mlp_block.1} parent=0 // pred_fallthru
    _
  // Predicated region
  $region18: #{mlp_block.1} parent=0 // pred_check
    _
  $region19: #{mlp_block.1} parent=0 // pred_check_branch
    %25 = sbr.rel (0) target = $region21
  $region20: #{mlp_block.1} parent=0 // pred_region
    _
  $region21: #{mlp_block.1} parent=0 // pred_fallthru
    _
  // Predicated region
  $region22: #{mlp_block.1} parent=0 // pred_check
    _
  $region23: #{mlp_block.1} parent=0 // pred_check_branch
    %27 = sbr.rel (0) target = $region25
  $region24: #{mlp_block.1} parent=0 // pred_region
    _
  $region25: #{mlp_block.1} parent=0 // pred_fallthru
    _
  // Predicated region
  $region26: #{mlp_block.1} parent=0 // pred_check
    _
  $region27: #{mlp_block.1} parent=0 // pred_check_branch
    %29 = sbr.rel (0) target = $region29
  $region28: #{mlp_block.1} parent=0 // pred_region
    _
  $region29: #{mlp_block.1} parent=0 // pred_fallthru
    _
  // Predicated region
  $region30: #{mlp_block.1} parent=0 // pred_check
    _
  $region31: #{mlp_block.1} parent=0 // pred_check_branch
    %31 = sbr.rel (0) target = $region33
  $region32: #{mlp_block.1} parent=0 // pred_region
    _
  $region33: #{mlp_block.1} parent=0 // pred_fallthru
    _
  // Predicated region
  $region34: #{mlp_block.1} parent=0 // pred_check
    _
  $region35: #{mlp_block.1} parent=0 // pred_check_branch
    %33 = sbr.rel (0) target = $region37
  $region36: #{mlp_block.1} parent=0 // pred_region
    _
  $region37: #{mlp_block.1} parent=0 // pred_fallthru
    _
  // Predicated region
  $region38: #{mlp_block.1} parent=0 // pred_check
    _
  $region39: #{mlp_block.1} parent=0 // pred_check_branch
    %35 = sbr.rel (0) target = $region41
  $region40: #{mlp_block.1} parent=0 // pred_region
    _
  $region41: #{mlp_block.1} parent=0 // pred_fallthru
    _
  // Predicated region
  $region42: #{mlp_block.1} parent=0 // pred_check
    _
  $region43: #{mlp_block.1} parent=0 // pred_check_branch
    %37 = sbr.rel (0) target = $region45
  $region44: #{mlp_block.1} parent=0 // pred_region
    _
  $region45: #{mlp_block.1} parent=0 // pred_fallthru
    _
  %v39 = vld [vmem:[%s1] sm:$0xff]
  %v40 = vld [vmem:[%s1 + $0x8] sm:$0xff]
  %v41 = vld [vmem:[%s1 + $0x10] sm:$0xff]
  %v42 = vld [vmem:[%s1 + $0x18] sm:$0xff]
  %v43 = vld [vmem:[%s1 + $0x20] sm:$0xff]
  %v44 = vld [vmem:[%s1 + $0x28] sm:$0xff]
  %v45 = vld [vmem:[%s1 + $0x30] sm:$0xff]
  %v46 = vld [vmem:[%s1 + $0x38] sm:$0xff]
  %v47 = vld [vmem:[%s1 + $0x40] sm:$0xff]
  %v48 = vld [vmem:[%s1 + $0x48] sm:$0xff]
  %v49 = vld [vmem:[%s1 + $0x50] sm:$0xff]
  %v50 = vld [vmem:[%s1 + $0x58] sm:$0xff]
  %v51 = vld [vmem:[%s1 + $0x60] sm:$0xff]
  %v52 = vld [vmem:[%s1 + $0x68] sm:$0xff]
  %v53 = vld [vmem:[%s1 + $0x70] sm:$0xff]
  %v54 = vld [vmem:[%s1 + $0x78] sm:$0xff]
  %v55 = vld [vmem:[%s1 + $0x80] sm:$0xff]
  %v56 = vld [vmem:[%s1 + $0x88] sm:$0xff]
  %v57 = vld [vmem:[%s1 + $0x90] sm:$0xff]
  %v58 = vld [vmem:[%s1 + $0x98] sm:$0xff]
  %v59 = vld [vmem:[%s1 + $0xa0] sm:$0xff]
  %v60 = vld [vmem:[%s1 + $0xa8] sm:$0xff]
  %v61 = vld [vmem:[%s1 + $0xb0] sm:$0xff]
  %v62 = vld [vmem:[%s1 + $0xb8] sm:$0xff]
  %v63 = vld [vmem:[%s1 + $0xc0] sm:$0xff]
  %v64 = vld [vmem:[%s1 + $0xc8] sm:$0xff]
  %v65 = vld [vmem:[%s1 + $0xd0] sm:$0xff]
  %v66 = vld [vmem:[%s1 + $0xd8] sm:$0xff]
  %v67 = vld [vmem:[%s1 + $0xe0] sm:$0xff]
  %v68 = vld [vmem:[%s1 + $0xe8] sm:$0xff]
  %v69 = vld [vmem:[%s1 + $0xf0] sm:$0xff]
  %v70 = vld [vmem:[%s1 + $0xf8] sm:$0xff]
  %v71 = vld [vmem:[%s0] sm:$0xf]
  %v72 = vld [vmem:[%s0 + $0x4] sm:$0xf]
  %v73 = vld [vmem:[%s0 + $0x8] sm:$0xf]
  %v74 = vld [vmem:[%s0 + $0xc] sm:$0xf]
  %v75 = vld [vmem:[%s0 + $0x10] sm:$0xf]
  %v76 = vld [vmem:[%s0 + $0x14] sm:$0xf]
  %v77 = vld [vmem:[%s0 + $0x18] sm:$0xf]
  %v78 = vld [vmem:[%s0 + $0x1c] sm:$0xf]
  %v79 = vld [vmem:[%s0 + $0x20] sm:$0xf]
  %v80 = vld [vmem:[%s0 + $0x24] sm:$0xf]
  %v81 = vld [vmem:[%s0 + $0x28] sm:$0xf]
  %v82 = vld [vmem:[%s0 + $0x2c] sm:$0xf]
  %v83 = vld [vmem:[%s0 + $0x30] sm:$0xf]
  %v84 = vld [vmem:[%s0 + $0x34] sm:$0xf]
  %v85 = vld [vmem:[%s0 + $0x38] sm:$0xf]
  %v86 = vld [vmem:[%s0 + $0x3c] sm:$0xf]
  %v87 = vld [vmem:[%s0 + $0x40] sm:$0xf]
  %v88 = vld [vmem:[%s0 + $0x44] sm:$0xf]
  %v89 = vld [vmem:[%s0 + $0x48] sm:$0xf]
  %v90 = vld [vmem:[%s0 + $0x4c] sm:$0xf]
  %v91 = vld [vmem:[%s0 + $0x50] sm:$0xf]
  %v92 = vld [vmem:[%s0 + $0x54] sm:$0xf]
  %v93 = vld [vmem:[%s0 + $0x58] sm:$0xf]
  %v94 = vld [vmem:[%s0 + $0x5c] sm:$0xf]
  %v95 = vld [vmem:[%s0 + $0x60] sm:$0xf]
  %v96 = vld [vmem:[%s0 + $0x64] sm:$0xf]
  %v97 = vld [vmem:[%s0 + $0x68] sm:$0xf]
  %v98 = vld [vmem:[%s0 + $0x6c] sm:$0xf]
  %v99 = vld [vmem:[%s0 + $0x70] sm:$0xf]
  %v100 = vld [vmem:[%s0 + $0x74] sm:$0xf]
  %v101 = vld [vmem:[%s0 + $0x78] sm:$0xf]
  %v102 = vld [vmem:[%s0 + $0x7c] sm:$0xf]
  %v103 = vld [vmem:[%s2] sm:$0xff]
  %v104 = vld [vmem:[%s2 + $0x8] sm:$0xff]
  %v105 = vld [vmem:[%s2 + $0x10] sm:$0xff]
  %v106 = vld [vmem:[%s2 + $0x18] sm:$0xff]
  %v107 = vld [vmem:[%s2 + $0x20] sm:$0xff]
  %v108 = vld [vmem:[%s2 + $0x28] sm:$0xff]
  %v109 = vld [vmem:[%s2 + $0x30] sm:$0xff]
  %v110 = vld [vmem:[%s2 + $0x38] sm:$0xff]
  %v111 = vld [vmem:[%s2 + $0x40] sm:$0xff]
  %v112 = vld [vmem:[%s2 + $0x48] sm:$0xff]
  %v113 = vld [vmem:[%s2 + $0x50] sm:$0xff]
  %v114 = vld [vmem:[%s2 + $0x58] sm:$0xff]
  %v115 = vld [vmem:[%s2 + $0x60] sm:$0xff]
  %v116 = vld [vmem:[%s2 + $0x68] sm:$0xff]
  %v117 = vld [vmem:[%s2 + $0x70] sm:$0xff]
  %v118 = vld [vmem:[%s2 + $0x78] sm:$0xff]
  %v119 = vld [vmem:[%s2 + $0x80] sm:$0xff]
  %v120 = vld [vmem:[%s2 + $0x88] sm:$0xff]
  %v121 = vld [vmem:[%s2 + $0x90] sm:$0xff]
  %v122 = vld [vmem:[%s2 + $0x98] sm:$0xff]
  %v123 = vld [vmem:[%s2 + $0xa0] sm:$0xff]
  %v124 = vld [vmem:[%s2 + $0xa8] sm:$0xff]
  %v125 = vld [vmem:[%s2 + $0xb0] sm:$0xff]
  %v126 = vld [vmem:[%s2 + $0xb8] sm:$0xff]
  %v127 = vld [vmem:[%s2 + $0xc0] sm:$0xff]
  %v128 = vld [vmem:[%s2 + $0xc8] sm:$0xff]
  %v129 = vld [vmem:[%s2 + $0xd0] sm:$0xff]
  %v130 = vld [vmem:[%s2 + $0xd8] sm:$0xff]
  %v131 = vld [vmem:[%s2 + $0xe0] sm:$0xff]
  %v132 = vld [vmem:[%s2 + $0xe8] sm:$0xff]
  %v133 = vld [vmem:[%s2 + $0xf0] sm:$0xff]
  %v134 = vld [vmem:[%s2 + $0xf8] sm:$0xff]
  %v167 = vunpack.c.l.b16 %v71
  %v168 = vunpack.c.l.b16 %v72
  %v169 = vunpack.c.l.b16 %v73
  %v170 = vunpack.c.l.b16 %v74
  %v171 = vunpack.c.l.b16 %v75
  %v172 = vunpack.c.l.b16 %v76
  %v173 = vunpack.c.l.b16 %v77
  %v174 = vunpack.c.l.b16 %v78
  %v175 = vunpack.c.l.b16 %v79
  %v176 = vunpack.c.l.b16 %v80
  %v177 = vunpack.c.l.b16 %v81
  %v178 = vunpack.c.l.b16 %v82
  %v179 = vunpack.c.l.b16 %v83
  %v180 = vunpack.c.l.b16 %v84
  %v181 = vunpack.c.l.b16 %v85
  %v182 = vunpack.c.l.b16 %v86
  %v183 = vunpack.c.l.b16 %v87
  %v184 = vunpack.c.l.b16 %v88
  %v185 = vunpack.c.l.b16 %v89
  %v186 = vunpack.c.l.b16 %v90
  %v187 = vunpack.c.l.b16 %v91
  %v188 = vunpack.c.l.b16 %v92
  %v189 = vunpack.c.l.b16 %v93
  %v190 = vunpack.c.l.b16 %v94
  %v191 = vunpack.c.l.b16 %v95
  %v192 = vunpack.c.l.b16 %v96
  %v193 = vunpack.c.l.b16 %v97
  %v194 = vunpack.c.l.b16 %v98
  %v195 = vunpack.c.l.b16 %v99
  %v196 = vunpack.c.l.b16 %v100
  %v197 = vunpack.c.l.b16 %v101
  %v198 = vunpack.c.l.b16 %v102
  %v199 = vpack.c.b16 %v168, %v167
  %v200 = vpack.c.b16 %v170, %v169
  %v201 = vpack.c.b16 %v172, %v171
  %v202 = vpack.c.b16 %v174, %v173
  %v203 = vpack.c.b16 %v176, %v175
  %v204 = vpack.c.b16 %v178, %v177
  %v205 = vpack.c.b16 %v180, %v179
  %v206 = vpack.c.b16 %v182, %v181
  %v207 = vpack.c.b16 %v184, %v183
  %v208 = vpack.c.b16 %v186, %v185
  %v209 = vpack.c.b16 %v188, %v187
  %v210 = vpack.c.b16 %v190, %v189
  %v211 = vpack.c.b16 %v192, %v191
  %v212 = vpack.c.b16 %v194, %v193
  %v213 = vpack.c.b16 %v196, %v195
  %v214 = vpack.c.b16 %v198, %v197
  %v263 = vunpack.c.l.b16 %v103
  %v264 = vunpack.c.h.b16 %v103
  %v265 = vunpack.c.l.b16 %v104
  %v266 = vunpack.c.h.b16 %v104
  %v267 = vunpack.c.l.b16 %v105
  %v268 = vunpack.c.h.b16 %v105
  %v269 = vunpack.c.l.b16 %v106
  %v270 = vunpack.c.h.b16 %v106
  %v271 = vunpack.c.l.b16 %v107
  %v272 = vunpack.c.h.b16 %v107
  %v273 = vunpack.c.l.b16 %v108
  %v274 = vunpack.c.h.b16 %v108
  %v275 = vunpack.c.l.b16 %v109
  %v276 = vunpack.c.h.b16 %v109
  %v277 = vunpack.c.l.b16 %v110
  %v278 = vunpack.c.h.b16 %v110
  %v279 = vunpack.c.l.b16 %v111
  %v280 = vunpack.c.h.b16 %v111
  %v281 = vunpack.c.l.b16 %v112
  %v282 = vunpack.c.h.b16 %v112
  %v283 = vunpack.c.l.b16 %v113
  %v284 = vunpack.c.h.b16 %v113
  %v285 = vunpack.c.l.b16 %v114
  %v286 = vunpack.c.h.b16 %v114
  %v287 = vunpack.c.l.b16 %v115
  %v288 = vunpack.c.h.b16 %v115
  %v289 = vunpack.c.l.b16 %v116
  %v290 = vunpack.c.h.b16 %v116
  %v291 = vunpack.c.l.b16 %v117
  %v292 = vunpack.c.h.b16 %v117
  %v293 = vunpack.c.l.b16 %v118
  %v294 = vunpack.c.h.b16 %v118
  %v295 = vunpack.c.l.b16 %v119
  %v296 = vunpack.c.h.b16 %v119
  %v297 = vunpack.c.l.b16 %v120
  %v298 = vunpack.c.h.b16 %v120
  %v299 = vunpack.c.l.b16 %v121
  %v300 = vunpack.c.h.b16 %v121
  %v301 = vunpack.c.l.b16 %v122
  %v302 = vunpack.c.h.b16 %v122
  %v303 = vunpack.c.l.b16 %v123
  %v304 = vunpack.c.h.b16 %v123
  %v305 = vunpack.c.l.b16 %v124
  %v306 = vunpack.c.h.b16 %v124
  %v307 = vunpack.c.l.b16 %v125
  %v308 = vunpack.c.h.b16 %v125
  %v309 = vunpack.c.l.b16 %v126
  %v310 = vunpack.c.h.b16 %v126
  %v311 = vunpack.c.l.b16 %v127
  %v312 = vunpack.c.h.b16 %v127
  %v313 = vunpack.c.l.b16 %v128
  %v314 = vunpack.c.h.b16 %v128
  %v315 = vunpack.c.l.b16 %v129
  %v316 = vunpack.c.h.b16 %v129
  %v317 = vunpack.c.l.b16 %v130
  %v318 = vunpack.c.h.b16 %v130
  %v319 = vunpack.c.l.b16 %v131
  %v320 = vunpack.c.h.b16 %v131
  %v321 = vunpack.c.l.b16 %v132
  %v322 = vunpack.c.h.b16 %v132
  %v323 = vunpack.c.l.b16 %v133
  %v324 = vunpack.c.h.b16 %v133
  %v325 = vunpack.c.l.b16 %v134
  %v326 = vunpack.c.h.b16 %v134
  %v327 = vpack.c.b16 %v267, %v263
  %v328 = vpack.c.b16 %v268, %v264
  %v329 = vpack.c.b16 %v269, %v265
  %v330 = vpack.c.b16 %v270, %v266
  %v331 = vpack.c.b16 %v275, %v271
  %v332 = vpack.c.b16 %v276, %v272
  %v333 = vpack.c.b16 %v277, %v273
  %v334 = vpack.c.b16 %v278, %v274
  %v335 = vpack.c.b16 %v283, %v279
  %v336 = vpack.c.b16 %v284, %v280
  %v337 = vpack.c.b16 %v285, %v281
  %v338 = vpack.c.b16 %v286, %v282
  %v339 = vpack.c.b16 %v291, %v287
  %v340 = vpack.c.b16 %v292, %v288
  %v341 = vpack.c.b16 %v293, %v289
  %v342 = vpack.c.b16 %v294, %v290
  %v343 = vpack.c.b16 %v299, %v295
  %v344 = vpack.c.b16 %v300, %v296
  %v345 = vpack.c.b16 %v301, %v297
  %v346 = vpack.c.b16 %v302, %v298
  %v347 = vpack.c.b16 %v307, %v303
  %v348 = vpack.c.b16 %v308, %v304
  %v349 = vpack.c.b16 %v309, %v305
  %v350 = vpack.c.b16 %v310, %v306
  %v351 = vpack.c.b16 %v315, %v311
  %v352 = vpack.c.b16 %v316, %v312
  %v353 = vpack.c.b16 %v317, %v313
  %v354 = vpack.c.b16 %v318, %v314
  %v355 = vpack.c.b16 %v323, %v319
  %v356 = vpack.c.b16 %v324, %v320
  %v357 = vpack.c.b16 %v325, %v321
  %v358 = vpack.c.b16 %v326, %v322
  %391 = vmatprep.subr.bf16.mxu0 %v356
  %392 = vmatpush1.bf16.msra.mxu0 %v355
  %393 = vmatprep.subr.bf16.mxu0 %v352
  %394 = vmatpush1.bf16.msra.mxu0 %v351
  %395 = vmatprep.subr.bf16.mxu0 %v348
  %396 = vmatpush1.bf16.msra.mxu0 %v347
  %397 = vmatprep.subr.bf16.mxu0 %v344
  %398 = vmatpush1.bf16.msra.mxu0 %v343
  %399 = vmatprep.subr.bf16.mxu0 %v340
  %400 = vmatpush1.bf16.msra.mxu0 %v339
  %401 = vmatprep.subr.bf16.mxu0 %v336
  %402 = vmatpush1.bf16.msra.mxu0 %v335
  %403 = vmatprep.subr.bf16.mxu0 %v332
  %404 = vmatpush1.bf16.msra.mxu0 %v331
  %405 = vmatprep.subr.bf16.mxu0 %v328
  %406 = vmatpush1.bf16.msra.mxu0 %v327
  %407 = vmatprep.subr.bf16.mxu0 0
  %408 = vmatpush2.bf16.msra.mxu0 0
  %409 = vmatprep.subr.bf16.mxu0 0
  %410 = vmatpush2.bf16.msra.mxu0 0
  %411 = vmatprep.subr.bf16.mxu0 0
  %412 = vmatpush2.bf16.msra.mxu0 0
  %413 = vmatprep.subr.bf16.mxu0 0
  %414 = vmatpush2.bf16.msra.mxu0 0
  %415 = vmatprep.subr.bf16.mxu0 0
  %416 = vmatpush2.bf16.msra.mxu0 0
  %417 = vmatprep.subr.bf16.mxu0 0
  %418 = vmatpush2.bf16.msra.mxu0 0
  %419 = vmatprep.subr.bf16.mxu0 0
  %420 = vmatpush2.bf16.msra.mxu0 0
  %421 = vmatprep.subr.bf16.mxu0 0
  %422 = vmatpush2.bf16.msra.mxu0 0
  %423 = vmatprep.mubr.bf16.mxu0 0
  %424 = vmatmul.mubr.bf16.gmra.mxu0 %v199
  %v425 = vpop.f32.mrf.mxu0
  %v426 = vadd.f32 0.0, %v425
  %v427 = vpop.f32.mrf.mxu0
  %v428 = vadd.f32 0.0, %v427
  %v429 = vpop.f32.mrf.mxu0
  %v430 = vadd.f32 0.0, %v429
  %v431 = vpop.f32.mrf.mxu0
  %v432 = vadd.f32 0.0, %v431
  %433 = vmatprep.mubr.bf16.mxu0 0
  %434 = vmatmul.mubr.bf16.gmra.mxu0 %v200
  %v435 = vpop.f32.mrf.mxu0
  %v436 = vadd.f32 0.0, %v435
  %v437 = vpop.f32.mrf.mxu0
  %v438 = vadd.f32 0.0, %v437
  %v439 = vpop.f32.mrf.mxu0
  %v440 = vadd.f32 0.0, %v439
  %v441 = vpop.f32.mrf.mxu0
  %v442 = vadd.f32 0.0, %v441
  %443 = vmatprep.mubr.bf16.mxu0 0
  %444 = vmatmul.mubr.bf16.gmra.mxu0 %v201
  %v445 = vpop.f32.mrf.mxu0
  %v446 = vadd.f32 0.0, %v445
  %v447 = vpop.f32.mrf.mxu0
  %v448 = vadd.f32 0.0, %v447
  %v449 = vpop.f32.mrf.mxu0
  %v450 = vadd.f32 0.0, %v449
  %v451 = vpop.f32.mrf.mxu0
  %v452 = vadd.f32 0.0, %v451
  %453 = vmatprep.mubr.bf16.mxu0 0
  %454 = vmatmul.mubr.bf16.gmra.mxu0 %v202
  %v455 = vpop.f32.mrf.mxu0
  %v456 = vadd.f32 0.0, %v455
  %v457 = vpop.f32.mrf.mxu0
  %v458 = vadd.f32 0.0, %v457
  %v459 = vpop.f32.mrf.mxu0
  %v460 = vadd.f32 0.0, %v459
  %v461 = vpop.f32.mrf.mxu0
  %v462 = vadd.f32 0.0, %v461
  %463 = vmatprep.mubr.bf16.mxu0 0
  %464 = vmatmul.mubr.bf16.gmra.mxu0 %v203
  %v465 = vpop.f32.mrf.mxu0
  %v466 = vadd.f32 0.0, %v465
  %v467 = vpop.f32.mrf.mxu0
  %v468 = vadd.f32 0.0, %v467
  %v469 = vpop.f32.mrf.mxu0
  %v470 = vadd.f32 0.0, %v469
  %v471 = vpop.f32.mrf.mxu0
  %v472 = vadd.f32 0.0, %v471
  %473 = vmatprep.mubr.bf16.mxu0 0
  %474 = vmatmul.mubr.bf16.gmra.mxu0 %v204
  %v475 = vpop.f32.mrf.mxu0
  %v476 = vadd.f32 0.0, %v475
  %v477 = vpop.f32.mrf.mxu0
  %v478 = vadd.f32 0.0, %v477
  %v479 = vpop.f32.mrf.mxu0
  %v480 = vadd.f32 0.0, %v479
  %v481 = vpop.f32.mrf.mxu0
  %v482 = vadd.f32 0.0, %v481
  %483 = vmatprep.mubr.bf16.mxu0 0
  %484 = vmatmul.mubr.bf16.gmra.mxu0 %v205
  %v485 = vpop.f32.mrf.mxu0
  %v486 = vadd.f32 0.0, %v485
  %v487 = vpop.f32.mrf.mxu0
  %v488 = vadd.f32 0.0, %v487
  %v489 = vpop.f32.mrf.mxu0
  %v490 = vadd.f32 0.0, %v489
  %v491 = vpop.f32.mrf.mxu0
  %v492 = vadd.f32 0.0, %v491
  %493 = vmatprep.mubr.bf16.mxu0 0
  %494 = vmatmul.mubr.bf16.gmra.mxu0 %v206
  %v495 = vpop.f32.mrf.mxu0
  %v496 = vadd.f32 0.0, %v495
  %v497 = vpop.f32.mrf.mxu0
  %v498 = vadd.f32 0.0, %v497
  %v499 = vpop.f32.mrf.mxu0
  %v500 = vadd.f32 0.0, %v499
  %v501 = vpop.f32.mrf.mxu0
  %v502 = vadd.f32 0.0, %v501
  %503 = vmatprep.mubr.bf16.mxu0 0
  %504 = vmatmul.mubr.bf16.gmra.mxu0 %v207
  %v505 = vpop.f32.mrf.mxu0
  %v506 = vadd.f32 0.0, %v505
  %v507 = vpop.f32.mrf.mxu0
  %v508 = vadd.f32 0.0, %v507
  %v509 = vpop.f32.mrf.mxu0
  %v510 = vadd.f32 0.0, %v509
  %v511 = vpop.f32.mrf.mxu0
  %v512 = vadd.f32 0.0, %v511
  %513 = vmatprep.mubr.bf16.mxu0 0
  %514 = vmatmul.mubr.bf16.gmra.mxu0 %v208
  %v515 = vpop.f32.mrf.mxu0
  %v516 = vadd.f32 0.0, %v515
  %v517 = vpop.f32.mrf.mxu0
  %v518 = vadd.f32 0.0, %v517
  %v519 = vpop.f32.mrf.mxu0
  %v520 = vadd.f32 0.0, %v519
  %v521 = vpop.f32.mrf.mxu0
  %v522 = vadd.f32 0.0, %v521
  %523 = vmatprep.mubr.bf16.mxu0 0
  %524 = vmatmul.mubr.bf16.gmra.mxu0 %v209
  %v525 = vpop.f32.mrf.mxu0
  %v526 = vadd.f32 0.0, %v525
  %v527 = vpop.f32.mrf.mxu0
  %v528 = vadd.f32 0.0, %v527
  %v529 = vpop.f32.mrf.mxu0
  %v530 = vadd.f32 0.0, %v529
  %v531 = vpop.f32.mrf.mxu0
  %v532 = vadd.f32 0.0, %v531
  %533 = vmatprep.mubr.bf16.mxu0 0
  %534 = vmatmul.mubr.bf16.gmra.mxu0 %v210
  %v535 = vpop.f32.mrf.mxu0
  %v536 = vadd.f32 0.0, %v535
  %v537 = vpop.f32.mrf.mxu0
  %v538 = vadd.f32 0.0, %v537
  %v539 = vpop.f32.mrf.mxu0
  %v540 = vadd.f32 0.0, %v539
  %v541 = vpop.f32.mrf.mxu0
  %v542 = vadd.f32 0.0, %v541
  %543 = vmatprep.mubr.bf16.mxu0 0
  %544 = vmatmul.mubr.bf16.gmra.mxu0 %v211
  %v545 = vpop.f32.mrf.mxu0
  %v546 = vadd.f32 0.0, %v545
  %v547 = vpop.f32.mrf.mxu0
  %v548 = vadd.f32 0.0, %v547
  %v549 = vpop.f32.mrf.mxu0
  %v550 = vadd.f32 0.0, %v549
  %v551 = vpop.f32.mrf.mxu0
  %v552 = vadd.f32 0.0, %v551
  %553 = vmatprep.mubr.bf16.mxu0 0
  %554 = vmatmul.mubr.bf16.gmra.mxu0 %v212
  %v555 = vpop.f32.mrf.mxu0
  %v556 = vadd.f32 0.0, %v555
  %v557 = vpop.f32.mrf.mxu0
  %v558 = vadd.f32 0.0, %v557
  %v559 = vpop.f32.mrf.mxu0
  %v560 = vadd.f32 0.0, %v559
  %v561 = vpop.f32.mrf.mxu0
  %v562 = vadd.f32 0.0, %v561
  %563 = vmatprep.mubr.bf16.mxu0 0
  %564 = vmatmul.mubr.bf16.gmra.mxu0 %v213
  %v565 = vpop.f32.mrf.mxu0
  %v566 = vadd.f32 0.0, %v565
  %v567 = vpop.f32.mrf.mxu0
  %v568 = vadd.f32 0.0, %v567
  %v569 = vpop.f32.mrf.mxu0
  %v570 = vadd.f32 0.0, %v569
  %v571 = vpop.f32.mrf.mxu0
  %v572 = vadd.f32 0.0, %v571
  %573 = vmatprep.mubr.bf16.mxu0 0
  %574 = vmatmul.mubr.bf16.gmra.mxu0 %v214
  %v575 = vpop.f32.mrf.mxu0
  %v576 = vadd.f32 0.0, %v575
  %v577 = vpop.f32.mrf.mxu0
  %v578 = vadd.f32 0.0, %v577
  %v579 = vpop.f32.mrf.mxu0
  %v580 = vadd.f32 0.0, %v579
  %v581 = vpop.f32.mrf.mxu0
  %v582 = vadd.f32 0.0, %v581
  %583 = vdwg.mxu0
  %584 = vmatprep.subr.bf16.mxu0 %v358
  %585 = vmatpush1.bf16.msra.mxu0 %v357
  %586 = vmatprep.subr.bf16.mxu0 %v354
  %587 = vmatpush1.bf16.msra.mxu0 %v353
  %588 = vmatprep.subr.bf16.mxu0 %v350
  %589 = vmatpush1.bf16.msra.mxu0 %v349
  %590 = vmatprep.subr.bf16.mxu0 %v346
  %591 = vmatpush1.bf16.msra.mxu0 %v345
  %592 = vmatprep.subr.bf16.mxu0 %v342
  %593 = vmatpush1.bf16.msra.mxu0 %v341
  %594 = vmatprep.subr.bf16.mxu0 %v338
  %595 = vmatpush1.bf16.msra.mxu0 %v337
  %596 = vmatprep.subr.bf16.mxu0 %v334
  %597 = vmatpush1.bf16.msra.mxu0 %v333
  %598 = vmatprep.subr.bf16.mxu0 %v330
  %599 = vmatpush1.bf16.msra.mxu0 %v329
  %600 = vmatprep.subr.bf16.mxu0 0
  %601 = vmatpush2.bf16.msra.mxu0 0
  %602 = vmatprep.subr.bf16.mxu0 0
  %603 = vmatpush2.bf16.msra.mxu0 0
  %604 = vmatprep.subr.bf16.mxu0 0
  %605 = vmatpush2.bf16.msra.mxu0 0
  %606 = vmatprep.subr.bf16.mxu0 0
  %607 = vmatpush2.bf16.msra.mxu0 0
  %608 = vmatprep.subr.bf16.mxu0 0
  %609 = vmatpush2.bf16.msra.mxu0 0
  %610 = vmatprep.subr.bf16.mxu0 0
  %611 = vmatpush2.bf16.msra.mxu0 0
  %612 = vmatprep.subr.bf16.mxu0 0
  %613 = vmatpush2.bf16.msra.mxu0 0
  %614 = vmatprep.subr.bf16.mxu0 0
  %615 = vmatpush2.bf16.msra.mxu0 0
  %616 = vmatprep.mubr.bf16.mxu0 0
  %617 = vmatmul.mubr.bf16.gmra.mxu0 %v199
  %v618 = vpop.f32.mrf.mxu0
  %v619 = vadd.f32 0.0, %v618
  %v620 = vpop.f32.mrf.mxu0
  %v621 = vadd.f32 0.0, %v620
  %v622 = vpop.f32.mrf.mxu0
  %v623 = vadd.f32 0.0, %v622
  %v624 = vpop.f32.mrf.mxu0
  %v625 = vadd.f32 0.0, %v624
  %626 = vmatprep.mubr.bf16.mxu0 0
  %627 = vmatmul.mubr.bf16.gmra.mxu0 %v200
  %v628 = vpop.f32.mrf.mxu0
  %v629 = vadd.f32 0.0, %v628
  %v630 = vpop.f32.mrf.mxu0
  %v631 = vadd.f32 0.0, %v630
  %v632 = vpop.f32.mrf.mxu0
  %v633 = vadd.f32 0.0, %v632
  %v634 = vpop.f32.mrf.mxu0
  %v635 = vadd.f32 0.0, %v634
  %636 = vmatprep.mubr.bf16.mxu0 0
  %637 = vmatmul.mubr.bf16.gmra.mxu0 %v201
  %v638 = vpop.f32.mrf.mxu0
  %v639 = vadd.f32 0.0, %v638
  %v640 = vpop.f32.mrf.mxu0
  %v641 = vadd.f32 0.0, %v640
  %v642 = vpop.f32.mrf.mxu0
  %v643 = vadd.f32 0.0, %v642
  %v644 = vpop.f32.mrf.mxu0
  %v645 = vadd.f32 0.0, %v644
  %646 = vmatprep.mubr.bf16.mxu0 0
  %647 = vmatmul.mubr.bf16.gmra.mxu0 %v202
  %v648 = vpop.f32.mrf.mxu0
  %v649 = vadd.f32 0.0, %v648
  %v650 = vpop.f32.mrf.mxu0
  %v651 = vadd.f32 0.0, %v650
  %v652 = vpop.f32.mrf.mxu0
  %v653 = vadd.f32 0.0, %v652
  %v654 = vpop.f32.mrf.mxu0
  %v655 = vadd.f32 0.0, %v654
  %656 = vmatprep.mubr.bf16.mxu0 0
  %657 = vmatmul.mubr.bf16.gmra.mxu0 %v203
  %v658 = vpop.f32.mrf.mxu0
  %v659 = vadd.f32 0.0, %v658
  %v660 = vpop.f32.mrf.mxu0
  %v661 = vadd.f32 0.0, %v660
  %v662 = vpop.f32.mrf.mxu0
  %v663 = vadd.f32 0.0, %v662
  %v664 = vpop.f32.mrf.mxu0
  %v665 = vadd.f32 0.0, %v664
  %666 = vmatprep.mubr.bf16.mxu0 0
  %667 = vmatmul.mubr.bf16.gmra.mxu0 %v204
  %v668 = vpop.f32.mrf.mxu0
  %v669 = vadd.f32 0.0, %v668
  %v670 = vpop.f32.mrf.mxu0
  %v671 = vadd.f32 0.0, %v670
  %v672 = vpop.f32.mrf.mxu0
  %v673 = vadd.f32 0.0, %v672
  %v674 = vpop.f32.mrf.mxu0
  %v675 = vadd.f32 0.0, %v674
  %676 = vmatprep.mubr.bf16.mxu0 0
  %677 = vmatmul.mubr.bf16.gmra.mxu0 %v205
  %v678 = vpop.f32.mrf.mxu0
  %v679 = vadd.f32 0.0, %v678
  %v680 = vpop.f32.mrf.mxu0
  %v681 = vadd.f32 0.0, %v680
  %v682 = vpop.f32.mrf.mxu0
  %v683 = vadd.f32 0.0, %v682
  %v684 = vpop.f32.mrf.mxu0
  %v685 = vadd.f32 0.0, %v684
  %686 = vmatprep.mubr.bf16.mxu0 0
  %687 = vmatmul.mubr.bf16.gmra.mxu0 %v206
  %v688 = vpop.f32.mrf.mxu0
  %v689 = vadd.f32 0.0, %v688
  %v690 = vpop.f32.mrf.mxu0
  %v691 = vadd.f32 0.0, %v690
  %v692 = vpop.f32.mrf.mxu0
  %v693 = vadd.f32 0.0, %v692
  %v694 = vpop.f32.mrf.mxu0
  %v695 = vadd.f32 0.0, %v694
  %696 = vmatprep.mubr.bf16.mxu0 0
  %697 = vmatmul.mubr.bf16.gmra.mxu0 %v207
  %v698 = vpop.f32.mrf.mxu0
  %v699 = vadd.f32 0.0, %v698
  %v700 = vpop.f32.mrf.mxu0
  %v701 = vadd.f32 0.0, %v700
  %v702 = vpop.f32.mrf.mxu0
  %v703 = vadd.f32 0.0, %v702
  %v704 = vpop.f32.mrf.mxu0
  %v705 = vadd.f32 0.0, %v704
  %706 = vmatprep.mubr.bf16.mxu0 0
  %707 = vmatmul.mubr.bf16.gmra.mxu0 %v208
  %v708 = vpop.f32.mrf.mxu0
  %v709 = vadd.f32 0.0, %v708
  %v710 = vpop.f32.mrf.mxu0
  %v711 = vadd.f32 0.0, %v710
  %v712 = vpop.f32.mrf.mxu0
  %v713 = vadd.f32 0.0, %v712
  %v714 = vpop.f32.mrf.mxu0
  %v715 = vadd.f32 0.0, %v714
  %716 = vmatprep.mubr.bf16.mxu0 0
  %717 = vmatmul.mubr.bf16.gmra.mxu0 %v209
  %v718 = vpop.f32.mrf.mxu0
  %v719 = vadd.f32 0.0, %v718
  %v720 = vpop.f32.mrf.mxu0
  %v721 = vadd.f32 0.0, %v720
  %v722 = vpop.f32.mrf.mxu0
  %v723 = vadd.f32 0.0, %v722
  %v724 = vpop.f32.mrf.mxu0
  %v725 = vadd.f32 0.0, %v724
  %726 = vmatprep.mubr.bf16.mxu0 0
  %727 = vmatmul.mubr.bf16.gmra.mxu0 %v210
  %v728 = vpop.f32.mrf.mxu0
  %v729 = vadd.f32 0.0, %v728
  %v730 = vpop.f32.mrf.mxu0
  %v731 = vadd.f32 0.0, %v730
  %v732 = vpop.f32.mrf.mxu0
  %v733 = vadd.f32 0.0, %v732
  %v734 = vpop.f32.mrf.mxu0
  %v735 = vadd.f32 0.0, %v734
  %736 = vmatprep.mubr.bf16.mxu0 0
  %737 = vmatmul.mubr.bf16.gmra.mxu0 %v211
  %v738 = vpop.f32.mrf.mxu0
  %v739 = vadd.f32 0.0, %v738
  %v740 = vpop.f32.mrf.mxu0
  %v741 = vadd.f32 0.0, %v740
  %v742 = vpop.f32.mrf.mxu0
  %v743 = vadd.f32 0.0, %v742
  %v744 = vpop.f32.mrf.mxu0
  %v745 = vadd.f32 0.0, %v744
  %746 = vmatprep.mubr.bf16.mxu0 0
  %747 = vmatmul.mubr.bf16.gmra.mxu0 %v212
  %v748 = vpop.f32.mrf.mxu0
  %v749 = vadd.f32 0.0, %v748
  %v750 = vpop.f32.mrf.mxu0
  %v751 = vadd.f32 0.0, %v750
  %v752 = vpop.f32.mrf.mxu0
  %v753 = vadd.f32 0.0, %v752
  %v754 = vpop.f32.mrf.mxu0
  %v755 = vadd.f32 0.0, %v754
  %756 = vmatprep.mubr.bf16.mxu0 0
  %757 = vmatmul.mubr.bf16.gmra.mxu0 %v213
  %v758 = vpop.f32.mrf.mxu0
  %v759 = vadd.f32 0.0, %v758
  %v760 = vpop.f32.mrf.mxu0
  %v761 = vadd.f32 0.0, %v760
  %v762 = vpop.f32.mrf.mxu0
  %v763 = vadd.f32 0.0, %v762
  %v764 = vpop.f32.mrf.mxu0
  %v765 = vadd.f32 0.0, %v764
  %766 = vmatprep.mubr.bf16.mxu0 0
  %767 = vmatmul.mubr.bf16.gmra.mxu0 %v214
  %v768 = vpop.f32.mrf.mxu0
  %v769 = vadd.f32 0.0, %v768
  %v770 = vpop.f32.mrf.mxu0
  %v771 = vadd.f32 0.0, %v770
  %v772 = vpop.f32.mrf.mxu0
  %v773 = vadd.f32 0.0, %v772
  %v774 = vpop.f32.mrf.mxu0
  %v775 = vadd.f32 0.0, %v774
  %776 = vdwg.mxu0
  %v777 = vadd.f32 %v426, %v430
  %v778 = vadd.f32 %v777, %v436
  %v779 = vadd.f32 %v778, %v440
  %v780 = vadd.f32 %v779, %v446
  %v781 = vadd.f32 %v780, %v450
  %v782 = vadd.f32 %v781, %v456
  %v783 = vadd.f32 %v782, %v460
  %v784 = vadd.f32 %v783, %v466
  %v785 = vadd.f32 %v784, %v470
  %v786 = vadd.f32 %v785, %v476
  %v787 = vadd.f32 %v786, %v480
  %v788 = vadd.f32 %v787, %v486
  %v789 = vadd.f32 %v788, %v490
  %v790 = vadd.f32 %v789, %v496
  %v791 = vadd.f32 %v790, %v500
  %v792 = vadd.f32 %v791, %v506
  %v793 = vadd.f32 %v792, %v510
  %v794 = vadd.f32 %v793, %v516
  %v795 = vadd.f32 %v794, %v520
  %v796 = vadd.f32 %v795, %v526
  %v797 = vadd.f32 %v796, %v530
  %v798 = vadd.f32 %v797, %v536
  %v799 = vadd.f32 %v798, %v540
  %v800 = vadd.f32 %v799, %v546
  %v801 = vadd.f32 %v800, %v550
  %v802 = vadd.f32 %v801, %v556
  %v803 = vadd.f32 %v802, %v560
  %v804 = vadd.f32 %v803, %v566
  %v805 = vadd.f32 %v804, %v570
  %v806 = vadd.f32 %v805, %v576
  %v807 = vadd.f32 %v806, %v580
  %v808 = vrot.slane %v807, 4
  %v809 = vadd.f32 %v807, %v808
  %v810 = vrot.slane %v809, 2
  %v811 = vadd.f32 %v809, %v810
  %v812 = vrot.slane %v811, 1
  %v813 = vadd.f32 %v811, %v812
  %v814 = vadd.f32 %v428, %v432
  %v815 = vadd.f32 %v814, %v438
  %v816 = vadd.f32 %v815, %v442
  %v817 = vadd.f32 %v816, %v448
  %v818 = vadd.f32 %v817, %v452
  %v819 = vadd.f32 %v818, %v458
  %v820 = vadd.f32 %v819, %v462
  %v821 = vadd.f32 %v820, %v468
  %v822 = vadd.f32 %v821, %v472
  %v823 = vadd.f32 %v822, %v478
  %v824 = vadd.f32 %v823, %v482
  %v825 = vadd.f32 %v824, %v488
  %v826 = vadd.f32 %v825, %v492
  %v827 = vadd.f32 %v826, %v498
  %v828 = vadd.f32 %v827, %v502
  %v829 = vadd.f32 %v828, %v508
  %v830 = vadd.f32 %v829, %v512
  %v831 = vadd.f32 %v830, %v518
  %v832 = vadd.f32 %v831, %v522
  %v833 = vadd.f32 %v832, %v528
  %v834 = vadd.f32 %v833, %v532
  %v835 = vadd.f32 %v834, %v538
  %v836 = vadd.f32 %v835, %v542
  %v837 = vadd.f32 %v836, %v548
  %v838 = vadd.f32 %v837, %v552
  %v839 = vadd.f32 %v838, %v558
  %v840 = vadd.f32 %v839, %v562
  %v841 = vadd.f32 %v840, %v568
  %v842 = vadd.f32 %v841, %v572
  %v843 = vadd.f32 %v842, %v578
  %v844 = vadd.f32 %v843, %v582
  %v845 = vrot.slane %v844, 4
  %v846 = vadd.f32 %v844, %v845
  %v847 = vrot.slane %v846, 2
  %v848 = vadd.f32 %v846, %v847
  %v849 = vrot.slane %v848, 1
  %v850 = vadd.f32 %v848, %v849
  %v851 = vadd.f32 %v619, %v623
  %v852 = vadd.f32 %v851, %v629
  %v853 = vadd.f32 %v852, %v633
  %v854 = vadd.f32 %v853, %v639
  %v855 = vadd.f32 %v854, %v643
  %v856 = vadd.f32 %v855, %v649
  %v857 = vadd.f32 %v856, %v653
  %v858 = vadd.f32 %v857, %v659
  %v859 = vadd.f32 %v858, %v663
  %v860 = vadd.f32 %v859, %v669
  %v861 = vadd.f32 %v860, %v673
  %v862 = vadd.f32 %v861, %v679
  %v863 = vadd.f32 %v862, %v683
  %v864 = vadd.f32 %v863, %v689
  %v865 = vadd.f32 %v864, %v693
  %v866 = vadd.f32 %v865, %v699
  %v867 = vadd.f32 %v866, %v703
  %v868 = vadd.f32 %v867, %v709
  %v869 = vadd.f32 %v868, %v713
  %v870 = vadd.f32 %v869, %v719
  %v871 = vadd.f32 %v870, %v723
  %v872 = vadd.f32 %v871, %v729
  %v873 = vadd.f32 %v872, %v733
  %v874 = vadd.f32 %v873, %v739
  %v875 = vadd.f32 %v874, %v743
  %v876 = vadd.f32 %v875, %v749
  %v877 = vadd.f32 %v876, %v753
  %v878 = vadd.f32 %v877, %v759
  %v879 = vadd.f32 %v878, %v763
  %v880 = vadd.f32 %v879, %v769
  %v881 = vadd.f32 %v880, %v773
  %v882 = vrot.slane %v881, 4
  %v883 = vadd.f32 %v881, %v882
  %v884 = vrot.slane %v883, 2
  %v885 = vadd.f32 %v883, %v884
  %v886 = vrot.slane %v885, 1
  %v887 = vadd.f32 %v885, %v886
  %v888 = vadd.f32 %v621, %v625
  %v889 = vadd.f32 %v888, %v631
  %v890 = vadd.f32 %v889, %v635
  %v891 = vadd.f32 %v890, %v641
  %v892 = vadd.f32 %v891, %v645
  %v893 = vadd.f32 %v892, %v651
  %v894 = vadd.f32 %v893, %v655
  %v895 = vadd.f32 %v894, %v661
  %v896 = vadd.f32 %v895, %v665
  %v897 = vadd.f32 %v896, %v671
  %v898 = vadd.f32 %v897, %v675
  %v899 = vadd.f32 %v898, %v681
  %v900 = vadd.f32 %v899, %v685
  %v901 = vadd.f32 %v900, %v691
  %v902 = vadd.f32 %v901, %v695
  %v903 = vadd.f32 %v902, %v701
  %v904 = vadd.f32 %v903, %v705
  %v905 = vadd.f32 %v904, %v711
  %v906 = vadd.f32 %v905, %v715
  %v907 = vadd.f32 %v906, %v721
  %v908 = vadd.f32 %v907, %v725
  %v909 = vadd.f32 %v908, %v731
  %v910 = vadd.f32 %v909, %v735
  %v911 = vadd.f32 %v910, %v741
  %v912 = vadd.f32 %v911, %v745
  %v913 = vadd.f32 %v912, %v751
  %v914 = vadd.f32 %v913, %v755
  %v915 = vadd.f32 %v914, %v761
  %v916 = vadd.f32 %v915, %v765
  %v917 = vadd.f32 %v916, %v771
  %v918 = vadd.f32 %v917, %v775
  %v919 = vrot.slane %v918, 4
  %v920 = vadd.f32 %v918, %v919
  %v921 = vrot.slane %v920, 2
  %v922 = vadd.f32 %v920, %v921
  %v923 = vrot.slane %v922, 1
  %v924 = vadd.f32 %v922, %v923
  %v925 = vmul.f32 %v426, %v426
  %v926 = vmul.f32 %v428, %v428
  %v927 = vmul.f32 %v619, %v619
  %v928 = vmul.f32 %v621, %v621
  %v929 = vmul.f32 %v430, %v430
  %v930 = vmul.f32 %v432, %v432
  %v931 = vmul.f32 %v623, %v623
  %v932 = vmul.f32 %v625, %v625
  %v933 = vmul.f32 %v436, %v436
  %v934 = vmul.f32 %v438, %v438
  %v935 = vmul.f32 %v629, %v629
  %v936 = vmul.f32 %v631, %v631
  %v937 = vmul.f32 %v440, %v440
  %v938 = vmul.f32 %v442, %v442
  %v939 = vmul.f32 %v633, %v633
  %v940 = vmul.f32 %v635, %v635
  %v941 = vmul.f32 %v446, %v446
  %v942 = vmul.f32 %v448, %v448
  %v943 = vmul.f32 %v639, %v639
  %v944 = vmul.f32 %v641, %v641
  %v945 = vmul.f32 %v450, %v450
  %v946 = vmul.f32 %v452, %v452
  %v947 = vmul.f32 %v643, %v643
  %v948 = vmul.f32 %v645, %v645
  %v949 = vmul.f32 %v456, %v456
  %v950 = vmul.f32 %v458, %v458
  %v951 = vmul.f32 %v649, %v649
  %v952 = vmul.f32 %v651, %v651
  %v953 = vmul.f32 %v460, %v460
  %v954 = vmul.f32 %v462, %v462
  %v955 = vmul.f32 %v653, %v653
  %v956 = vmul.f32 %v655, %v655
  %v957 = vmul.f32 %v466, %v466
  %v958 = vmul.f32 %v468, %v468
  %v959 = vmul.f32 %v659, %v659
  %v960 = vmul.f32 %v661, %v661
  %v961 = vmul.f32 %v470, %v470
  %v962 = vmul.f32 %v472, %v472
  %v963 = vmul.f32 %v663, %v663
  %v964 = vmul.f32 %v665, %v665
  %v965 = vmul.f32 %v476, %v476
  %v966 = vmul.f32 %v478, %v478
  %v967 = vmul.f32 %v669, %v669
  %v968 = vmul.f32 %v671, %v671
  %v969 = vmul.f32 %v480, %v480
  %v970 = vmul.f32 %v482, %v482
  %v971 = vmul.f32 %v673, %v673
  %v972 = vmul.f32 %v675, %v675
  %v973 = vmul.f32 %v486, %v486
  %v974 = vmul.f32 %v488, %v488
  %v975 = vmul.f32 %v679, %v679
  %v976 = vmul.f32 %v681, %v681
  %v977 = vmul.f32 %v490, %v490
  %v978 = vmul.f32 %v492, %v492
  %v979 = vmul.f32 %v683, %v683
  %v980 = vmul.f32 %v685, %v685
  %v981 = vmul.f32 %v496, %v496
  %v982 = vmul.f32 %v498, %v498
  %v983 = vmul.f32 %v689, %v689
  %v984 = vmul.f32 %v691, %v691
  %v985 = vmul.f32 %v500, %v500
  %v986 = vmul.f32 %v502, %v502
  %v987 = vmul.f32 %v693, %v693
  %v988 = vmul.f32 %v695, %v695
  %v989 = vmul.f32 %v506, %v506
  %v990 = vmul.f32 %v508, %v508
  %v991 = vmul.f32 %v699, %v699
  %v992 = vmul.f32 %v701, %v701
  %v993 = vmul.f32 %v510, %v510
  %v994 = vmul.f32 %v512, %v512
  %v995 = vmul.f32 %v703, %v703
  %v996 = vmul.f32 %v705, %v705
  %v997 = vmul.f32 %v516, %v516
  %v998 = vmul.f32 %v518, %v518
  %v999 = vmul.f32 %v709, %v709
  %v1000 = vmul.f32 %v711, %v711
  %v1001 = vmul.f32 %v520, %v520
  %v1002 = vmul.f32 %v522, %v522
  %v1003 = vmul.f32 %v713, %v713
  %v1004 = vmul.f32 %v715, %v715
  %v1005 = vmul.f32 %v526, %v526
  %v1006 = vmul.f32 %v528, %v528
  %v1007 = vmul.f32 %v719, %v719
  %v1008 = vmul.f32 %v721, %v721
  %v1009 = vmul.f32 %v530, %v530
  %v1010 = vmul.f32 %v532, %v532
  %v1011 = vmul.f32 %v723, %v723
  %v1012 = vmul.f32 %v725, %v725
  %v1013 = vmul.f32 %v536, %v536
  %v1014 = vmul.f32 %v538, %v538
  %v1015 = vmul.f32 %v729, %v729
  %v1016 = vmul.f32 %v731, %v731
  %v1017 = vmul.f32 %v540, %v540
  %v1018 = vmul.f32 %v542, %v542
  %v1019 = vmul.f32 %v733, %v733
  %v1020 = vmul.f32 %v735, %v735
  %v1021 = vmul.f32 %v546, %v546
  %v1022 = vmul.f32 %v548, %v548
  %v1023 = vmul.f32 %v739, %v739
  %v1024 = vmul.f32 %v741, %v741
  %v1025 = vmul.f32 %v550, %v550
  %v1026 = vmul.f32 %v552, %v552
  %v1027 = vmul.f32 %v743, %v743
  %v1028 = vmul.f32 %v745, %v745
  %v1029 = vmul.f32 %v556, %v556
  %v1030 = vmul.f32 %v558, %v558
  %v1031 = vmul.f32 %v749, %v749
  %v1032 = vmul.f32 %v751, %v751
  %v1033 = vmul.f32 %v560, %v560
  %v1034 = vmul.f32 %v562, %v562
  %v1035 = vmul.f32 %v753, %v753
  %v1036 = vmul.f32 %v755, %v755
  %v1037 = vmul.f32 %v566, %v566
  %v1038 = vmul.f32 %v568, %v568
  %v1039 = vmul.f32 %v759, %v759
  %v1040 = vmul.f32 %v761, %v761
  %v1041 = vmul.f32 %v570, %v570
  %v1042 = vmul.f32 %v572, %v572
  %v1043 = vmul.f32 %v763, %v763
  %v1044 = vmul.f32 %v765, %v765
  %v1045 = vmul.f32 %v576, %v576
  %v1046 = vmul.f32 %v578, %v578
  %v1047 = vmul.f32 %v769, %v769
  %v1048 = vmul.f32 %v771, %v771
  %v1049 = vmul.f32 %v580, %v580
  %v1050 = vmul.f32 %v582, %v582
  %v1051 = vmul.f32 %v773, %v773
  %v1052 = vmul.f32 %v775, %v775
  %v1053 = vadd.f32 %v925, %v929
  %v1054 = vadd.f32 %v1053, %v933
  %v1055 = vadd.f32 %v1054, %v937
  %v1056 = vadd.f32 %v1055, %v941
  %v1057 = vadd.f32 %v1056, %v945
  %v1058 = vadd.f32 %v1057, %v949
  %v1059 = vadd.f32 %v1058, %v953
  %v1060 = vadd.f32 %v1059, %v957
  %v1061 = vadd.f32 %v1060, %v961
  %v1062 = vadd.f32 %v1061, %v965
  %v1063 = vadd.f32 %v1062, %v969
  %v1064 = vadd.f32 %v1063, %v973
  %v1065 = vadd.f32 %v1064, %v977
  %v1066 = vadd.f32 %v1065, %v981
  %v1067 = vadd.f32 %v1066, %v985
  %v1068 = vadd.f32 %v1067, %v989
  %v1069 = vadd.f32 %v1068, %v993
  %v1070 = vadd.f32 %v1069, %v997
  %v1071 = vadd.f32 %v1070, %v1001
  %v1072 = vadd.f32 %v1071, %v1005
  %v1073 = vadd.f32 %v1072, %v1009
  %v1074 = vadd.f32 %v1073, %v1013
  %v1075 = vadd.f32 %v1074, %v1017
  %v1076 = vadd.f32 %v1075, %v1021
  %v1077 = vadd.f32 %v1076, %v1025
  %v1078 = vadd.f32 %v1077, %v1029
  %v1079 = vadd.f32 %v1078, %v1033
  %v1080 = vadd.f32 %v1079, %v1037
  %v1081 = vadd.f32 %v1080, %v1041
  %v1082 = vadd.f32 %v1081, %v1045
  %v1083 = vadd.f32 %v1082, %v1049
  %v1084 = vrot.slane %v1083, 4
  %v1085 = vadd.f32 %v1083, %v1084
  %v1086 = vrot.slane %v1085, 2
  %v1087 = vadd.f32 %v1085, %v1086
  %v1088 = vrot.slane %v1087, 1
  %v1089 = vadd.f32 %v1087, %v1088
  %v1090 = vadd.f32 %v926, %v930
  %v1091 = vadd.f32 %v1090, %v934
  %v1092 = vadd.f32 %v1091, %v938
  %v1093 = vadd.f32 %v1092, %v942
  %v1094 = vadd.f32 %v1093, %v946
  %v1095 = vadd.f32 %v1094, %v950
  %v1096 = vadd.f32 %v1095, %v954
  %v1097 = vadd.f32 %v1096, %v958
  %v1098 = vadd.f32 %v1097, %v962
  %v1099 = vadd.f32 %v1098, %v966
  %v1100 = vadd.f32 %v1099, %v970
  %v1101 = vadd.f32 %v1100, %v974
  %v1102 = vadd.f32 %v1101, %v978
  %v1103 = vadd.f32 %v1102, %v982
  %v1104 = vadd.f32 %v1103, %v986
  %v1105 = vadd.f32 %v1104, %v990
  %v1106 = vadd.f32 %v1105, %v994
  %v1107 = vadd.f32 %v1106, %v998
  %v1108 = vadd.f32 %v1107, %v1002
  %v1109 = vadd.f32 %v1108, %v1006
  %v1110 = vadd.f32 %v1109, %v1010
  %v1111 = vadd.f32 %v1110, %v1014
  %v1112 = vadd.f32 %v1111, %v1018
  %v1113 = vadd.f32 %v1112, %v1022
  %v1114 = vadd.f32 %v1113, %v1026
  %v1115 = vadd.f32 %v1114, %v1030
  %v1116 = vadd.f32 %v1115, %v1034
  %v1117 = vadd.f32 %v1116, %v1038
  %v1118 = vadd.f32 %v1117, %v1042
  %v1119 = vadd.f32 %v1118, %v1046
  %v1120 = vadd.f32 %v1119, %v1050
  %v1121 = vrot.slane %v1120, 4
  %v1122 = vadd.f32 %v1120, %v1121
  %v1123 = vrot.slane %v1122, 2
  %v1124 = vadd.f32 %v1122, %v1123
  %v1125 = vrot.slane %v1124, 1
  %v1126 = vadd.f32 %v1124, %v1125
  %v1127 = vadd.f32 %v927, %v931
  %v1128 = vadd.f32 %v1127, %v935
  %v1129 = vadd.f32 %v1128, %v939
  %v1130 = vadd.f32 %v1129, %v943
  %v1131 = vadd.f32 %v1130, %v947
  %v1132 = vadd.f32 %v1131, %v951
  %v1133 = vadd.f32 %v1132, %v955
  %v1134 = vadd.f32 %v1133, %v959
  %v1135 = vadd.f32 %v1134, %v963
  %v1136 = vadd.f32 %v1135, %v967
  %v1137 = vadd.f32 %v1136, %v971
  %v1138 = vadd.f32 %v1137, %v975
  %v1139 = vadd.f32 %v1138, %v979
  %v1140 = vadd.f32 %v1139, %v983
  %v1141 = vadd.f32 %v1140, %v987
  %v1142 = vadd.f32 %v1141, %v991
  %v1143 = vadd.f32 %v1142, %v995
  %v1144 = vadd.f32 %v1143, %v999
  %v1145 = vadd.f32 %v1144, %v1003
  %v1146 = vadd.f32 %v1145, %v1007
  %v1147 = vadd.f32 %v1146, %v1011
  %v1148 = vadd.f32 %v1147, %v1015
  %v1149 = vadd.f32 %v1148, %v1019
  %v1150 = vadd.f32 %v1149, %v1023
  %v1151 = vadd.f32 %v1150, %v1027
  %v1152 = vadd.f32 %v1151, %v1031
  %v1153 = vadd.f32 %v1152, %v1035
  %v1154 = vadd.f32 %v1153, %v1039
  %v1155 = vadd.f32 %v1154, %v1043
  %v1156 = vadd.f32 %v1155, %v1047
  %v1157 = vadd.f32 %v1156, %v1051
  %v1158 = vrot.slane %v1157, 4
  %v1159 = vadd.f32 %v1157, %v1158
  %v1160 = vrot.slane %v1159, 2
  %v1161 = vadd.f32 %v1159, %v1160
  %v1162 = vrot.slane %v1161, 1
  %v1163 = vadd.f32 %v1161, %v1162
  %v1164 = vadd.f32 %v928, %v932
  %v1165 = vadd.f32 %v1164, %v936
  %v1166 = vadd.f32 %v1165, %v940
  %v1167 = vadd.f32 %v1166, %v944
  %v1168 = vadd.f32 %v1167, %v948
  %v1169 = vadd.f32 %v1168, %v952
  %v1170 = vadd.f32 %v1169, %v956
  %v1171 = vadd.f32 %v1170, %v960
  %v1172 = vadd.f32 %v1171, %v964
  %v1173 = vadd.f32 %v1172, %v968
  %v1174 = vadd.f32 %v1173, %v972
  %v1175 = vadd.f32 %v1174, %v976
  %v1176 = vadd.f32 %v1175, %v980
  %v1177 = vadd.f32 %v1176, %v984
  %v1178 = vadd.f32 %v1177, %v988
  %v1179 = vadd.f32 %v1178, %v992
  %v1180 = vadd.f32 %v1179, %v996
  %v1181 = vadd.f32 %v1180, %v1000
  %v1182 = vadd.f32 %v1181, %v1004
  %v1183 = vadd.f32 %v1182, %v1008
  %v1184 = vadd.f32 %v1183, %v1012
  %v1185 = vadd.f32 %v1184, %v1016
  %v1186 = vadd.f32 %v1185, %v1020
  %v1187 = vadd.f32 %v1186, %v1024
  %v1188 = vadd.f32 %v1187, %v1028
  %v1189 = vadd.f32 %v1188, %v1032
  %v1190 = vadd.f32 %v1189, %v1036
  %v1191 = vadd.f32 %v1190, %v1040
  %v1192 = vadd.f32 %v1191, %v1044
  %v1193 = vadd.f32 %v1192, %v1048
  %v1194 = vadd.f32 %v1193, %v1052
  %v1195 = vrot.slane %v1194, 4
  %v1196 = vadd.f32 %v1194, %v1195
  %v1197 = vrot.slane %v1196, 2
  %v1198 = vadd.f32 %v1196, %v1197
  %v1199 = vrot.slane %v1198, 1
  %v1200 = vadd.f32 %v1198, %v1199
  %v1201 = vmul.f32 %v813, 0.00390625
  %v1202 = vmul.f32 %v850, 0.00390625
  %v1203 = vmul.f32 %v887, 0.00390625
  %v1204 = vmul.f32 %v924, 0.00390625
  %v1205 = vmul.f32 %v1089, 0.00390625
  %v1206 = vmul.f32 %v1126, 0.00390625
  %v1207 = vmul.f32 %v1163, 0.00390625
  %v1208 = vmul.f32 %v1200, 0.00390625
  %v1209 = vmul.f32 %v1201, %v1201
  %v1210 = vmul.f32 %v1202, %v1202
  %v1211 = vmul.f32 %v1203, %v1203
  %v1212 = vmul.f32 %v1204, %v1204
  %v1213 = vsub.f32 %v1205, %v1209
  %v1214 = vsub.f32 %v1206, %v1210
  %v1215 = vsub.f32 %v1207, %v1211
  %v1216 = vsub.f32 %v1208, %v1212
  %v1217 = vmax.f32 %v1213, 0.0
  %v1218 = vmax.f32 %v1214, 0.0
  %v1219 = vmax.f32 %v1215, 0.0
  %v1220 = vmax.f32 %v1216, 0.0
  %v1221 = vld [vmem:[%s3] sm:$0xf]
  %v1222 = vadd.f32 %v1217, 1e-05
  %v1223 = vadd.f32 %v1218, 1e-05
  %v1224 = vadd.f32 %v1219, 1e-05
  %v1225 = vadd.f32 %v1220, 1e-05
  %v1226 = vrsqrt.pop %v1222
  %v1227 = vrsqrt.pop %v1223
  %v1228 = vrsqrt.pop %v1224
  %v1229 = vrsqrt.pop %v1225
  %v1234 = vcombine.low %v1226, %v1227
  %v1235 = vcombine.low %v1228, %v1229
  %v1237 = vunpack.c.l.s4 1966171168
  %v1238 = vunpack.c.0.s8 %v1237
  %v1239 = vlaneseq
  %v1240 = vshrl.u32 %v1239, 7
  %v1241 = vsub.s32 %v1238, %v1240
  %v1242 = vrot.slane %v1234, %v1241
  %v1244 = vunpack.c.l.s4 1966171168
  %v1245 = vunpack.c.0.s8 %v1244
  %v1246 = vlaneseq
  %v1247 = vshrl.u32 %v1246, 7
  %v1248 = vsub.s32 %v1245, %v1247
  %v1249 = vrot.slane %v1235, %v1248
  %v1250 = vcombine.low %v1242, %v1249
  %v1252 = vunpack.c.l.s4 1966171168
  %v1253 = vunpack.c.0.s8 %v1252
  %v1254 = vlaneseq
  %v1255 = vshrl.u32 %v1254, 7
  %v1256 = vsub.s32 %v1253, %v1255
  %v1257 = vrot.slane %v1250, %v1256
  %v1259 = vmul.f32 %v1221, %v1257
  %v1260 = vld [vmem:[%s4] sm:$0xf]
  %v1262 = vlaneseq
  %v1263 = vshrl.u32 %v1262, 7
  %v1264 = vsub.s32 0, %v1263
  %v1265 = vrot.slane %v1259, %v1264
  %v1266 = vlaneseq
  %v1267 = vshrl.u32 %v1266, 7
  %v1268 = vsub.s32 1, %v1267
  %v1269 = vrot.slane %v1259, %v1268
  %v1270 = vlaneseq
  %v1271 = vshrl.u32 %v1270, 7
  %v1272 = vsub.s32 2, %v1271
  %v1273 = vrot.slane %v1259, %v1272
  %v1274 = vlaneseq
  %v1275 = vshrl.u32 %v1274, 7
  %v1276 = vsub.s32 3, %v1275
  %v1277 = vrot.slane %v1259, %v1276
  %v1282 = vmul.f32 %v1201, %v1265
  %v1283 = vmul.f32 %v1202, %v1269
  %v1284 = vmul.f32 %v1203, %v1273
  %v1285 = vmul.f32 %v1204, %v1277
  %v1290 = vcombine.low %v1282, %v1283
  %v1291 = vcombine.low %v1284, %v1285
  %v1293 = vunpack.c.l.s4 1966171168
  %v1294 = vunpack.c.0.s8 %v1293
  %v1295 = vlaneseq
  %v1296 = vshrl.u32 %v1295, 7
  %v1297 = vsub.s32 %v1294, %v1296
  %v1298 = vrot.slane %v1290, %v1297
  %v1300 = vunpack.c.l.s4 1966171168
  %v1301 = vunpack.c.0.s8 %v1300
  %v1302 = vlaneseq
  %v1303 = vshrl.u32 %v1302, 7
  %v1304 = vsub.s32 %v1301, %v1303
  %v1305 = vrot.slane %v1291, %v1304
  %v1306 = vcombine.low %v1298, %v1305
  %v1308 = vunpack.c.l.s4 1966171168
  %v1309 = vunpack.c.0.s8 %v1308
  %v1310 = vlaneseq
  %v1311 = vshrl.u32 %v1310, 7
  %v1312 = vsub.s32 %v1309, %v1311
  %v1313 = vrot.slane %v1306, %v1312
  %v1315 = vsub.f32 %v1260, %v1313
  %v1316 = vmul.f32 %v426, %v1265
  %v1317 = vmul.f32 %v428, %v1269
  %v1318 = vmul.f32 %v619, %v1273
  %v1319 = vmul.f32 %v621, %v1277
  %v1320 = vmul.f32 %v430, %v1265
  %v1321 = vmul.f32 %v432, %v1269
  %v1322 = vmul.f32 %v623, %v1273
  %v1323 = vmul.f32 %v625, %v1277
  %v1324 = vmul.f32 %v436, %v1265
  %v1325 = vmul.f32 %v438, %v1269
  %v1326 = vmul.f32 %v629, %v1273
  %v1327 = vmul.f32 %v631, %v1277
  %v1328 = vmul.f32 %v440, %v1265
  %v1329 = vmul.f32 %v442, %v1269
  %v1330 = vmul.f32 %v633, %v1273
  %v1331 = vmul.f32 %v635, %v1277
  %v1332 = vmul.f32 %v446, %v1265
  %v1333 = vmul.f32 %v448, %v1269
  %v1334 = vmul.f32 %v639, %v1273
  %v1335 = vmul.f32 %v641, %v1277
  %v1336 = vmul.f32 %v450, %v1265
  %v1337 = vmul.f32 %v452, %v1269
  %v1338 = vmul.f32 %v643, %v1273
  %v1339 = vmul.f32 %v645, %v1277
  %v1340 = vmul.f32 %v456, %v1265
  %v1341 = vmul.f32 %v458, %v1269
  %v1342 = vmul.f32 %v649, %v1273
  %v1343 = vmul.f32 %v651, %v1277
  %v1344 = vmul.f32 %v460, %v1265
  %v1345 = vmul.f32 %v462, %v1269
  %v1346 = vmul.f32 %v653, %v1273
  %v1347 = vmul.f32 %v655, %v1277
  %v1348 = vmul.f32 %v466, %v1265
  %v1349 = vmul.f32 %v468, %v1269
  %v1350 = vmul.f32 %v659, %v1273
  %v1351 = vmul.f32 %v661, %v1277
  %v1352 = vmul.f32 %v470, %v1265
  %v1353 = vmul.f32 %v472, %v1269
  %v1354 = vmul.f32 %v663, %v1273
  %v1355 = vmul.f32 %v665, %v1277
  %v1356 = vmul.f32 %v476, %v1265
  %v1357 = vmul.f32 %v478, %v1269
  %v1358 = vmul.f32 %v669, %v1273
  %v1359 = vmul.f32 %v671, %v1277
  %v1360 = vmul.f32 %v480, %v1265
  %v1361 = vmul.f32 %v482, %v1269
  %v1362 = vmul.f32 %v673, %v1273
  %v1363 = vmul.f32 %v675, %v1277
  %v1364 = vmul.f32 %v486, %v1265
  %v1365 = vmul.f32 %v488, %v1269
  %v1366 = vmul.f32 %v679, %v1273
  %v1367 = vmul.f32 %v681, %v1277
  %v1368 = vmul.f32 %v490, %v1265
  %v1369 = vmul.f32 %v492, %v1269
  %v1370 = vmul.f32 %v683, %v1273
  %v1371 = vmul.f32 %v685, %v1277
  %v1372 = vmul.f32 %v496, %v1265
  %v1373 = vmul.f32 %v498, %v1269
  %v1374 = vmul.f32 %v689, %v1273
  %v1375 = vmul.f32 %v691, %v1277
  %v1376 = vmul.f32 %v500, %v1265
  %v1377 = vmul.f32 %v502, %v1269
  %v1378 = vmul.f32 %v693, %v1273
  %v1379 = vmul.f32 %v695, %v1277
  %v1380 = vmul.f32 %v506, %v1265
  %v1381 = vmul.f32 %v508, %v1269
  %v1382 = vmul.f32 %v699, %v1273
  %v1383 = vmul.f32 %v701, %v1277
  %v1384 = vmul.f32 %v510, %v1265
  %v1385 = vmul.f32 %v512, %v1269
  %v1386 = vmul.f32 %v703, %v1273
  %v1387 = vmul.f32 %v705, %v1277
  %v1388 = vmul.f32 %v516, %v1265
  %v1389 = vmul.f32 %v518, %v1269
  %v1390 = vmul.f32 %v709, %v1273
  %v1391 = vmul.f32 %v711, %v1277
  %v1392 = vmul.f32 %v520, %v1265
  %v1393 = vmul.f32 %v522, %v1269
  %v1394 = vmul.f32 %v713, %v1273
  %v1395 = vmul.f32 %v715, %v1277
  %v1396 = vmul.f32 %v526, %v1265
  %v1397 = vmul.f32 %v528, %v1269
  %v1398 = vmul.f32 %v719, %v1273
  %v1399 = vmul.f32 %v721, %v1277
  %v1400 = vmul.f32 %v530, %v1265
  %v1401 = vmul.f32 %v532, %v1269
  %v1402 = vmul.f32 %v723, %v1273
  %v1403 = vmul.f32 %v725, %v1277
  %v1404 = vmul.f32 %v536, %v1265
  %v1405 = vmul.f32 %v538, %v1269
  %v1406 = vmul.f32 %v729, %v1273
  %v1407 = vmul.f32 %v731, %v1277
  %v1408 = vmul.f32 %v540, %v1265
  %v1409 = vmul.f32 %v542, %v1269
  %v1410 = vmul.f32 %v733, %v1273
  %v1411 = vmul.f32 %v735, %v1277
  %v1412 = vmul.f32 %v546, %v1265
  %v1413 = vmul.f32 %v548, %v1269
  %v1414 = vmul.f32 %v739, %v1273
  %v1415 = vmul.f32 %v741, %v1277
  %v1416 = vmul.f32 %v550, %v1265
  %v1417 = vmul.f32 %v552, %v1269
  %v1418 = vmul.f32 %v743, %v1273
  %v1419 = vmul.f32 %v745, %v1277
  %v1420 = vmul.f32 %v556, %v1265
  %v1421 = vmul.f32 %v558, %v1269
  %v1422 = vmul.f32 %v749, %v1273
  %v1423 = vmul.f32 %v751, %v1277
  %v1424 = vmul.f32 %v560, %v1265
  %v1425 = vmul.f32 %v562, %v1269
  %v1426 = vmul.f32 %v753, %v1273
  %v1427 = vmul.f32 %v755, %v1277
  %v1428 = vmul.f32 %v566, %v1265
  %v1429 = vmul.f32 %v568, %v1269
  %v1430 = vmul.f32 %v759, %v1273
  %v1431 = vmul.f32 %v761, %v1277
  %v1432 = vmul.f32 %v570, %v1265
  %v1433 = vmul.f32 %v572, %v1269
  %v1434 = vmul.f32 %v763, %v1273
  %v1435 = vmul.f32 %v765, %v1277
  %v1436 = vmul.f32 %v576, %v1265
  %v1437 = vmul.f32 %v578, %v1269
  %v1438 = vmul.f32 %v769, %v1273
  %v1439 = vmul.f32 %v771, %v1277
  %v1440 = vmul.f32 %v580, %v1265
  %v1441 = vmul.f32 %v582, %v1269
  %v1442 = vmul.f32 %v773, %v1273
  %v1443 = vmul.f32 %v775, %v1277
  %v1445 = vlaneseq
  %v1446 = vshrl.u32 %v1445, 7
  %v1447 = vsub.s32 0, %v1446
  %v1448 = vrot.slane %v1315, %v1447
  %v1449 = vlaneseq
  %v1450 = vshrl.u32 %v1449, 7
  %v1451 = vsub.s32 1, %v1450
  %v1452 = vrot.slane %v1315, %v1451
  %v1453 = vlaneseq
  %v1454 = vshrl.u32 %v1453, 7
  %v1455 = vsub.s32 2, %v1454
  %v1456 = vrot.slane %v1315, %v1455
  %v1457 = vlaneseq
  %v1458 = vshrl.u32 %v1457, 7
  %v1459 = vsub.s32 3, %v1458
  %v1460 = vrot.slane %v1315, %v1459
  %v1465 = vadd.f32 %v1316, %v1448
  %v1466 = vadd.f32 %v1317, %v1452
  %v1467 = vadd.f32 %v1318, %v1456
  %v1468 = vadd.f32 %v1319, %v1460
  %v1469 = vadd.f32 %v1320, %v1448
  %v1470 = vadd.f32 %v1321, %v1452
  %v1471 = vadd.f32 %v1322, %v1456
  %v1472 = vadd.f32 %v1323, %v1460
  %v1473 = vadd.f32 %v1324, %v1448
  %v1474 = vadd.f32 %v1325, %v1452
  %v1475 = vadd.f32 %v1326, %v1456
  %v1476 = vadd.f32 %v1327, %v1460
  %v1477 = vadd.f32 %v1328, %v1448
  %v1478 = vadd.f32 %v1329, %v1452
  %v1479 = vadd.f32 %v1330, %v1456
  %v1480 = vadd.f32 %v1331, %v1460
  %v1481 = vadd.f32 %v1332, %v1448
  %v1482 = vadd.f32 %v1333, %v1452
  %v1483 = vadd.f32 %v1334, %v1456
  %v1484 = vadd.f32 %v1335, %v1460
  %v1485 = vadd.f32 %v1336, %v1448
  %v1486 = vadd.f32 %v1337, %v1452
  %v1487 = vadd.f32 %v1338, %v1456
  %v1488 = vadd.f32 %v1339, %v1460
  %v1489 = vadd.f32 %v1340, %v1448
  %v1490 = vadd.f32 %v1341, %v1452
  %v1491 = vadd.f32 %v1342, %v1456
  %v1492 = vadd.f32 %v1343, %v1460
  %v1493 = vadd.f32 %v1344, %v1448
  %v1494 = vadd.f32 %v1345, %v1452
  %v1495 = vadd.f32 %v1346, %v1456
  %v1496 = vadd.f32 %v1347, %v1460
  %v1497 = vadd.f32 %v1348, %v1448
  %v1498 = vadd.f32 %v1349, %v1452
  %v1499 = vadd.f32 %v1350, %v1456
  %v1500 = vadd.f32 %v1351, %v1460
  %v1501 = vadd.f32 %v1352, %v1448
  %v1502 = vadd.f32 %v1353, %v1452
  %v1503 = vadd.f32 %v1354, %v1456
  %v1504 = vadd.f32 %v1355, %v1460
  %v1505 = vadd.f32 %v1356, %v1448
  %v1506 = vadd.f32 %v1357, %v1452
  %v1507 = vadd.f32 %v1358, %v1456
  %v1508 = vadd.f32 %v1359, %v1460
  %v1509 = vadd.f32 %v1360, %v1448
  %v1510 = vadd.f32 %v1361, %v1452
  %v1511 = vadd.f32 %v1362, %v1456
  %v1512 = vadd.f32 %v1363, %v1460
  %v1513 = vadd.f32 %v1364, %v1448
  %v1514 = vadd.f32 %v1365, %v1452
  %v1515 = vadd.f32 %v1366, %v1456
  %v1516 = vadd.f32 %v1367, %v1460
  %v1517 = vadd.f32 %v1368, %v1448
  %v1518 = vadd.f32 %v1369, %v1452
  %v1519 = vadd.f32 %v1370, %v1456
  %v1520 = vadd.f32 %v1371, %v1460
  %v1521 = vadd.f32 %v1372, %v1448
  %v1522 = vadd.f32 %v1373, %v1452
  %v1523 = vadd.f32 %v1374, %v1456
  %v1524 = vadd.f32 %v1375, %v1460
  %v1525 = vadd.f32 %v1376, %v1448
  %v1526 = vadd.f32 %v1377, %v1452
  %v1527 = vadd.f32 %v1378, %v1456
  %v1528 = vadd.f32 %v1379, %v1460
  %v1529 = vadd.f32 %v1380, %v1448
  %v1530 = vadd.f32 %v1381, %v1452
  %v1531 = vadd.f32 %v1382, %v1456
  %v1532 = vadd.f32 %v1383, %v1460
  %v1533 = vadd.f32 %v1384, %v1448
  %v1534 = vadd.f32 %v1385, %v1452
  %v1535 = vadd.f32 %v1386, %v1456
  %v1536 = vadd.f32 %v1387, %v1460
  %v1537 = vadd.f32 %v1388, %v1448
  %v1538 = vadd.f32 %v1389, %v1452
  %v1539 = vadd.f32 %v1390, %v1456
  %v1540 = vadd.f32 %v1391, %v1460
  %v1541 = vadd.f32 %v1392, %v1448
  %v1542 = vadd.f32 %v1393, %v1452
  %v1543 = vadd.f32 %v1394, %v1456
  %v1544 = vadd.f32 %v1395, %v1460
  %v1545 = vadd.f32 %v1396, %v1448
  %v1546 = vadd.f32 %v1397, %v1452
  %v1547 = vadd.f32 %v1398, %v1456
  %v1548 = vadd.f32 %v1399, %v1460
  %v1549 = vadd.f32 %v1400, %v1448
  %v1550 = vadd.f32 %v1401, %v1452
  %v1551 = vadd.f32 %v1402, %v1456
  %v1552 = vadd.f32 %v1403, %v1460
  %v1553 = vadd.f32 %v1404, %v1448
  %v1554 = vadd.f32 %v1405, %v1452
  %v1555 = vadd.f32 %v1406, %v1456
  %v1556 = vadd.f32 %v1407, %v1460
  %v1557 = vadd.f32 %v1408, %v1448
  %v1558 = vadd.f32 %v1409, %v1452
  %v1559 = vadd.f32 %v1410, %v1456
  %v1560 = vadd.f32 %v1411, %v1460
  %v1561 = vadd.f32 %v1412, %v1448
  %v1562 = vadd.f32 %v1413, %v1452
  %v1563 = vadd.f32 %v1414, %v1456
  %v1564 = vadd.f32 %v1415, %v1460
  %v1565 = vadd.f32 %v1416, %v1448
  %v1566 = vadd.f32 %v1417, %v1452
  %v1567 = vadd.f32 %v1418, %v1456
  %v1568 = vadd.f32 %v1419, %v1460
  %v1569 = vadd.f32 %v1420, %v1448
  %v1570 = vadd.f32 %v1421, %v1452
  %v1571 = vadd.f32 %v1422, %v1456
  %v1572 = vadd.f32 %v1423, %v1460
  %v1573 = vadd.f32 %v1424, %v1448
  %v1574 = vadd.f32 %v1425, %v1452
  %v1575 = vadd.f32 %v1426, %v1456
  %v1576 = vadd.f32 %v1427, %v1460
  %v1577 = vadd.f32 %v1428, %v1448
  %v1578 = vadd.f32 %v1429, %v1452
  %v1579 = vadd.f32 %v1430, %v1456
  %v1580 = vadd.f32 %v1431, %v1460
  %v1581 = vadd.f32 %v1432, %v1448
  %v1582 = vadd.f32 %v1433, %v1452
  %v1583 = vadd.f32 %v1434, %v1456
  %v1584 = vadd.f32 %v1435, %v1460
  %v1585 = vadd.f32 %v1436, %v1448
  %v1586 = vadd.f32 %v1437, %v1452
  %v1587 = vadd.f32 %v1438, %v1456
  %v1588 = vadd.f32 %v1439, %v1460
  %v1589 = vadd.f32 %v1440, %v1448
  %v1590 = vadd.f32 %v1441, %v1452
  %v1591 = vadd.f32 %v1442, %v1456
  %v1592 = vadd.f32 %v1443, %v1460
  %v1593 = vmax.f32 %v1465, 0.0
  %v1594 = vmax.f32 %v1466, 0.0
  %v1595 = vmax.f32 %v1467, 0.0
  %v1596 = vmax.f32 %v1468, 0.0
  %v1597 = vmax.f32 %v1469, 0.0
  %v1598 = vmax.f32 %v1470, 0.0
  %v1599 = vmax.f32 %v1471, 0.0
  %v1600 = vmax.f32 %v1472, 0.0
  %v1601 = vmax.f32 %v1473, 0.0
  %v1602 = vmax.f32 %v1474, 0.0
  %v1603 = vmax.f32 %v1475, 0.0
  %v1604 = vmax.f32 %v1476, 0.0
  %v1605 = vmax.f32 %v1477, 0.0
  %v1606 = vmax.f32 %v1478, 0.0
  %v1607 = vmax.f32 %v1479, 0.0
  %v1608 = vmax.f32 %v1480, 0.0
  %v1609 = vmax.f32 %v1481, 0.0
  %v1610 = vmax.f32 %v1482, 0.0
  %v1611 = vmax.f32 %v1483, 0.0
  %v1612 = vmax.f32 %v1484, 0.0
  %v1613 = vmax.f32 %v1485, 0.0
  %v1614 = vmax.f32 %v1486, 0.0
  %v1615 = vmax.f32 %v1487, 0.0
  %v1616 = vmax.f32 %v1488, 0.0
  %v1617 = vmax.f32 %v1489, 0.0
  %v1618 = vmax.f32 %v1490, 0.0
  %v1619 = vmax.f32 %v1491, 0.0
  %v1620 = vmax.f32 %v1492, 0.0
  %v1621 = vmax.f32 %v1493, 0.0
  %v1622 = vmax.f32 %v1494, 0.0
  %v1623 = vmax.f32 %v1495, 0.0
  %v1624 = vmax.f32 %v1496, 0.0
  %v1625 = vmax.f32 %v1497, 0.0
  %v1626 = vmax.f32 %v1498, 0.0
  %v1627 = vmax.f32 %v1499, 0.0
  %v1628 = vmax.f32 %v1500, 0.0
  %v1629 = vmax.f32 %v1501, 0.0
  %v1630 = vmax.f32 %v1502, 0.0
  %v1631 = vmax.f32 %v1503, 0.0
  %v1632 = vmax.f32 %v1504, 0.0
  %v1633 = vmax.f32 %v1505, 0.0
  %v1634 = vmax.f32 %v1506, 0.0
  %v1635 = vmax.f32 %v1507, 0.0
  %v1636 = vmax.f32 %v1508, 0.0
  %v1637 = vmax.f32 %v1509, 0.0
  %v1638 = vmax.f32 %v1510, 0.0
  %v1639 = vmax.f32 %v1511, 0.0
  %v1640 = vmax.f32 %v1512, 0.0
  %v1641 = vmax.f32 %v1513, 0.0
  %v1642 = vmax.f32 %v1514, 0.0
  %v1643 = vmax.f32 %v1515, 0.0
  %v1644 = vmax.f32 %v1516, 0.0
  %v1645 = vmax.f32 %v1517, 0.0
  %v1646 = vmax.f32 %v1518, 0.0
  %v1647 = vmax.f32 %v1519, 0.0
  %v1648 = vmax.f32 %v1520, 0.0
  %v1649 = vmax.f32 %v1521, 0.0
  %v1650 = vmax.f32 %v1522, 0.0
  %v1651 = vmax.f32 %v1523, 0.0
  %v1652 = vmax.f32 %v1524, 0.0
  %v1653 = vmax.f32 %v1525, 0.0
  %v1654 = vmax.f32 %v1526, 0.0
  %v1655 = vmax.f32 %v1527, 0.0
  %v1656 = vmax.f32 %v1528, 0.0
  %v1657 = vmax.f32 %v1529, 0.0
  %v1658 = vmax.f32 %v1530, 0.0
  %v1659 = vmax.f32 %v1531, 0.0
  %v1660 = vmax.f32 %v1532, 0.0
  %v1661 = vmax.f32 %v1533, 0.0
  %v1662 = vmax.f32 %v1534, 0.0
  %v1663 = vmax.f32 %v1535, 0.0
  %v1664 = vmax.f32 %v1536, 0.0
  %v1665 = vmax.f32 %v1537, 0.0
  %v1666 = vmax.f32 %v1538, 0.0
  %v1667 = vmax.f32 %v1539, 0.0
  %v1668 = vmax.f32 %v1540, 0.0
  %v1669 = vmax.f32 %v1541, 0.0
  %v1670 = vmax.f32 %v1542, 0.0
  %v1671 = vmax.f32 %v1543, 0.0
  %v1672 = vmax.f32 %v1544, 0.0
  %v1673 = vmax.f32 %v1545, 0.0
  %v1674 = vmax.f32 %v1546, 0.0
  %v1675 = vmax.f32 %v1547, 0.0
  %v1676 = vmax.f32 %v1548, 0.0
  %v1677 = vmax.f32 %v1549, 0.0
  %v1678 = vmax.f32 %v1550, 0.0
  %v1679 = vmax.f32 %v1551, 0.0
  %v1680 = vmax.f32 %v1552, 0.0
  %v1681 = vmax.f32 %v1553, 0.0
  %v1682 = vmax.f32 %v1554, 0.0
  %v1683 = vmax.f32 %v1555, 0.0
  %v1684 = vmax.f32 %v1556, 0.0
  %v1685 = vmax.f32 %v1557, 0.0
  %v1686 = vmax.f32 %v1558, 0.0
  %v1687 = vmax.f32 %v1559, 0.0
  %v1688 = vmax.f32 %v1560, 0.0
  %v1689 = vmax.f32 %v1561, 0.0
  %v1690 = vmax.f32 %v1562, 0.0
  %v1691 = vmax.f32 %v1563, 0.0
  %v1692 = vmax.f32 %v1564, 0.0
  %v1693 = vmax.f32 %v1565, 0.0
  %v1694 = vmax.f32 %v1566, 0.0
  %v1695 = vmax.f32 %v1567, 0.0
  %v1696 = vmax.f32 %v1568, 0.0
  %v1697 = vmax.f32 %v1569, 0.0
  %v1698 = vmax.f32 %v1570, 0.0
  %v1699 = vmax.f32 %v1571, 0.0
  %v1700 = vmax.f32 %v1572, 0.0
  %v1701 = vmax.f32 %v1573, 0.0
  %v1702 = vmax.f32 %v1574, 0.0
  %v1703 = vmax.f32 %v1575, 0.0
  %v1704 = vmax.f32 %v1576, 0.0
  %v1705 = vmax.f32 %v1577, 0.0
  %v1706 = vmax.f32 %v1578, 0.0
  %v1707 = vmax.f32 %v1579, 0.0
  %v1708 = vmax.f32 %v1580, 0.0
  %v1709 = vmax.f32 %v1581, 0.0
  %v1710 = vmax.f32 %v1582, 0.0
  %v1711 = vmax.f32 %v1583, 0.0
  %v1712 = vmax.f32 %v1584, 0.0
  %v1713 = vmax.f32 %v1585, 0.0
  %v1714 = vmax.f32 %v1586, 0.0
  %v1715 = vmax.f32 %v1587, 0.0
  %v1716 = vmax.f32 %v1588, 0.0
  %v1717 = vmax.f32 %v1589, 0.0
  %v1718 = vmax.f32 %v1590, 0.0
  %v1719 = vmax.f32 %v1591, 0.0
  %v1720 = vmax.f32 %v1592, 0.0
  %1722 = vset.pattern.permute.xlu0 0
  %1723 = vperm.xlu0 %1722, %v39
  %v1724 = vpop.permute.xlu0 %1723
  %1727 = vset.pattern.permute.xlu0 0
  %1728 = vperm.xlu0 %1727, %v40
  %v1729 = vpop.permute.xlu0 %1728
  %1732 = vset.pattern.permute.xlu0 0
  %1733 = vperm.xlu0 %1732, %v41
  %v1734 = vpop.permute.xlu0 %1733
  %1737 = vset.pattern.permute.xlu0 0
  %1738 = vperm.xlu0 %1737, %v42
  %v1739 = vpop.permute.xlu0 %1738
  %1742 = vset.pattern.permute.xlu0 0
  %1743 = vperm.xlu0 %1742, %v43
  %v1744 = vpop.permute.xlu0 %1743
  %1747 = vset.pattern.permute.xlu0 0
  %1748 = vperm.xlu0 %1747, %v44
  %v1749 = vpop.permute.xlu0 %1748
  %1752 = vset.pattern.permute.xlu0 0
  %1753 = vperm.xlu0 %1752, %v45
  %v1754 = vpop.permute.xlu0 %1753
  %1757 = vset.pattern.permute.xlu0 0
  %1758 = vperm.xlu0 %1757, %v46
  %v1759 = vpop.permute.xlu0 %1758
  %1762 = vset.pattern.permute.xlu0 0
  %1763 = vperm.xlu0 %1762, %v47
  %v1764 = vpop.permute.xlu0 %1763
  %1767 = vset.pattern.permute.xlu0 0
  %1768 = vperm.xlu0 %1767, %v48
  %v1769 = vpop.permute.xlu0 %1768
  %1772 = vset.pattern.permute.xlu0 0
  %1773 = vperm.xlu0 %1772, %v49
  %v1774 = vpop.permute.xlu0 %1773
  %1777 = vset.pattern.permute.xlu0 0
  %1778 = vperm.xlu0 %1777, %v50
  %v1779 = vpop.permute.xlu0 %1778
  %1782 = vset.pattern.permute.xlu0 0
  %1783 = vperm.xlu0 %1782, %v51
  %v1784 = vpop.permute.xlu0 %1783
  %1787 = vset.pattern.permute.xlu0 0
  %1788 = vperm.xlu0 %1787, %v52
  %v1789 = vpop.permute.xlu0 %1788
  %1792 = vset.pattern.permute.xlu0 0
  %1793 = vperm.xlu0 %1792, %v53
  %v1794 = vpop.permute.xlu0 %1793
  %1797 = vset.pattern.permute.xlu0 0
  %1798 = vperm.xlu0 %1797, %v54
  %v1799 = vpop.permute.xlu0 %1798
  %1802 = vset.pattern.permute.xlu0 0
  %1803 = vperm.xlu0 %1802, %v55
  %v1804 = vpop.permute.xlu0 %1803
  %1807 = vset.pattern.permute.xlu0 0
  %1808 = vperm.xlu0 %1807, %v56
  %v1809 = vpop.permute.xlu0 %1808
  %1812 = vset.pattern.permute.xlu0 0
  %1813 = vperm.xlu0 %1812, %v57
  %v1814 = vpop.permute.xlu0 %1813
  %1817 = vset.pattern.permute.xlu0 0
  %1818 = vperm.xlu0 %1817, %v58
  %v1819 = vpop.permute.xlu0 %1818
  %1822 = vset.pattern.permute.xlu0 0
  %1823 = vperm.xlu0 %1822, %v59
  %v1824 = vpop.permute.xlu0 %1823
  %1827 = vset.pattern.permute.xlu0 0
  %1828 = vperm.xlu0 %1827, %v60
  %v1829 = vpop.permute.xlu0 %1828
  %1832 = vset.pattern.permute.xlu0 0
  %1833 = vperm.xlu0 %1832, %v61
  %v1834 = vpop.permute.xlu0 %1833
  %1837 = vset.pattern.permute.xlu0 0
  %1838 = vperm.xlu0 %1837, %v62
  %v1839 = vpop.permute.xlu0 %1838
  %1842 = vset.pattern.permute.xlu0 0
  %1843 = vperm.xlu0 %1842, %v63
  %v1844 = vpop.permute.xlu0 %1843
  %1847 = vset.pattern.permute.xlu0 0
  %1848 = vperm.xlu0 %1847, %v64
  %v1849 = vpop.permute.xlu0 %1848
  %1852 = vset.pattern.permute.xlu0 0
  %1853 = vperm.xlu0 %1852, %v65
  %v1854 = vpop.permute.xlu0 %1853
  %1857 = vset.pattern.permute.xlu0 0
  %1858 = vperm.xlu0 %1857, %v66
  %v1859 = vpop.permute.xlu0 %1858
  %1862 = vset.pattern.permute.xlu0 0
  %1863 = vperm.xlu0 %1862, %v67
  %v1864 = vpop.permute.xlu0 %1863
  %1867 = vset.pattern.permute.xlu0 0
  %1868 = vperm.xlu0 %1867, %v68
  %v1869 = vpop.permute.xlu0 %1868
  %1872 = vset.pattern.permute.xlu0 0
  %1873 = vperm.xlu0 %1872, %v69
  %v1874 = vpop.permute.xlu0 %1873
  %1877 = vset.pattern.permute.xlu0 0
  %1878 = vperm.xlu0 %1877, %v70
  %v1879 = vpop.permute.xlu0 %1878
  %v1881 = vmul.f32 %v1593, %v1724
  %v1882 = vmul.f32 %v1594, %v1724
  %v1883 = vmul.f32 %v1595, %v1724
  %v1884 = vmul.f32 %v1596, %v1724
  %v1885 = vmul.f32 %v1597, %v1729
  %v1886 = vmul.f32 %v1598, %v1729
  %v1887 = vmul.f32 %v1599, %v1729
  %v1888 = vmul.f32 %v1600, %v1729
  %v1889 = vmul.f32 %v1601, %v1734
  %v1890 = vmul.f32 %v1602, %v1734
  %v1891 = vmul.f32 %v1603, %v1734
  %v1892 = vmul.f32 %v1604, %v1734
  %v1893 = vmul.f32 %v1605, %v1739
  %v1894 = vmul.f32 %v1606, %v1739
  %v1895 = vmul.f32 %v1607, %v1739
  %v1896 = vmul.f32 %v1608, %v1739
  %v1897 = vmul.f32 %v1609, %v1744
  %v1898 = vmul.f32 %v1610, %v1744
  %v1899 = vmul.f32 %v1611, %v1744
  %v1900 = vmul.f32 %v1612, %v1744
  %v1901 = vmul.f32 %v1613, %v1749
  %v1902 = vmul.f32 %v1614, %v1749
  %v1903 = vmul.f32 %v1615, %v1749
  %v1904 = vmul.f32 %v1616, %v1749
  %v1905 = vmul.f32 %v1617, %v1754
  %v1906 = vmul.f32 %v1618, %v1754
  %v1907 = vmul.f32 %v1619, %v1754
  %v1908 = vmul.f32 %v1620, %v1754
  %v1909 = vmul.f32 %v1621, %v1759
  %v1910 = vmul.f32 %v1622, %v1759
  %v1911 = vmul.f32 %v1623, %v1759
  %v1912 = vmul.f32 %v1624, %v1759
  %v1913 = vmul.f32 %v1625, %v1764
  %v1914 = vmul.f32 %v1626, %v1764
  %v1915 = vmul.f32 %v1627, %v1764
  %v1916 = vmul.f32 %v1628, %v1764
  %v1917 = vmul.f32 %v1629, %v1769
  %v1918 = vmul.f32 %v1630, %v1769
  %v1919 = vmul.f32 %v1631, %v1769
  %v1920 = vmul.f32 %v1632, %v1769
  %v1921 = vmul.f32 %v1633, %v1774
  %v1922 = vmul.f32 %v1634, %v1774
  %v1923 = vmul.f32 %v1635, %v1774
  %v1924 = vmul.f32 %v1636, %v1774
  %v1925 = vmul.f32 %v1637, %v1779
  %v1926 = vmul.f32 %v1638, %v1779
  %v1927 = vmul.f32 %v1639, %v1779
  %v1928 = vmul.f32 %v1640, %v1779
  %v1929 = vmul.f32 %v1641, %v1784
  %v1930 = vmul.f32 %v1642, %v1784
  %v1931 = vmul.f32 %v1643, %v1784
  %v1932 = vmul.f32 %v1644, %v1784
  %v1933 = vmul.f32 %v1645, %v1789
  %v1934 = vmul.f32 %v1646, %v1789
  %v1935 = vmul.f32 %v1647, %v1789
  %v1936 = vmul.f32 %v1648, %v1789
  %v1937 = vmul.f32 %v1649, %v1794
  %v1938 = vmul.f32 %v1650, %v1794
  %v1939 = vmul.f32 %v1651, %v1794
  %v1940 = vmul.f32 %v1652, %v1794
  %v1941 = vmul.f32 %v1653, %v1799
  %v1942 = vmul.f32 %v1654, %v1799
  %v1943 = vmul.f32 %v1655, %v1799
  %v1944 = vmul.f32 %v1656, %v1799
  %v1945 = vmul.f32 %v1657, %v1804
  %v1946 = vmul.f32 %v1658, %v1804
  %v1947 = vmul.f32 %v1659, %v1804
  %v1948 = vmul.f32 %v1660, %v1804
  %v1949 = vmul.f32 %v1661, %v1809
  %v1950 = vmul.f32 %v1662, %v1809
  %v1951 = vmul.f32 %v1663, %v1809
  %v1952 = vmul.f32 %v1664, %v1809
  %v1953 = vmul.f32 %v1665, %v1814
  %v1954 = vmul.f32 %v1666, %v1814
  %v1955 = vmul.f32 %v1667, %v1814
  %v1956 = vmul.f32 %v1668, %v1814
  %v1957 = vmul.f32 %v1669, %v1819
  %v1958 = vmul.f32 %v1670, %v1819
  %v1959 = vmul.f32 %v1671, %v1819
  %v1960 = vmul.f32 %v1672, %v1819
  %v1961 = vmul.f32 %v1673, %v1824
  %v1962 = vmul.f32 %v1674, %v1824
  %v1963 = vmul.f32 %v1675, %v1824
  %v1964 = vmul.f32 %v1676, %v1824
  %v1965 = vmul.f32 %v1677, %v1829
  %v1966 = vmul.f32 %v1678, %v1829
  %v1967 = vmul.f32 %v1679, %v1829
  %v1968 = vmul.f32 %v1680, %v1829
  %v1969 = vmul.f32 %v1681, %v1834
  %v1970 = vmul.f32 %v1682, %v1834
  %v1971 = vmul.f32 %v1683, %v1834
  %v1972 = vmul.f32 %v1684, %v1834
  %v1973 = vmul.f32 %v1685, %v1839
  %v1974 = vmul.f32 %v1686, %v1839
  %v1975 = vmul.f32 %v1687, %v1839
  %v1976 = vmul.f32 %v1688, %v1839
  %v1977 = vmul.f32 %v1689, %v1844
  %v1978 = vmul.f32 %v1690, %v1844
  %v1979 = vmul.f32 %v1691, %v1844
  %v1980 = vmul.f32 %v1692, %v1844
  %v1981 = vmul.f32 %v1693, %v1849
  %v1982 = vmul.f32 %v1694, %v1849
  %v1983 = vmul.f32 %v1695, %v1849
  %v1984 = vmul.f32 %v1696, %v1849
  %v1985 = vmul.f32 %v1697, %v1854
  %v1986 = vmul.f32 %v1698, %v1854
  %v1987 = vmul.f32 %v1699, %v1854
  %v1988 = vmul.f32 %v1700, %v1854
  %v1989 = vmul.f32 %v1701, %v1859
  %v1990 = vmul.f32 %v1702, %v1859
  %v1991 = vmul.f32 %v1703, %v1859
  %v1992 = vmul.f32 %v1704, %v1859
  %v1993 = vmul.f32 %v1705, %v1864
  %v1994 = vmul.f32 %v1706, %v1864
  %v1995 = vmul.f32 %v1707, %v1864
  %v1996 = vmul.f32 %v1708, %v1864
  %v1997 = vmul.f32 %v1709, %v1869
  %v1998 = vmul.f32 %v1710, %v1869
  %v1999 = vmul.f32 %v1711, %v1869
  %v2000 = vmul.f32 %v1712, %v1869
  %v2001 = vmul.f32 %v1713, %v1874
  %v2002 = vmul.f32 %v1714, %v1874
  %v2003 = vmul.f32 %v1715, %v1874
  %v2004 = vmul.f32 %v1716, %v1874
  %v2005 = vmul.f32 %v1717, %v1879
  %v2006 = vmul.f32 %v1718, %v1879
  %v2007 = vmul.f32 %v1719, %v1879
  %v2008 = vmul.f32 %v1720, %v1879
  %v2009 = vpack.c.bf16 %v1885, %v1881
  %v2010 = vpack.c.bf16 %v1886, %v1882
  %v2011 = vpack.c.bf16 %v1887, %v1883
  %v2012 = vpack.c.bf16 %v1888, %v1884
  %v2013 = vpack.c.bf16 %v1893, %v1889
  %v2014 = vpack.c.bf16 %v1894, %v1890
  %v2015 = vpack.c.bf16 %v1895, %v1891
  %v2016 = vpack.c.bf16 %v1896, %v1892
  %v2017 = vpack.c.bf16 %v1901, %v1897
  %v2018 = vpack.c.bf16 %v1902, %v1898
  %v2019 = vpack.c.bf16 %v1903, %v1899
  %v2020 = vpack.c.bf16 %v1904, %v1900
  %v2021 = vpack.c.bf16 %v1909, %v1905
  %v2022 = vpack.c.bf16 %v1910, %v1906
  %v2023 = vpack.c.bf16 %v1911, %v1907
  %v2024 = vpack.c.bf16 %v1912, %v1908
  %v2025 = vpack.c.bf16 %v1917, %v1913
  %v2026 = vpack.c.bf16 %v1918, %v1914
  %v2027 = vpack.c.bf16 %v1919, %v1915
  %v2028 = vpack.c.bf16 %v1920, %v1916
  %v2029 = vpack.c.bf16 %v1925, %v1921
  %v2030 = vpack.c.bf16 %v1926, %v1922
  %v2031 = vpack.c.bf16 %v1927, %v1923
  %v2032 = vpack.c.bf16 %v1928, %v1924
  %v2033 = vpack.c.bf16 %v1933, %v1929
  %v2034 = vpack.c.bf16 %v1934, %v1930
  %v2035 = vpack.c.bf16 %v1935, %v1931
  %v2036 = vpack.c.bf16 %v1936, %v1932
  %v2037 = vpack.c.bf16 %v1941, %v1937
  %v2038 = vpack.c.bf16 %v1942, %v1938
  %v2039 = vpack.c.bf16 %v1943, %v1939
  %v2040 = vpack.c.bf16 %v1944, %v1940
  %v2041 = vpack.c.bf16 %v1949, %v1945
  %v2042 = vpack.c.bf16 %v1950, %v1946
  %v2043 = vpack.c.bf16 %v1951, %v1947
  %v2044 = vpack.c.bf16 %v1952, %v1948
  %v2045 = vpack.c.bf16 %v1957, %v1953
  %v2046 = vpack.c.bf16 %v1958, %v1954
  %v2047 = vpack.c.bf16 %v1959, %v1955
  %v2048 = vpack.c.bf16 %v1960, %v1956
  %v2049 = vpack.c.bf16 %v1965, %v1961
  %v2050 = vpack.c.bf16 %v1966, %v1962
  %v2051 = vpack.c.bf16 %v1967, %v1963
  %v2052 = vpack.c.bf16 %v1968, %v1964
  %v2053 = vpack.c.bf16 %v1973, %v1969
  %v2054 = vpack.c.bf16 %v1974, %v1970
  %v2055 = vpack.c.bf16 %v1975, %v1971
  %v2056 = vpack.c.bf16 %v1976, %v1972
  %v2057 = vpack.c.bf16 %v1981, %v1977
  %v2058 = vpack.c.bf16 %v1982, %v1978
  %v2059 = vpack.c.bf16 %v1983, %v1979
  %v2060 = vpack.c.bf16 %v1984, %v1980
  %v2061 = vpack.c.bf16 %v1989, %v1985
  %v2062 = vpack.c.bf16 %v1990, %v1986
  %v2063 = vpack.c.bf16 %v1991, %v1987
  %v2064 = vpack.c.bf16 %v1992, %v1988
  %v2065 = vpack.c.bf16 %v1997, %v1993
  %v2066 = vpack.c.bf16 %v1998, %v1994
  %v2067 = vpack.c.bf16 %v1999, %v1995
  %v2068 = vpack.c.bf16 %v2000, %v1996
  %v2069 = vpack.c.bf16 %v2005, %v2001
  %v2070 = vpack.c.bf16 %v2006, %v2002
  %v2071 = vpack.c.bf16 %v2007, %v2003
  %v2072 = vpack.c.bf16 %v2008, %v2004
  %v2073 = vld [vmem:[%s5] sm:$0xf]
  %v2074 = vld [vmem:[%s5 + $0x4] sm:$0xf]
  %v2075 = vld [vmem:[%s5 + $0x8] sm:$0xf]
  %v2076 = vld [vmem:[%s5 + $0xc] sm:$0xf]
  %v2077 = vld [vmem:[%s5 + $0x10] sm:$0xf]
  %v2078 = vld [vmem:[%s5 + $0x14] sm:$0xf]
  %v2079 = vld [vmem:[%s5 + $0x18] sm:$0xf]
  %v2080 = vld [vmem:[%s5 + $0x1c] sm:$0xf]
  %v2081 = vld [vmem:[%s5 + $0x20] sm:$0xf]
  %v2082 = vld [vmem:[%s5 + $0x24] sm:$0xf]
  %v2083 = vld [vmem:[%s5 + $0x28] sm:$0xf]
  %v2084 = vld [vmem:[%s5 + $0x2c] sm:$0xf]
  %v2085 = vld [vmem:[%s5 + $0x30] sm:$0xf]
  %v2086 = vld [vmem:[%s5 + $0x34] sm:$0xf]
  %v2087 = vld [vmem:[%s5 + $0x38] sm:$0xf]
  %v2088 = vld [vmem:[%s5 + $0x3c] sm:$0xf]
  %v2089 = vld [vmem:[%s5 + $0x40] sm:$0xf]
  %v2090 = vld [vmem:[%s5 + $0x44] sm:$0xf]
  %v2091 = vld [vmem:[%s5 + $0x48] sm:$0xf]
  %v2092 = vld [vmem:[%s5 + $0x4c] sm:$0xf]
  %v2093 = vld [vmem:[%s5 + $0x50] sm:$0xf]
  %v2094 = vld [vmem:[%s5 + $0x54] sm:$0xf]
  %v2095 = vld [vmem:[%s5 + $0x58] sm:$0xf]
  %v2096 = vld [vmem:[%s5 + $0x5c] sm:$0xf]
  %v2097 = vld [vmem:[%s5 + $0x60] sm:$0xf]
  %v2098 = vld [vmem:[%s5 + $0x64] sm:$0xf]
  %v2099 = vld [vmem:[%s5 + $0x68] sm:$0xf]
  %v2100 = vld [vmem:[%s5 + $0x6c] sm:$0xf]
  %v2101 = vld [vmem:[%s5 + $0x70] sm:$0xf]
  %v2102 = vld [vmem:[%s5 + $0x74] sm:$0xf]
  %v2103 = vld [vmem:[%s5 + $0x78] sm:$0xf]
  %v2104 = vld [vmem:[%s5 + $0x7c] sm:$0xf]
  %v2105 = vld [vmem:[%s5 + $0x80] sm:$0xf]
  %v2106 = vld [vmem:[%s5 + $0x84] sm:$0xf]
  %v2107 = vld [vmem:[%s5 + $0x88] sm:$0xf]
  %v2108 = vld [vmem:[%s5 + $0x8c] sm:$0xf]
  %v2109 = vld [vmem:[%s5 + $0x90] sm:$0xf]
  %v2110 = vld [vmem:[%s5 + $0x94] sm:$0xf]
  %v2111 = vld [vmem:[%s5 + $0x98] sm:$0xf]
  %v2112 = vld [vmem:[%s5 + $0x9c] sm:$0xf]
  %v2113 = vld [vmem:[%s5 + $0xa0] sm:$0xf]
  %v2114 = vld [vmem:[%s5 + $0xa4] sm:$0xf]
  %v2115 = vld [vmem:[%s5 + $0xa8] sm:$0xf]
  %v2116 = vld [vmem:[%s5 + $0xac] sm:$0xf]
  %v2117 = vld [vmem:[%s5 + $0xb0] sm:$0xf]
  %v2118 = vld [vmem:[%s5 + $0xb4] sm:$0xf]
  %v2119 = vld [vmem:[%s5 + $0xb8] sm:$0xf]
  %v2120 = vld [vmem:[%s5 + $0xbc] sm:$0xf]
  %v2121 = vld [vmem:[%s5 + $0xc0] sm:$0xf]
  %v2122 = vld [vmem:[%s5 + $0xc4] sm:$0xf]
  %v2123 = vld [vmem:[%s5 + $0xc8] sm:$0xf]
  %v2124 = vld [vmem:[%s5 + $0xcc] sm:$0xf]
  %v2125 = vld [vmem:[%s5 + $0xd0] sm:$0xf]
  %v2126 = vld [vmem:[%s5 + $0xd4] sm:$0xf]
  %v2127 = vld [vmem:[%s5 + $0xd8] sm:$0xf]
  %v2128 = vld [vmem:[%s5 + $0xdc] sm:$0xf]
  %v2129 = vld [vmem:[%s5 + $0xe0] sm:$0xf]
  %v2130 = vld [vmem:[%s5 + $0xe4] sm:$0xf]
  %v2131 = vld [vmem:[%s5 + $0xe8] sm:$0xf]
  %v2132 = vld [vmem:[%s5 + $0xec] sm:$0xf]
  %v2133 = vld [vmem:[%s5 + $0xf0] sm:$0xf]
  %v2134 = vld [vmem:[%s5 + $0xf4] sm:$0xf]
  %v2135 = vld [vmem:[%s5 + $0xf8] sm:$0xf]
  %v2136 = vld [vmem:[%s5 + $0xfc] sm:$0xf]
  %v2201 = vunpack.c.l.b16 %v2073
  %v2202 = vunpack.c.l.b16 %v2074
  %v2203 = vunpack.c.l.b16 %v2075
  %v2204 = vunpack.c.l.b16 %v2076
  %v2205 = vunpack.c.l.b16 %v2077
  %v2206 = vunpack.c.l.b16 %v2078
  %v2207 = vunpack.c.l.b16 %v2079
  %v2208 = vunpack.c.l.b16 %v2080
  %v2209 = vunpack.c.l.b16 %v2081
  %v2210 = vunpack.c.l.b16 %v2082
  %v2211 = vunpack.c.l.b16 %v2083
  %v2212 = vunpack.c.l.b16 %v2084
  %v2213 = vunpack.c.l.b16 %v2085
  %v2214 = vunpack.c.l.b16 %v2086
  %v2215 = vunpack.c.l.b16 %v2087
  %v2216 = vunpack.c.l.b16 %v2088
  %v2217 = vunpack.c.l.b16 %v2089
  %v2218 = vunpack.c.l.b16 %v2090
  %v2219 = vunpack.c.l.b16 %v2091
  %v2220 = vunpack.c.l.b16 %v2092
  %v2221 = vunpack.c.l.b16 %v2093
  %v2222 = vunpack.c.l.b16 %v2094
  %v2223 = vunpack.c.l.b16 %v2095
  %v2224 = vunpack.c.l.b16 %v2096
  %v2225 = vunpack.c.l.b16 %v2097
  %v2226 = vunpack.c.l.b16 %v2098
  %v2227 = vunpack.c.l.b16 %v2099
  %v2228 = vunpack.c.l.b16 %v2100
  %v2229 = vunpack.c.l.b16 %v2101
  %v2230 = vunpack.c.l.b16 %v2102
  %v2231 = vunpack.c.l.b16 %v2103
  %v2232 = vunpack.c.l.b16 %v2104
  %v2233 = vunpack.c.l.b16 %v2105
  %v2234 = vunpack.c.l.b16 %v2106
  %v2235 = vunpack.c.l.b16 %v2107
  %v2236 = vunpack.c.l.b16 %v2108
  %v2237 = vunpack.c.l.b16 %v2109
  %v2238 = vunpack.c.l.b16 %v2110
  %v2239 = vunpack.c.l.b16 %v2111
  %v2240 = vunpack.c.l.b16 %v2112
  %v2241 = vunpack.c.l.b16 %v2113
  %v2242 = vunpack.c.l.b16 %v2114
  %v2243 = vunpack.c.l.b16 %v2115
  %v2244 = vunpack.c.l.b16 %v2116
  %v2245 = vunpack.c.l.b16 %v2117
  %v2246 = vunpack.c.l.b16 %v2118
  %v2247 = vunpack.c.l.b16 %v2119
  %v2248 = vunpack.c.l.b16 %v2120
  %v2249 = vunpack.c.l.b16 %v2121
  %v2250 = vunpack.c.l.b16 %v2122
  %v2251 = vunpack.c.l.b16 %v2123
  %v2252 = vunpack.c.l.b16 %v2124
  %v2253 = vunpack.c.l.b16 %v2125
  %v2254 = vunpack.c.l.b16 %v2126
  %v2255 = vunpack.c.l.b16 %v2127
  %v2256 = vunpack.c.l.b16 %v2128
  %v2257 = vunpack.c.l.b16 %v2129
  %v2258 = vunpack.c.l.b16 %v2130
  %v2259 = vunpack.c.l.b16 %v2131
  %v2260 = vunpack.c.l.b16 %v2132
  %v2261 = vunpack.c.l.b16 %v2133
  %v2262 = vunpack.c.l.b16 %v2134
  %v2263 = vunpack.c.l.b16 %v2135
  %v2264 = vunpack.c.l.b16 %v2136
  %v2265 = vpack.c.b16 %v2202, %v2201
  %v2266 = vpack.c.b16 %v2204, %v2203
  %v2267 = vpack.c.b16 %v2206, %v2205
  %v2268 = vpack.c.b16 %v2208, %v2207
  %v2269 = vpack.c.b16 %v2210, %v2209
  %v2270 = vpack.c.b16 %v2212, %v2211
  %v2271 = vpack.c.b16 %v2214, %v2213
  %v2272 = vpack.c.b16 %v2216, %v2215
  %v2273 = vpack.c.b16 %v2218, %v2217
  %v2274 = vpack.c.b16 %v2220, %v2219
  %v2275 = vpack.c.b16 %v2222, %v2221
  %v2276 = vpack.c.b16 %v2224, %v2223
  %v2277 = vpack.c.b16 %v2226, %v2225
  %v2278 = vpack.c.b16 %v2228, %v2227
  %v2279 = vpack.c.b16 %v2230, %v2229
  %v2280 = vpack.c.b16 %v2232, %v2231
  %v2281 = vpack.c.b16 %v2234, %v2233
  %v2282 = vpack.c.b16 %v2236, %v2235
  %v2283 = vpack.c.b16 %v2238, %v2237
  %v2284 = vpack.c.b16 %v2240, %v2239
  %v2285 = vpack.c.b16 %v2242, %v2241
  %v2286 = vpack.c.b16 %v2244, %v2243
  %v2287 = vpack.c.b16 %v2246, %v2245
  %v2288 = vpack.c.b16 %v2248, %v2247
  %v2289 = vpack.c.b16 %v2250, %v2249
  %v2290 = vpack.c.b16 %v2252, %v2251
  %v2291 = vpack.c.b16 %v2254, %v2253
  %v2292 = vpack.c.b16 %v2256, %v2255
  %v2293 = vpack.c.b16 %v2258, %v2257
  %v2294 = vpack.c.b16 %v2260, %v2259
  %v2295 = vpack.c.b16 %v2262, %v2261
  %v2296 = vpack.c.b16 %v2264, %v2263
  %2329 = vmatprep.subr.bf16.mxu0 0
  %2330 = vmatpush1.bf16.msra.mxu0 %v2272
  %2331 = vmatprep.subr.bf16.mxu0 0
  %2332 = vmatpush1.bf16.msra.mxu0 %v2271
  %2333 = vmatprep.subr.bf16.mxu0 0
  %2334 = vmatpush1.bf16.msra.mxu0 %v2270
  %2335 = vmatprep.subr.bf16.mxu0 0
  %2336 = vmatpush1.bf16.msra.mxu0 %v2269
  %2337 = vmatprep.subr.bf16.mxu0 0
  %2338 = vmatpush1.bf16.msra.mxu0 %v2268
  %2339 = vmatprep.subr.bf16.mxu0 0
  %2340 = vmatpush1.bf16.msra.mxu0 %v2267
  %2341 = vmatprep.subr.bf16.mxu0 0
  %2342 = vmatpush1.bf16.msra.mxu0 %v2266
  %2343 = vmatprep.subr.bf16.mxu0 0
  %2344 = vmatpush1.bf16.msra.mxu0 %v2265
  %2345 = vmatprep.subr.bf16.mxu0 0
  %2346 = vmatpush2.bf16.msra.mxu0 %v2280
  %2347 = vmatprep.subr.bf16.mxu0 0
  %2348 = vmatpush2.bf16.msra.mxu0 %v2279
  %2349 = vmatprep.subr.bf16.mxu0 0
  %2350 = vmatpush2.bf16.msra.mxu0 %v2278
  %2351 = vmatprep.subr.bf16.mxu0 0
  %2352 = vmatpush2.bf16.msra.mxu0 %v2277
  %2353 = vmatprep.subr.bf16.mxu0 0
  %2354 = vmatpush2.bf16.msra.mxu0 %v2276
  %2355 = vmatprep.subr.bf16.mxu0 0
  %2356 = vmatpush2.bf16.msra.mxu0 %v2275
  %2357 = vmatprep.subr.bf16.mxu0 0
  %2358 = vmatpush2.bf16.msra.mxu0 %v2274
  %2359 = vmatprep.subr.bf16.mxu0 0
  %2360 = vmatpush2.bf16.msra.mxu0 %v2273
  %2361 = vmatprep.mubr.bf16.mxu0 %v2010
  %2362 = vmatmul.mubr.bf16.gmra.mxu0 %v2009
  %v2363 = vpop.f32.mrf.mxu0
  %v2364 = vadd.f32 0.0, %v2363
  %v2365 = vpop.f32.mrf.mxu0
  %v2366 = vpop.f32.mrf.mxu0
  %v2367 = vadd.f32 0.0, %v2366
  %v2368 = vpop.f32.mrf.mxu0
  %2369 = vmatprep.mubr.bf16.mxu0 %v2014
  %2370 = vmatmul.mubr.bf16.gmra.mxu0 %v2013
  %v2371 = vpop.f32.mrf.mxu0
  %v2372 = vadd.f32 0.0, %v2371
  %v2373 = vpop.f32.mrf.mxu0
  %v2374 = vpop.f32.mrf.mxu0
  %v2375 = vadd.f32 0.0, %v2374
  %v2376 = vpop.f32.mrf.mxu0
  %2377 = vmatprep.mubr.bf16.mxu0 %v2018
  %2378 = vmatmul.mubr.bf16.gmra.mxu0 %v2017
  %v2379 = vpop.f32.mrf.mxu0
  %v2380 = vadd.f32 0.0, %v2379
  %v2381 = vpop.f32.mrf.mxu0
  %v2382 = vpop.f32.mrf.mxu0
  %v2383 = vadd.f32 0.0, %v2382
  %v2384 = vpop.f32.mrf.mxu0
  %2385 = vmatprep.mubr.bf16.mxu0 %v2022
  %2386 = vmatmul.mubr.bf16.gmra.mxu0 %v2021
  %v2387 = vpop.f32.mrf.mxu0
  %v2388 = vadd.f32 0.0, %v2387
  %v2389 = vpop.f32.mrf.mxu0
  %v2390 = vpop.f32.mrf.mxu0
  %v2391 = vadd.f32 0.0, %v2390
  %v2392 = vpop.f32.mrf.mxu0
  %2393 = vmatprep.mubr.bf16.mxu0 %v2026
  %2394 = vmatmul.mubr.bf16.gmra.mxu0 %v2025
  %v2395 = vpop.f32.mrf.mxu0
  %v2396 = vadd.f32 0.0, %v2395
  %v2397 = vpop.f32.mrf.mxu0
  %v2398 = vpop.f32.mrf.mxu0
  %v2399 = vadd.f32 0.0, %v2398
  %v2400 = vpop.f32.mrf.mxu0
  %2401 = vmatprep.mubr.bf16.mxu0 %v2030
  %2402 = vmatmul.mubr.bf16.gmra.mxu0 %v2029
  %v2403 = vpop.f32.mrf.mxu0
  %v2404 = vadd.f32 0.0, %v2403
  %v2405 = vpop.f32.mrf.mxu0
  %v2406 = vpop.f32.mrf.mxu0
  %v2407 = vadd.f32 0.0, %v2406
  %v2408 = vpop.f32.mrf.mxu0
  %2409 = vmatprep.mubr.bf16.mxu0 %v2034
  %2410 = vmatmul.mubr.bf16.gmra.mxu0 %v2033
  %v2411 = vpop.f32.mrf.mxu0
  %v2412 = vadd.f32 0.0, %v2411
  %v2413 = vpop.f32.mrf.mxu0
  %v2414 = vpop.f32.mrf.mxu0
  %v2415 = vadd.f32 0.0, %v2414
  %v2416 = vpop.f32.mrf.mxu0
  %2417 = vmatprep.mubr.bf16.mxu0 %v2038
  %2418 = vmatmul.mubr.bf16.gmra.mxu0 %v2037
  %v2419 = vpop.f32.mrf.mxu0
  %v2420 = vadd.f32 0.0, %v2419
  %v2421 = vpop.f32.mrf.mxu0
  %v2422 = vpop.f32.mrf.mxu0
  %v2423 = vadd.f32 0.0, %v2422
  %v2424 = vpop.f32.mrf.mxu0
  %2425 = vmatprep.mubr.bf16.mxu0 %v2042
  %2426 = vmatmul.mubr.bf16.gmra.mxu0 %v2041
  %v2427 = vpop.f32.mrf.mxu0
  %v2428 = vadd.f32 0.0, %v2427
  %v2429 = vpop.f32.mrf.mxu0
  %v2430 = vpop.f32.mrf.mxu0
  %v2431 = vadd.f32 0.0, %v2430
  %v2432 = vpop.f32.mrf.mxu0
  %2433 = vmatprep.mubr.bf16.mxu0 %v2046
  %2434 = vmatmul.mubr.bf16.gmra.mxu0 %v2045
  %v2435 = vpop.f32.mrf.mxu0
  %v2436 = vadd.f32 0.0, %v2435
  %v2437 = vpop.f32.mrf.mxu0
  %v2438 = vpop.f32.mrf.mxu0
  %v2439 = vadd.f32 0.0, %v2438
  %v2440 = vpop.f32.mrf.mxu0
  %2441 = vmatprep.mubr.bf16.mxu0 %v2050
  %2442 = vmatmul.mubr.bf16.gmra.mxu0 %v2049
  %v2443 = vpop.f32.mrf.mxu0
  %v2444 = vadd.f32 0.0, %v2443
  %v2445 = vpop.f32.mrf.mxu0
  %v2446 = vpop.f32.mrf.mxu0
  %v2447 = vadd.f32 0.0, %v2446
  %v2448 = vpop.f32.mrf.mxu0
  %2449 = vmatprep.mubr.bf16.mxu0 %v2054
  %2450 = vmatmul.mubr.bf16.gmra.mxu0 %v2053
  %v2451 = vpop.f32.mrf.mxu0
  %v2452 = vadd.f32 0.0, %v2451
  %v2453 = vpop.f32.mrf.mxu0
  %v2454 = vpop.f32.mrf.mxu0
  %v2455 = vadd.f32 0.0, %v2454
  %v2456 = vpop.f32.mrf.mxu0
  %2457 = vmatprep.mubr.bf16.mxu0 %v2058
  %2458 = vmatmul.mubr.bf16.gmra.mxu0 %v2057
  %v2459 = vpop.f32.mrf.mxu0
  %v2460 = vadd.f32 0.0, %v2459
  %v2461 = vpop.f32.mrf.mxu0
  %v2462 = vpop.f32.mrf.mxu0
  %v2463 = vadd.f32 0.0, %v2462
  %v2464 = vpop.f32.mrf.mxu0
  %2465 = vmatprep.mubr.bf16.mxu0 %v2062
  %2466 = vmatmul.mubr.bf16.gmra.mxu0 %v2061
  %v2467 = vpop.f32.mrf.mxu0
  %v2468 = vadd.f32 0.0, %v2467
  %v2469 = vpop.f32.mrf.mxu0
  %v2470 = vpop.f32.mrf.mxu0
  %v2471 = vadd.f32 0.0, %v2470
  %v2472 = vpop.f32.mrf.mxu0
  %2473 = vmatprep.mubr.bf16.mxu0 %v2066
  %2474 = vmatmul.mubr.bf16.gmra.mxu0 %v2065
  %v2475 = vpop.f32.mrf.mxu0
  %v2476 = vadd.f32 0.0, %v2475
  %v2477 = vpop.f32.mrf.mxu0
  %v2478 = vpop.f32.mrf.mxu0
  %v2479 = vadd.f32 0.0, %v2478
  %v2480 = vpop.f32.mrf.mxu0
  %2481 = vmatprep.mubr.bf16.mxu0 %v2070
  %2482 = vmatmul.mubr.bf16.gmra.mxu0 %v2069
  %v2483 = vpop.f32.mrf.mxu0
  %v2484 = vadd.f32 0.0, %v2483
  %v2485 = vpop.f32.mrf.mxu0
  %v2486 = vpop.f32.mrf.mxu0
  %v2487 = vadd.f32 0.0, %v2486
  %v2488 = vpop.f32.mrf.mxu0
  %2489 = vdwg.mxu0
  %2490 = vmatprep.subr.bf16.mxu0 0
  %2491 = vmatpush1.bf16.msra.mxu0 %v2288
  %2492 = vmatprep.subr.bf16.mxu0 0
  %2493 = vmatpush1.bf16.msra.mxu0 %v2287
  %2494 = vmatprep.subr.bf16.mxu0 0
  %2495 = vmatpush1.bf16.msra.mxu0 %v2286
  %2496 = vmatprep.subr.bf16.mxu0 0
  %2497 = vmatpush1.bf16.msra.mxu0 %v2285
  %2498 = vmatprep.subr.bf16.mxu0 0
  %2499 = vmatpush1.bf16.msra.mxu0 %v2284
  %2500 = vmatprep.subr.bf16.mxu0 0
  %2501 = vmatpush1.bf16.msra.mxu0 %v2283
  %2502 = vmatprep.subr.bf16.mxu0 0
  %2503 = vmatpush1.bf16.msra.mxu0 %v2282
  %2504 = vmatprep.subr.bf16.mxu0 0
  %2505 = vmatpush1.bf16.msra.mxu0 %v2281
  %2506 = vmatprep.subr.bf16.mxu0 0
  %2507 = vmatpush2.bf16.msra.mxu0 %v2296
  %2508 = vmatprep.subr.bf16.mxu0 0
  %2509 = vmatpush2.bf16.msra.mxu0 %v2295
  %2510 = vmatprep.subr.bf16.mxu0 0
  %2511 = vmatpush2.bf16.msra.mxu0 %v2294
  %2512 = vmatprep.subr.bf16.mxu0 0
  %2513 = vmatpush2.bf16.msra.mxu0 %v2293
  %2514 = vmatprep.subr.bf16.mxu0 0
  %2515 = vmatpush2.bf16.msra.mxu0 %v2292
  %2516 = vmatprep.subr.bf16.mxu0 0
  %2517 = vmatpush2.bf16.msra.mxu0 %v2291
  %2518 = vmatprep.subr.bf16.mxu0 0
  %2519 = vmatpush2.bf16.msra.mxu0 %v2290
  %2520 = vmatprep.subr.bf16.mxu0 0
  %2521 = vmatpush2.bf16.msra.mxu0 %v2289
  %2522 = vmatprep.mubr.bf16.mxu0 %v2012
  %2523 = vmatmul.mubr.bf16.gmra.mxu0 %v2011
  %v2524 = vpop.f32.mrf.mxu0
  %v2525 = vadd.f32 %v2364, %v2524
  %v2526 = vpop.f32.mrf.mxu0
  %v2527 = vpop.f32.mrf.mxu0
  %v2528 = vadd.f32 %v2367, %v2527
  %v2529 = vpop.f32.mrf.mxu0
  %2530 = vmatprep.mubr.bf16.mxu0 %v2016
  %2531 = vmatmul.mubr.bf16.gmra.mxu0 %v2015
  %v2532 = vpop.f32.mrf.mxu0
  %v2533 = vadd.f32 %v2372, %v2532
  %v2534 = vpop.f32.mrf.mxu0
  %v2535 = vpop.f32.mrf.mxu0
  %v2536 = vadd.f32 %v2375, %v2535
  %v2537 = vpop.f32.mrf.mxu0
  %2538 = vmatprep.mubr.bf16.mxu0 %v2020
  %2539 = vmatmul.mubr.bf16.gmra.mxu0 %v2019
  %v2540 = vpop.f32.mrf.mxu0
  %v2541 = vadd.f32 %v2380, %v2540
  %v2542 = vpop.f32.mrf.mxu0
  %v2543 = vpop.f32.mrf.mxu0
  %v2544 = vadd.f32 %v2383, %v2543
  %v2545 = vpop.f32.mrf.mxu0
  %2546 = vmatprep.mubr.bf16.mxu0 %v2024
  %2547 = vmatmul.mubr.bf16.gmra.mxu0 %v2023
  %v2548 = vpop.f32.mrf.mxu0
  %v2549 = vadd.f32 %v2388, %v2548
  %v2550 = vpop.f32.mrf.mxu0
  %v2551 = vpop.f32.mrf.mxu0
  %v2552 = vadd.f32 %v2391, %v2551
  %v2553 = vpop.f32.mrf.mxu0
  %2554 = vmatprep.mubr.bf16.mxu0 %v2028
  %2555 = vmatmul.mubr.bf16.gmra.mxu0 %v2027
  %v2556 = vpop.f32.mrf.mxu0
  %v2557 = vadd.f32 %v2396, %v2556
  %v2558 = vpop.f32.mrf.mxu0
  %v2559 = vpop.f32.mrf.mxu0
  %v2560 = vadd.f32 %v2399, %v2559
  %v2561 = vpop.f32.mrf.mxu0
  %2562 = vmatprep.mubr.bf16.mxu0 %v2032
  %2563 = vmatmul.mubr.bf16.gmra.mxu0 %v2031
  %v2564 = vpop.f32.mrf.mxu0
  %v2565 = vadd.f32 %v2404, %v2564
  %v2566 = vpop.f32.mrf.mxu0
  %v2567 = vpop.f32.mrf.mxu0
  %v2568 = vadd.f32 %v2407, %v2567
  %v2569 = vpop.f32.mrf.mxu0
  %2570 = vmatprep.mubr.bf16.mxu0 %v2036
  %2571 = vmatmul.mubr.bf16.gmra.mxu0 %v2035
  %v2572 = vpop.f32.mrf.mxu0
  %v2573 = vadd.f32 %v2412, %v2572
  %v2574 = vpop.f32.mrf.mxu0
  %v2575 = vpop.f32.mrf.mxu0
  %v2576 = vadd.f32 %v2415, %v2575
  %v2577 = vpop.f32.mrf.mxu0
  %2578 = vmatprep.mubr.bf16.mxu0 %v2040
  %2579 = vmatmul.mubr.bf16.gmra.mxu0 %v2039
  %v2580 = vpop.f32.mrf.mxu0
  %v2581 = vadd.f32 %v2420, %v2580
  %v2582 = vpop.f32.mrf.mxu0
  %v2583 = vpop.f32.mrf.mxu0
  %v2584 = vadd.f32 %v2423, %v2583
  %v2585 = vpop.f32.mrf.mxu0
  %2586 = vmatprep.mubr.bf16.mxu0 %v2044
  %2587 = vmatmul.mubr.bf16.gmra.mxu0 %v2043
  %v2588 = vpop.f32.mrf.mxu0
  %v2589 = vadd.f32 %v2428, %v2588
  %v2590 = vpop.f32.mrf.mxu0
  %v2591 = vpop.f32.mrf.mxu0
  %v2592 = vadd.f32 %v2431, %v2591
  %v2593 = vpop.f32.mrf.mxu0
  %2594 = vmatprep.mubr.bf16.mxu0 %v2048
  %2595 = vmatmul.mubr.bf16.gmra.mxu0 %v2047
  %v2596 = vpop.f32.mrf.mxu0
  %v2597 = vadd.f32 %v2436, %v2596
  %v2598 = vpop.f32.mrf.mxu0
  %v2599 = vpop.f32.mrf.mxu0
  %v2600 = vadd.f32 %v2439, %v2599
  %v2601 = vpop.f32.mrf.mxu0
  %2602 = vmatprep.mubr.bf16.mxu0 %v2052
  %2603 = vmatmul.mubr.bf16.gmra.mxu0 %v2051
  %v2604 = vpop.f32.mrf.mxu0
  %v2605 = vadd.f32 %v2444, %v2604
  %v2606 = vpop.f32.mrf.mxu0
  %v2607 = vpop.f32.mrf.mxu0
  %v2608 = vadd.f32 %v2447, %v2607
  %v2609 = vpop.f32.mrf.mxu0
  %2610 = vmatprep.mubr.bf16.mxu0 %v2056
  %2611 = vmatmul.mubr.bf16.gmra.mxu0 %v2055
  %v2612 = vpop.f32.mrf.mxu0
  %v2613 = vadd.f32 %v2452, %v2612
  %v2614 = vpop.f32.mrf.mxu0
  %v2615 = vpop.f32.mrf.mxu0
  %v2616 = vadd.f32 %v2455, %v2615
  %v2617 = vpop.f32.mrf.mxu0
  %2618 = vmatprep.mubr.bf16.mxu0 %v2060
  %2619 = vmatmul.mubr.bf16.gmra.mxu0 %v2059
  %v2620 = vpop.f32.mrf.mxu0
  %v2621 = vadd.f32 %v2460, %v2620
  %v2622 = vpop.f32.mrf.mxu0
  %v2623 = vpop.f32.mrf.mxu0
  %v2624 = vadd.f32 %v2463, %v2623
  %v2625 = vpop.f32.mrf.mxu0
  %2626 = vmatprep.mubr.bf16.mxu0 %v2064
  %2627 = vmatmul.mubr.bf16.gmra.mxu0 %v2063
  %v2628 = vpop.f32.mrf.mxu0
  %v2629 = vadd.f32 %v2468, %v2628
  %v2630 = vpop.f32.mrf.mxu0
  %v2631 = vpop.f32.mrf.mxu0
  %v2632 = vadd.f32 %v2471, %v2631
  %v2633 = vpop.f32.mrf.mxu0
  %2634 = vmatprep.mubr.bf16.mxu0 %v2068
  %2635 = vmatmul.mubr.bf16.gmra.mxu0 %v2067
  %v2636 = vpop.f32.mrf.mxu0
  %v2637 = vadd.f32 %v2476, %v2636
  %v2638 = vpop.f32.mrf.mxu0
  %v2639 = vpop.f32.mrf.mxu0
  %v2640 = vadd.f32 %v2479, %v2639
  %v2641 = vpop.f32.mrf.mxu0
  %2642 = vmatprep.mubr.bf16.mxu0 %v2072
  %2643 = vmatmul.mubr.bf16.gmra.mxu0 %v2071
  %v2644 = vpop.f32.mrf.mxu0
  %v2645 = vadd.f32 %v2484, %v2644
  %v2646 = vpop.f32.mrf.mxu0
  %v2647 = vpop.f32.mrf.mxu0
  %v2648 = vadd.f32 %v2487, %v2647
  %v2649 = vpop.f32.mrf.mxu0
  %2650 = vdwg.mxu0
  %v2651 = vadd.f32 %v2525, %v2528
  %v2652 = vadd.f32 %v2651, %v2533
  %v2653 = vadd.f32 %v2652, %v2536
  %v2654 = vadd.f32 %v2653, %v2541
  %v2655 = vadd.f32 %v2654, %v2544
  %v2656 = vadd.f32 %v2655, %v2549
  %v2657 = vadd.f32 %v2656, %v2552
  %v2658 = vadd.f32 %v2657, %v2557
  %v2659 = vadd.f32 %v2658, %v2560
  %v2660 = vadd.f32 %v2659, %v2565
  %v2661 = vadd.f32 %v2660, %v2568
  %v2662 = vadd.f32 %v2661, %v2573
  %v2663 = vadd.f32 %v2662, %v2576
  %v2664 = vadd.f32 %v2663, %v2581
  %v2665 = vadd.f32 %v2664, %v2584
  %v2666 = vadd.f32 %v2665, %v2589
  %v2667 = vadd.f32 %v2666, %v2592
  %v2668 = vadd.f32 %v2667, %v2597
  %v2669 = vadd.f32 %v2668, %v2600
  %v2670 = vadd.f32 %v2669, %v2605
  %v2671 = vadd.f32 %v2670, %v2608
  %v2672 = vadd.f32 %v2671, %v2613
  %v2673 = vadd.f32 %v2672, %v2616
  %v2674 = vadd.f32 %v2673, %v2621
  %v2675 = vadd.f32 %v2674, %v2624
  %v2676 = vadd.f32 %v2675, %v2629
  %v2677 = vadd.f32 %v2676, %v2632
  %v2678 = vadd.f32 %v2677, %v2637
  %v2679 = vadd.f32 %v2678, %v2640
  %v2680 = vadd.f32 %v2679, %v2645
  %v2681 = vadd.f32 %v2680, %v2648
  %v2682 = vrot.slane %v2681, 4
  %v2683 = vadd.f32 %v2681, %v2682
  %v2684 = vrot.slane %v2683, 2
  %v2685 = vadd.f32 %v2683, %v2684
  %v2686 = vrot.slane %v2685, 1
  %v2687 = vadd.f32 %v2685, %v2686
  %v2688 = vmul.f32 %v2525, %v2525
  %v2689 = vmul.f32 %v2528, %v2528
  %v2690 = vmul.f32 %v2533, %v2533
  %v2691 = vmul.f32 %v2536, %v2536
  %v2692 = vmul.f32 %v2541, %v2541
  %v2693 = vmul.f32 %v2544, %v2544
  %v2694 = vmul.f32 %v2549, %v2549
  %v2695 = vmul.f32 %v2552, %v2552
  %v2696 = vmul.f32 %v2557, %v2557
  %v2697 = vmul.f32 %v2560, %v2560
  %v2698 = vmul.f32 %v2565, %v2565
  %v2699 = vmul.f32 %v2568, %v2568
  %v2700 = vmul.f32 %v2573, %v2573
  %v2701 = vmul.f32 %v2576, %v2576
  %v2702 = vmul.f32 %v2581, %v2581
  %v2703 = vmul.f32 %v2584, %v2584
  %v2704 = vmul.f32 %v2589, %v2589
  %v2705 = vmul.f32 %v2592, %v2592
  %v2706 = vmul.f32 %v2597, %v2597
  %v2707 = vmul.f32 %v2600, %v2600
  %v2708 = vmul.f32 %v2605, %v2605
  %v2709 = vmul.f32 %v2608, %v2608
  %v2710 = vmul.f32 %v2613, %v2613
  %v2711 = vmul.f32 %v2616, %v2616
  %v2712 = vmul.f32 %v2621, %v2621
  %v2713 = vmul.f32 %v2624, %v2624
  %v2714 = vmul.f32 %v2629, %v2629
  %v2715 = vmul.f32 %v2632, %v2632
  %v2716 = vmul.f32 %v2637, %v2637
  %v2717 = vmul.f32 %v2640, %v2640
  %v2718 = vmul.f32 %v2645, %v2645
  %v2719 = vmul.f32 %v2648, %v2648
  %v2720 = vadd.f32 %v2688, %v2689
  %v2721 = vadd.f32 %v2720, %v2690
  %v2722 = vadd.f32 %v2721, %v2691
  %v2723 = vadd.f32 %v2722, %v2692
  %v2724 = vadd.f32 %v2723, %v2693
  %v2725 = vadd.f32 %v2724, %v2694
  %v2726 = vadd.f32 %v2725, %v2695
  %v2727 = vadd.f32 %v2726, %v2696
  %v2728 = vadd.f32 %v2727, %v2697
  %v2729 = vadd.f32 %v2728, %v2698
  %v2730 = vadd.f32 %v2729, %v2699
  %v2731 = vadd.f32 %v2730, %v2700
  %v2732 = vadd.f32 %v2731, %v2701
  %v2733 = vadd.f32 %v2732, %v2702
  %v2734 = vadd.f32 %v2733, %v2703
  %v2735 = vadd.f32 %v2734, %v2704
  %v2736 = vadd.f32 %v2735, %v2705
  %v2737 = vadd.f32 %v2736, %v2706
  %v2738 = vadd.f32 %v2737, %v2707
  %v2739 = vadd.f32 %v2738, %v2708
  %v2740 = vadd.f32 %v2739, %v2709
  %v2741 = vadd.f32 %v2740, %v2710
  %v2742 = vadd.f32 %v2741, %v2711
  %v2743 = vadd.f32 %v2742, %v2712
  %v2744 = vadd.f32 %v2743, %v2713
  %v2745 = vadd.f32 %v2744, %v2714
  %v2746 = vadd.f32 %v2745, %v2715
  %v2747 = vadd.f32 %v2746, %v2716
  %v2748 = vadd.f32 %v2747, %v2717
  %v2749 = vadd.f32 %v2748, %v2718
  %v2750 = vadd.f32 %v2749, %v2719
  %v2751 = vrot.slane %v2750, 4
  %v2752 = vadd.f32 %v2750, %v2751
  %v2753 = vrot.slane %v2752, 2
  %v2754 = vadd.f32 %v2752, %v2753
  %v2755 = vrot.slane %v2754, 1
  %v2756 = vadd.f32 %v2754, %v2755
  %v2757 = vmul.f32 %v2687, 0.00390625
  %v2758 = vmul.f32 %v2756, 0.00390625
  %v2759 = vmul.f32 %v2757, %v2757
  %v2760 = vsub.f32 %v2758, %v2759
  %v2761 = vmax.f32 %v2760, 0.0
  %v2762 = vld [vmem:[%s6] sm:$0x1]
  %v2763 = vadd.f32 %v2761, 1e-05
  %v2764 = vrsqrt.pop %v2763
  %v2765 = vmul.f32 %v2762, %v2764
  %v2766 = vld [vmem:[%s7] sm:$0x1]
  %v2767 = vmul.f32 %v2757, %v2765
  %v2768 = vsub.f32 %v2766, %v2767
  %v2770 = vlaneseq
  %v2771 = vshrl.u32 %v2770, 7
  %v2772 = vsub.s32 0, %v2771
  %v2773 = vrot.slane %v2765, %v2772
  %v2775 = vmul.f32 %v2525, %v2773
  %v2776 = vmul.f32 %v2528, %v2773
  %v2777 = vmul.f32 %v2533, %v2773
  %v2778 = vmul.f32 %v2536, %v2773
  %v2779 = vmul.f32 %v2541, %v2773
  %v2780 = vmul.f32 %v2544, %v2773
  %v2781 = vmul.f32 %v2549, %v2773
  %v2782 = vmul.f32 %v2552, %v2773
  %v2783 = vmul.f32 %v2557, %v2773
  %v2784 = vmul.f32 %v2560, %v2773
  %v2785 = vmul.f32 %v2565, %v2773
  %v2786 = vmul.f32 %v2568, %v2773
  %v2787 = vmul.f32 %v2573, %v2773
  %v2788 = vmul.f32 %v2576, %v2773
  %v2789 = vmul.f32 %v2581, %v2773
  %v2790 = vmul.f32 %v2584, %v2773
  %v2791 = vmul.f32 %v2589, %v2773
  %v2792 = vmul.f32 %v2592, %v2773
  %v2793 = vmul.f32 %v2597, %v2773
  %v2794 = vmul.f32 %v2600, %v2773
  %v2795 = vmul.f32 %v2605, %v2773
  %v2796 = vmul.f32 %v2608, %v2773
  %v2797 = vmul.f32 %v2613, %v2773
  %v2798 = vmul.f32 %v2616, %v2773
  %v2799 = vmul.f32 %v2621, %v2773
  %v2800 = vmul.f32 %v2624, %v2773
  %v2801 = vmul.f32 %v2629, %v2773
  %v2802 = vmul.f32 %v2632, %v2773
  %v2803 = vmul.f32 %v2637, %v2773
  %v2804 = vmul.f32 %v2640, %v2773
  %v2805 = vmul.f32 %v2645, %v2773
  %v2806 = vmul.f32 %v2648, %v2773
  %v2808 = vlaneseq
  %v2809 = vshrl.u32 %v2808, 7
  %v2810 = vsub.s32 0, %v2809
  %v2811 = vrot.slane %v2768, %v2810
  %v2813 = vadd.f32 %v2775, %v2811
  %v2814 = vadd.f32 %v2776, %v2811
  %v2815 = vadd.f32 %v2777, %v2811
  %v2816 = vadd.f32 %v2778, %v2811
  %v2817 = vadd.f32 %v2779, %v2811
  %v2818 = vadd.f32 %v2780, %v2811
  %v2819 = vadd.f32 %v2781, %v2811
  %v2820 = vadd.f32 %v2782, %v2811
  %v2821 = vadd.f32 %v2783, %v2811
  %v2822 = vadd.f32 %v2784, %v2811
  %v2823 = vadd.f32 %v2785, %v2811
  %v2824 = vadd.f32 %v2786, %v2811
  %v2825 = vadd.f32 %v2787, %v2811
  %v2826 = vadd.f32 %v2788, %v2811
  %v2827 = vadd.f32 %v2789, %v2811
  %v2828 = vadd.f32 %v2790, %v2811
  %v2829 = vadd.f32 %v2791, %v2811
  %v2830 = vadd.f32 %v2792, %v2811
  %v2831 = vadd.f32 %v2793, %v2811
  %v2832 = vadd.f32 %v2794, %v2811
  %v2833 = vadd.f32 %v2795, %v2811
  %v2834 = vadd.f32 %v2796, %v2811
  %v2835 = vadd.f32 %v2797, %v2811
  %v2836 = vadd.f32 %v2798, %v2811
  %v2837 = vadd.f32 %v2799, %v2811
  %v2838 = vadd.f32 %v2800, %v2811
  %v2839 = vadd.f32 %v2801, %v2811
  %v2840 = vadd.f32 %v2802, %v2811
  %v2841 = vadd.f32 %v2803, %v2811
  %v2842 = vadd.f32 %v2804, %v2811
  %v2843 = vadd.f32 %v2805, %v2811
  %v2844 = vadd.f32 %v2806, %v2811
  %v2845 = vmax.f32 %v2813, 0.0
  %v2846 = vmax.f32 %v2814, 0.0
  %v2847 = vmax.f32 %v2815, 0.0
  %v2848 = vmax.f32 %v2816, 0.0
  %v2849 = vmax.f32 %v2817, 0.0
  %v2850 = vmax.f32 %v2818, 0.0
  %v2851 = vmax.f32 %v2819, 0.0
  %v2852 = vmax.f32 %v2820, 0.0
  %v2853 = vmax.f32 %v2821, 0.0
  %v2854 = vmax.f32 %v2822, 0.0
  %v2855 = vmax.f32 %v2823, 0.0
  %v2856 = vmax.f32 %v2824, 0.0
  %v2857 = vmax.f32 %v2825, 0.0
  %v2858 = vmax.f32 %v2826, 0.0
  %v2859 = vmax.f32 %v2827, 0.0
  %v2860 = vmax.f32 %v2828, 0.0
  %v2861 = vmax.f32 %v2829, 0.0
  %v2862 = vmax.f32 %v2830, 0.0
  %v2863 = vmax.f32 %v2831, 0.0
  %v2864 = vmax.f32 %v2832, 0.0
  %v2865 = vmax.f32 %v2833, 0.0
  %v2866 = vmax.f32 %v2834, 0.0
  %v2867 = vmax.f32 %v2835, 0.0
  %v2868 = vmax.f32 %v2836, 0.0
  %v2869 = vmax.f32 %v2837, 0.0
  %v2870 = vmax.f32 %v2838, 0.0
  %v2871 = vmax.f32 %v2839, 0.0
  %v2872 = vmax.f32 %v2840, 0.0
  %v2873 = vmax.f32 %v2841, 0.0
  %v2874 = vmax.f32 %v2842, 0.0
  %v2875 = vmax.f32 %v2843, 0.0
  %v2876 = vmax.f32 %v2844, 0.0
  %v2877 = vmul.f32 %v2845, %v1724
  %v2878 = vmul.f32 %v2846, %v1729
  %v2879 = vmul.f32 %v2847, %v1734
  %v2880 = vmul.f32 %v2848, %v1739
  %v2881 = vmul.f32 %v2849, %v1744
  %v2882 = vmul.f32 %v2850, %v1749
  %v2883 = vmul.f32 %v2851, %v1754
  %v2884 = vmul.f32 %v2852, %v1759
  %v2885 = vmul.f32 %v2853, %v1764
  %v2886 = vmul.f32 %v2854, %v1769
  %v2887 = vmul.f32 %v2855, %v1774
  %v2888 = vmul.f32 %v2856, %v1779
  %v2889 = vmul.f32 %v2857, %v1784
  %v2890 = vmul.f32 %v2858, %v1789
  %v2891 = vmul.f32 %v2859, %v1794
  %v2892 = vmul.f32 %v2860, %v1799
  %v2893 = vmul.f32 %v2861, %v1804
  %v2894 = vmul.f32 %v2862, %v1809
  %v2895 = vmul.f32 %v2863, %v1814
  %v2896 = vmul.f32 %v2864, %v1819
  %v2897 = vmul.f32 %v2865, %v1824
  %v2898 = vmul.f32 %v2866, %v1829
  %v2899 = vmul.f32 %v2867, %v1834
  %v2900 = vmul.f32 %v2868, %v1839
  %v2901 = vmul.f32 %v2869, %v1844
  %v2902 = vmul.f32 %v2870, %v1849
  %v2903 = vmul.f32 %v2871, %v1854
  %v2904 = vmul.f32 %v2872, %v1859
  %v2905 = vmul.f32 %v2873, %v1864
  %v2906 = vmul.f32 %v2874, %v1869
  %v2907 = vmul.f32 %v2875, %v1874
  %v2908 = vmul.f32 %v2876, %v1879
  %v2909 = vpack.c.bf16 %v2878, %v2877
  %v2910 = vpack.c.bf16 %v2880, %v2879
  %v2911 = vpack.c.bf16 %v2882, %v2881
  %v2912 = vpack.c.bf16 %v2884, %v2883
  %v2913 = vpack.c.bf16 %v2886, %v2885
  %v2914 = vpack.c.bf16 %v2888, %v2887
  %v2915 = vpack.c.bf16 %v2890, %v2889
  %v2916 = vpack.c.bf16 %v2892, %v2891
  %v2917 = vpack.c.bf16 %v2894, %v2893
  %v2918 = vpack.c.bf16 %v2896, %v2895
  %v2919 = vpack.c.bf16 %v2898, %v2897
  %v2920 = vpack.c.bf16 %v2900, %v2899
  %v2921 = vpack.c.bf16 %v2902, %v2901
  %v2922 = vpack.c.bf16 %v2904, %v2903
  %v2923 = vpack.c.bf16 %v2906, %v2905
  %v2924 = vpack.c.bf16 %v2908, %v2907
  %v2925 = vld [vmem:[%s8] sm:$0xf]
  %v2926 = vld [vmem:[%s8 + $0x4] sm:$0xf]
  %v2927 = vld [vmem:[%s8 + $0x8] sm:$0xf]
  %v2928 = vld [vmem:[%s8 + $0xc] sm:$0xf]
  %v2929 = vld [vmem:[%s8 + $0x10] sm:$0xf]
  %v2930 = vld [vmem:[%s8 + $0x14] sm:$0xf]
  %v2931 = vld [vmem:[%s8 + $0x18] sm:$0xf]
  %v2932 = vld [vmem:[%s8 + $0x1c] sm:$0xf]
  %v2933 = vld [vmem:[%s8 + $0x20] sm:$0xf]
  %v2934 = vld [vmem:[%s8 + $0x24] sm:$0xf]
  %v2935 = vld [vmem:[%s8 + $0x28] sm:$0xf]
  %v2936 = vld [vmem:[%s8 + $0x2c] sm:$0xf]
  %v2937 = vld [vmem:[%s8 + $0x30] sm:$0xf]
  %v2938 = vld [vmem:[%s8 + $0x34] sm:$0xf]
  %v2939 = vld [vmem:[%s8 + $0x38] sm:$0xf]
  %v2940 = vld [vmem:[%s8 + $0x3c] sm:$0xf]
  %v2957 = vunpack.c.l.b16 %v2925
  %v2958 = vunpack.c.l.b16 %v2926
  %v2959 = vunpack.c.l.b16 %v2927
  %v2960 = vunpack.c.l.b16 %v2928
  %v2961 = vunpack.c.l.b16 %v2929
  %v2962 = vunpack.c.l.b16 %v2930
  %v2963 = vunpack.c.l.b16 %v2931
  %v2964 = vunpack.c.l.b16 %v2932
  %v2965 = vunpack.c.l.b16 %v2933
  %v2966 = vunpack.c.l.b16 %v2934
  %v2967 = vunpack.c.l.b16 %v2935
  %v2968 = vunpack.c.l.b16 %v2936
  %v2969 = vunpack.c.l.b16 %v2937
  %v2970 = vunpack.c.l.b16 %v2938
  %v2971 = vunpack.c.l.b16 %v2939
  %v2972 = vunpack.c.l.b16 %v2940
  %v2973 = vpack.c.b16 %v2958, %v2957
  %v2974 = vpack.c.b16 %v2960, %v2959
  %v2975 = vpack.c.b16 %v2962, %v2961
  %v2976 = vpack.c.b16 %v2964, %v2963
  %v2977 = vpack.c.b16 %v2966, %v2965
  %v2978 = vpack.c.b16 %v2968, %v2967
  %v2979 = vpack.c.b16 %v2970, %v2969
  %v2980 = vpack.c.b16 %v2972, %v2971
  %2989 = vmatprep.subr.bf16.mxu0 0
  %2990 = vmatpush1.bf16.msra.mxu0 %v2980
  %2991 = vmatprep.subr.bf16.mxu0 0
  %2992 = vmatpush1.bf16.msra.mxu0 %v2979
  %2993 = vmatprep.subr.bf16.mxu0 0
  %2994 = vmatpush1.bf16.msra.mxu0 %v2978
  %2995 = vmatprep.subr.bf16.mxu0 0
  %2996 = vmatpush1.bf16.msra.mxu0 %v2977
  %2997 = vmatprep.subr.bf16.mxu0 0
  %2998 = vmatpush1.bf16.msra.mxu0 %v2976
  %2999 = vmatprep.subr.bf16.mxu0 0
  %3000 = vmatpush1.bf16.msra.mxu0 %v2975
  %3001 = vmatprep.subr.bf16.mxu0 0
  %3002 = vmatpush1.bf16.msra.mxu0 %v2974
  %3003 = vmatprep.subr.bf16.mxu0 0
  %3004 = vmatpush1.bf16.msra.mxu0 %v2973
  %3005 = vmatprep.subr.bf16.mxu0 0
  %3006 = vmatpush2.bf16.msra.mxu0 0
  %3007 = vmatprep.subr.bf16.mxu0 0
  %3008 = vmatpush2.bf16.msra.mxu0 0
  %3009 = vmatprep.subr.bf16.mxu0 0
  %3010 = vmatpush2.bf16.msra.mxu0 0
  %3011 = vmatprep.subr.bf16.mxu0 0
  %3012 = vmatpush2.bf16.msra.mxu0 0
  %3013 = vmatprep.subr.bf16.mxu0 0
  %3014 = vmatpush2.bf16.msra.mxu0 0
  %3015 = vmatprep.subr.bf16.mxu0 0
  %3016 = vmatpush2.bf16.msra.mxu0 0
  %3017 = vmatprep.subr.bf16.mxu0 0
  %3018 = vmatpush2.bf16.msra.mxu0 0
  %3019 = vmatprep.subr.bf16.mxu0 0
  %3020 = vmatpush2.bf16.msra.mxu0 0
  %3021 = vmatprep.mubr.bf16.mxu0 0
  %3022 = vmatmul.mubr.bf16.gmra.mxu0 %v2909
  %v3023 = vpop.f32.mrf.mxu0
  %v3024 = vadd.f32 0.0, %v3023
  %v3025 = vpop.f32.mrf.mxu0
  %v3026 = vpop.f32.mrf.mxu0
  %v3027 = vadd.f32 0.0, %v3026
  %v3028 = vpop.f32.mrf.mxu0
  %3029 = vmatprep.mubr.bf16.mxu0 0
  %3030 = vmatmul.mubr.bf16.gmra.mxu0 %v2910
  %v3031 = vpop.f32.mrf.mxu0
  %v3032 = vadd.f32 0.0, %v3031
  %v3033 = vpop.f32.mrf.mxu0
  %v3034 = vpop.f32.mrf.mxu0
  %v3035 = vadd.f32 0.0, %v3034
  %v3036 = vpop.f32.mrf.mxu0
  %3037 = vmatprep.mubr.bf16.mxu0 0
  %3038 = vmatmul.mubr.bf16.gmra.mxu0 %v2911
  %v3039 = vpop.f32.mrf.mxu0
  %v3040 = vadd.f32 0.0, %v3039
  %v3041 = vpop.f32.mrf.mxu0
  %v3042 = vpop.f32.mrf.mxu0
  %v3043 = vadd.f32 0.0, %v3042
  %v3044 = vpop.f32.mrf.mxu0
  %3045 = vmatprep.mubr.bf16.mxu0 0
  %3046 = vmatmul.mubr.bf16.gmra.mxu0 %v2912
  %v3047 = vpop.f32.mrf.mxu0
  %v3048 = vadd.f32 0.0, %v3047
  %v3049 = vpop.f32.mrf.mxu0
  %v3050 = vpop.f32.mrf.mxu0
  %v3051 = vadd.f32 0.0, %v3050
  %v3052 = vpop.f32.mrf.mxu0
  %3053 = vmatprep.mubr.bf16.mxu0 0
  %3054 = vmatmul.mubr.bf16.gmra.mxu0 %v2913
  %v3055 = vpop.f32.mrf.mxu0
  %v3056 = vadd.f32 0.0, %v3055
  %v3057 = vpop.f32.mrf.mxu0
  %v3058 = vpop.f32.mrf.mxu0
  %v3059 = vadd.f32 0.0, %v3058
  %v3060 = vpop.f32.mrf.mxu0
  %3061 = vmatprep.mubr.bf16.mxu0 0
  %3062 = vmatmul.mubr.bf16.gmra.mxu0 %v2914
  %v3063 = vpop.f32.mrf.mxu0
  %v3064 = vadd.f32 0.0, %v3063
  %v3065 = vpop.f32.mrf.mxu0
  %v3066 = vpop.f32.mrf.mxu0
  %v3067 = vadd.f32 0.0, %v3066
  %v3068 = vpop.f32.mrf.mxu0
  %3069 = vmatprep.mubr.bf16.mxu0 0
  %3070 = vmatmul.mubr.bf16.gmra.mxu0 %v2915
  %v3071 = vpop.f32.mrf.mxu0
  %v3072 = vadd.f32 0.0, %v3071
  %v3073 = vpop.f32.mrf.mxu0
  %v3074 = vpop.f32.mrf.mxu0
  %v3075 = vadd.f32 0.0, %v3074
  %v3076 = vpop.f32.mrf.mxu0
  %3077 = vmatprep.mubr.bf16.mxu0 0
  %3078 = vmatmul.mubr.bf16.gmra.mxu0 %v2916
  %v3079 = vpop.f32.mrf.mxu0
  %v3080 = vadd.f32 0.0, %v3079
  %v3081 = vpop.f32.mrf.mxu0
  %v3082 = vpop.f32.mrf.mxu0
  %v3083 = vadd.f32 0.0, %v3082
  %v3084 = vpop.f32.mrf.mxu0
  %3085 = vmatprep.mubr.bf16.mxu0 0
  %3086 = vmatmul.mubr.bf16.gmra.mxu0 %v2917
  %v3087 = vpop.f32.mrf.mxu0
  %v3088 = vadd.f32 0.0, %v3087
  %v3089 = vpop.f32.mrf.mxu0
  %v3090 = vpop.f32.mrf.mxu0
  %v3091 = vadd.f32 0.0, %v3090
  %v3092 = vpop.f32.mrf.mxu0
  %3093 = vmatprep.mubr.bf16.mxu0 0
  %3094 = vmatmul.mubr.bf16.gmra.mxu0 %v2918
  %v3095 = vpop.f32.mrf.mxu0
  %v3096 = vadd.f32 0.0, %v3095
  %v3097 = vpop.f32.mrf.mxu0
  %v3098 = vpop.f32.mrf.mxu0
  %v3099 = vadd.f32 0.0, %v3098
  %v3100 = vpop.f32.mrf.mxu0
  %3101 = vmatprep.mubr.bf16.mxu0 0
  %3102 = vmatmul.mubr.bf16.gmra.mxu0 %v2919
  %v3103 = vpop.f32.mrf.mxu0
  %v3104 = vadd.f32 0.0, %v3103
  %v3105 = vpop.f32.mrf.mxu0
  %v3106 = vpop.f32.mrf.mxu0
  %v3107 = vadd.f32 0.0, %v3106
  %v3108 = vpop.f32.mrf.mxu0
  %3109 = vmatprep.mubr.bf16.mxu0 0
  %3110 = vmatmul.mubr.bf16.gmra.mxu0 %v2920
  %v3111 = vpop.f32.mrf.mxu0
  %v3112 = vadd.f32 0.0, %v3111
  %v3113 = vpop.f32.mrf.mxu0
  %v3114 = vpop.f32.mrf.mxu0
  %v3115 = vadd.f32 0.0, %v3114
  %v3116 = vpop.f32.mrf.mxu0
  %3117 = vmatprep.mubr.bf16.mxu0 0
  %3118 = vmatmul.mubr.bf16.gmra.mxu0 %v2921
  %v3119 = vpop.f32.mrf.mxu0
  %v3120 = vadd.f32 0.0, %v3119
  %v3121 = vpop.f32.mrf.mxu0
  %v3122 = vpop.f32.mrf.mxu0
  %v3123 = vadd.f32 0.0, %v3122
  %v3124 = vpop.f32.mrf.mxu0
  %3125 = vmatprep.mubr.bf16.mxu0 0
  %3126 = vmatmul.mubr.bf16.gmra.mxu0 %v2922
  %v3127 = vpop.f32.mrf.mxu0
  %v3128 = vadd.f32 0.0, %v3127
  %v3129 = vpop.f32.mrf.mxu0
  %v3130 = vpop.f32.mrf.mxu0
  %v3131 = vadd.f32 0.0, %v3130
  %v3132 = vpop.f32.mrf.mxu0
  %3133 = vmatprep.mubr.bf16.mxu0 0
  %3134 = vmatmul.mubr.bf16.gmra.mxu0 %v2923
  %v3135 = vpop.f32.mrf.mxu0
  %v3136 = vadd.f32 0.0, %v3135
  %v3137 = vpop.f32.mrf.mxu0
  %v3138 = vpop.f32.mrf.mxu0
  %v3139 = vadd.f32 0.0, %v3138
  %v3140 = vpop.f32.mrf.mxu0
  %3141 = vmatprep.mubr.bf16.mxu0 0
  %3142 = vmatmul.mubr.bf16.gmra.mxu0 %v2924
  %v3143 = vpop.f32.mrf.mxu0
  %v3144 = vadd.f32 0.0, %v3143
  %v3145 = vpop.f32.mrf.mxu0
  %v3146 = vpop.f32.mrf.mxu0
  %v3147 = vadd.f32 0.0, %v3146
  %v3148 = vpop.f32.mrf.mxu0
  %3149 = vdwg.mxu0
  %v3150 = vadd.f32 %v3024, %v3027
  %v3151 = vadd.f32 %v3150, %v3032
  %v3152 = vadd.f32 %v3151, %v3035
  %v3153 = vadd.f32 %v3152, %v3040
  %v3154 = vadd.f32 %v3153, %v3043
  %v3155 = vadd.f32 %v3154, %v3048
  %v3156 = vadd.f32 %v3155, %v3051
  %v3157 = vadd.f32 %v3156, %v3056
  %v3158 = vadd.f32 %v3157, %v3059
  %v3159 = vadd.f32 %v3158, %v3064
  %v3160 = vadd.f32 %v3159, %v3067
  %v3161 = vadd.f32 %v3160, %v3072
  %v3162 = vadd.f32 %v3161, %v3075
  %v3163 = vadd.f32 %v3162, %v3080
  %v3164 = vadd.f32 %v3163, %v3083
  %v3165 = vadd.f32 %v3164, %v3088
  %v3166 = vadd.f32 %v3165, %v3091
  %v3167 = vadd.f32 %v3166, %v3096
  %v3168 = vadd.f32 %v3167, %v3099
  %v3169 = vadd.f32 %v3168, %v3104
  %v3170 = vadd.f32 %v3169, %v3107
  %v3171 = vadd.f32 %v3170, %v3112
  %v3172 = vadd.f32 %v3171, %v3115
  %v3173 = vadd.f32 %v3172, %v3120
  %v3174 = vadd.f32 %v3173, %v3123
  %v3175 = vadd.f32 %v3174, %v3128
  %v3176 = vadd.f32 %v3175, %v3131
  %v3177 = vadd.f32 %v3176, %v3136
  %v3178 = vadd.f32 %v3177, %v3139
  %v3179 = vadd.f32 %v3178, %v3144
  %v3180 = vadd.f32 %v3179, %v3147
  %v3181 = vrot.slane %v3180, 4
  %v3182 = vadd.f32 %v3180, %v3181
  %v3183 = vrot.slane %v3182, 2
  %v3184 = vadd.f32 %v3182, %v3183
  %v3185 = vrot.slane %v3184, 1
  %v3186 = vadd.f32 %v3184, %v3185
  %v3187 = vmul.f32 %v3024, %v3024
  %v3188 = vmul.f32 %v3027, %v3027
  %v3189 = vmul.f32 %v3032, %v3032
  %v3190 = vmul.f32 %v3035, %v3035
  %v3191 = vmul.f32 %v3040, %v3040
  %v3192 = vmul.f32 %v3043, %v3043
  %v3193 = vmul.f32 %v3048, %v3048
  %v3194 = vmul.f32 %v3051, %v3051
  %v3195 = vmul.f32 %v3056, %v3056
  %v3196 = vmul.f32 %v3059, %v3059
  %v3197 = vmul.f32 %v3064, %v3064
  %v3198 = vmul.f32 %v3067, %v3067
  %v3199 = vmul.f32 %v3072, %v3072
  %v3200 = vmul.f32 %v3075, %v3075
  %v3201 = vmul.f32 %v3080, %v3080
  %v3202 = vmul.f32 %v3083, %v3083
  %v3203 = vmul.f32 %v3088, %v3088
  %v3204 = vmul.f32 %v3091, %v3091
  %v3205 = vmul.f32 %v3096, %v3096
  %v3206 = vmul.f32 %v3099, %v3099
  %v3207 = vmul.f32 %v3104, %v3104
  %v3208 = vmul.f32 %v3107, %v3107
  %v3209 = vmul.f32 %v3112, %v3112
  %v3210 = vmul.f32 %v3115, %v3115
  %v3211 = vmul.f32 %v3120, %v3120
  %v3212 = vmul.f32 %v3123, %v3123
  %v3213 = vmul.f32 %v3128, %v3128
  %v3214 = vmul.f32 %v3131, %v3131
  %v3215 = vmul.f32 %v3136, %v3136
  %v3216 = vmul.f32 %v3139, %v3139
  %v3217 = vmul.f32 %v3144, %v3144
  %v3218 = vmul.f32 %v3147, %v3147
  %v3219 = vadd.f32 %v3187, %v3188
  %v3220 = vadd.f32 %v3219, %v3189
  %v3221 = vadd.f32 %v3220, %v3190
  %v3222 = vadd.f32 %v3221, %v3191
  %v3223 = vadd.f32 %v3222, %v3192
  %v3224 = vadd.f32 %v3223, %v3193
  %v3225 = vadd.f32 %v3224, %v3194
  %v3226 = vadd.f32 %v3225, %v3195
  %v3227 = vadd.f32 %v3226, %v3196
  %v3228 = vadd.f32 %v3227, %v3197
  %v3229 = vadd.f32 %v3228, %v3198
  %v3230 = vadd.f32 %v3229, %v3199
  %v3231 = vadd.f32 %v3230, %v3200
  %v3232 = vadd.f32 %v3231, %v3201
  %v3233 = vadd.f32 %v3232, %v3202
  %v3234 = vadd.f32 %v3233, %v3203
  %v3235 = vadd.f32 %v3234, %v3204
  %v3236 = vadd.f32 %v3235, %v3205
  %v3237 = vadd.f32 %v3236, %v3206
  %v3238 = vadd.f32 %v3237, %v3207
  %v3239 = vadd.f32 %v3238, %v3208
  %v3240 = vadd.f32 %v3239, %v3209
  %v3241 = vadd.f32 %v3240, %v3210
  %v3242 = vadd.f32 %v3241, %v3211
  %v3243 = vadd.f32 %v3242, %v3212
  %v3244 = vadd.f32 %v3243, %v3213
  %v3245 = vadd.f32 %v3244, %v3214
  %v3246 = vadd.f32 %v3245, %v3215
  %v3247 = vadd.f32 %v3246, %v3216
  %v3248 = vadd.f32 %v3247, %v3217
  %v3249 = vadd.f32 %v3248, %v3218
  %v3250 = vrot.slane %v3249, 4
  %v3251 = vadd.f32 %v3249, %v3250
  %v3252 = vrot.slane %v3251, 2
  %v3253 = vadd.f32 %v3251, %v3252
  %v3254 = vrot.slane %v3253, 1
  %v3255 = vadd.f32 %v3253, %v3254
  %v3256 = vmul.f32 %v3186, 0.00390625
  %v3257 = vmul.f32 %v3255, 0.00390625
  %v3258 = vmul.f32 %v3256, %v3256
  %v3259 = vsub.f32 %v3257, %v3258
  %v3260 = vmax.f32 %v3259, 0.0
  %v3261 = vld [vmem:[%s9] sm:$0x1]
  %v3262 = vadd.f32 %v3260, 1e-05
  %v3263 = vrsqrt.pop %v3262
  %v3264 = vmul.f32 %v3261, %v3263
  %v3265 = vld [vmem:[%s10] sm:$0x1]
  %v3266 = vmul.f32 %v3256, %v3264
  %v3267 = vsub.f32 %v3265, %v3266
  %v3269 = vlaneseq
  %v3270 = vshrl.u32 %v3269, 7
  %v3271 = vsub.s32 0, %v3270
  %v3272 = vrot.slane %v3264, %v3271
  %v3274 = vmul.f32 %v3024, %v3272
  %v3275 = vmul.f32 %v3027, %v3272
  %v3276 = vmul.f32 %v3032, %v3272
  %v3277 = vmul.f32 %v3035, %v3272
  %v3278 = vmul.f32 %v3040, %v3272
  %v3279 = vmul.f32 %v3043, %v3272
  %v3280 = vmul.f32 %v3048, %v3272
  %v3281 = vmul.f32 %v3051, %v3272
  %v3282 = vmul.f32 %v3056, %v3272
  %v3283 = vmul.f32 %v3059, %v3272
  %v3284 = vmul.f32 %v3064, %v3272
  %v3285 = vmul.f32 %v3067, %v3272
  %v3286 = vmul.f32 %v3072, %v3272
  %v3287 = vmul.f32 %v3075, %v3272
  %v3288 = vmul.f32 %v3080, %v3272
  %v3289 = vmul.f32 %v3083, %v3272
  %v3290 = vmul.f32 %v3088, %v3272
  %v3291 = vmul.f32 %v3091, %v3272
  %v3292 = vmul.f32 %v3096, %v3272
  %v3293 = vmul.f32 %v3099, %v3272
  %v3294 = vmul.f32 %v3104, %v3272
  %v3295 = vmul.f32 %v3107, %v3272
  %v3296 = vmul.f32 %v3112, %v3272
  %v3297 = vmul.f32 %v3115, %v3272
  %v3298 = vmul.f32 %v3120, %v3272
  %v3299 = vmul.f32 %v3123, %v3272
  %v3300 = vmul.f32 %v3128, %v3272
  %v3301 = vmul.f32 %v3131, %v3272
  %v3302 = vmul.f32 %v3136, %v3272
  %v3303 = vmul.f32 %v3139, %v3272
  %v3304 = vmul.f32 %v3144, %v3272
  %v3305 = vmul.f32 %v3147, %v3272
  %v3307 = vlaneseq
  %v3308 = vshrl.u32 %v3307, 7
  %v3309 = vsub.s32 0, %v3308
  %v3310 = vrot.slane %v3267, %v3309
  %v3312 = vadd.f32 %v3274, %v3310
  %v3313 = vadd.f32 %v3275, %v3310
  %v3314 = vadd.f32 %v3276, %v3310
  %v3315 = vadd.f32 %v3277, %v3310
  %v3316 = vadd.f32 %v3278, %v3310
  %v3317 = vadd.f32 %v3279, %v3310
  %v3318 = vadd.f32 %v3280, %v3310
  %v3319 = vadd.f32 %v3281, %v3310
  %v3320 = vadd.f32 %v3282, %v3310
  %v3321 = vadd.f32 %v3283, %v3310
  %v3322 = vadd.f32 %v3284, %v3310
  %v3323 = vadd.f32 %v3285, %v3310
  %v3324 = vadd.f32 %v3286, %v3310
  %v3325 = vadd.f32 %v3287, %v3310
  %v3326 = vadd.f32 %v3288, %v3310
  %v3327 = vadd.f32 %v3289, %v3310
  %v3328 = vadd.f32 %v3290, %v3310
  %v3329 = vadd.f32 %v3291, %v3310
  %v3330 = vadd.f32 %v3292, %v3310
  %v3331 = vadd.f32 %v3293, %v3310
  %v3332 = vadd.f32 %v3294, %v3310
  %v3333 = vadd.f32 %v3295, %v3310
  %v3334 = vadd.f32 %v3296, %v3310
  %v3335 = vadd.f32 %v3297, %v3310
  %v3336 = vadd.f32 %v3298, %v3310
  %v3337 = vadd.f32 %v3299, %v3310
  %v3338 = vadd.f32 %v3300, %v3310
  %v3339 = vadd.f32 %v3301, %v3310
  %v3340 = vadd.f32 %v3302, %v3310
  %v3341 = vadd.f32 %v3303, %v3310
  %v3342 = vadd.f32 %v3304, %v3310
  %v3343 = vadd.f32 %v3305, %v3310
  %v3344 = vmax.f32 %v3312, 0.0
  %v3345 = vmax.f32 %v3313, 0.0
  %v3346 = vmax.f32 %v3314, 0.0
  %v3347 = vmax.f32 %v3315, 0.0
  %v3348 = vmax.f32 %v3316, 0.0
  %v3349 = vmax.f32 %v3317, 0.0
  %v3350 = vmax.f32 %v3318, 0.0
  %v3351 = vmax.f32 %v3319, 0.0
  %v3352 = vmax.f32 %v3320, 0.0
  %v3353 = vmax.f32 %v3321, 0.0
  %v3354 = vmax.f32 %v3322, 0.0
  %v3355 = vmax.f32 %v3323, 0.0
  %v3356 = vmax.f32 %v3324, 0.0
  %v3357 = vmax.f32 %v3325, 0.0
  %v3358 = vmax.f32 %v3326, 0.0
  %v3359 = vmax.f32 %v3327, 0.0
  %v3360 = vmax.f32 %v3328, 0.0
  %v3361 = vmax.f32 %v3329, 0.0
  %v3362 = vmax.f32 %v3330, 0.0
  %v3363 = vmax.f32 %v3331, 0.0
  %v3364 = vmax.f32 %v3332, 0.0
  %v3365 = vmax.f32 %v3333, 0.0
  %v3366 = vmax.f32 %v3334, 0.0
  %v3367 = vmax.f32 %v3335, 0.0
  %v3368 = vmax.f32 %v3336, 0.0
  %v3369 = vmax.f32 %v3337, 0.0
  %v3370 = vmax.f32 %v3338, 0.0
  %v3371 = vmax.f32 %v3339, 0.0
  %v3372 = vmax.f32 %v3340, 0.0
  %v3373 = vmax.f32 %v3341, 0.0
  %v3374 = vmax.f32 %v3342, 0.0
  %v3375 = vmax.f32 %v3343, 0.0
  %3376 = vst [vmem:[%s11] sm:$0xff] %v3344
  %3377 = vst [vmem:[%s11 + $0x8] sm:$0xff] %v3345
  %3378 = vst [vmem:[%s11 + $0x10] sm:$0xff] %v3346
  %3379 = vst [vmem:[%s11 + $0x18] sm:$0xff] %v3347
  %3380 = vst [vmem:[%s11 + $0x20] sm:$0xff] %v3348
  %3381 = vst [vmem:[%s11 + $0x28] sm:$0xff] %v3349
  %3382 = vst [vmem:[%s11 + $0x30] sm:$0xff] %v3350
  %3383 = vst [vmem:[%s11 + $0x38] sm:$0xff] %v3351
  %3384 = vst [vmem:[%s11 + $0x40] sm:$0xff] %v3352
  %3385 = vst [vmem:[%s11 + $0x48] sm:$0xff] %v3353
  %3386 = vst [vmem:[%s11 + $0x50] sm:$0xff] %v3354
  %3387 = vst [vmem:[%s11 + $0x58] sm:$0xff] %v3355
  %3388 = vst [vmem:[%s11 + $0x60] sm:$0xff] %v3356
  %3389 = vst [vmem:[%s11 + $0x68] sm:$0xff] %v3357
  %3390 = vst [vmem:[%s11 + $0x70] sm:$0xff] %v3358
  %3391 = vst [vmem:[%s11 + $0x78] sm:$0xff] %v3359
  %3392 = vst [vmem:[%s11 + $0x80] sm:$0xff] %v3360
  %3393 = vst [vmem:[%s11 + $0x88] sm:$0xff] %v3361
  %3394 = vst [vmem:[%s11 + $0x90] sm:$0xff] %v3362
  %3395 = vst [vmem:[%s11 + $0x98] sm:$0xff] %v3363
  %3396 = vst [vmem:[%s11 + $0xa0] sm:$0xff] %v3364
  %3397 = vst [vmem:[%s11 + $0xa8] sm:$0xff] %v3365
  %3398 = vst [vmem:[%s11 + $0xb0] sm:$0xff] %v3366
  %3399 = vst [vmem:[%s11 + $0xb8] sm:$0xff] %v3367
  %3400 = vst [vmem:[%s11 + $0xc0] sm:$0xff] %v3368
  %3401 = vst [vmem:[%s11 + $0xc8] sm:$0xff] %v3369
  %3402 = vst [vmem:[%s11 + $0xd0] sm:$0xff] %v3370
  %3403 = vst [vmem:[%s11 + $0xd8] sm:$0xff] %v3371
  %3404 = vst [vmem:[%s11 + $0xe0] sm:$0xff] %v3372
  %3405 = vst [vmem:[%s11 + $0xe8] sm:$0xff] %v3373
  %3406 = vst [vmem:[%s11 + $0xf0] sm:$0xff] %v3374
  %3407 = vst [vmem:[%s11 + $0xf8] sm:$0xff] %v3375
  // Predicated region
  $region46: #{mlp_block.1} parent=0 // pred_check
    _
  $region47: #{mlp_block.1} parent=0 // pred_check_branch
    %3409 = sbr.rel (0) target = $region49
  $region48: #{mlp_block.1} parent=0 // pred_region
    _
  $region49: #{mlp_block.1} parent=0 // pred_fallthru
    _
  // Predicated region
  $region50: #{mlp_block.1} parent=0 // pred_check
    _
  $region51: #{mlp_block.1} parent=0 // pred_check_branch
    %3411 = sbr.rel (0) target = $region53
  $region52: #{mlp_block.1} parent=0 // pred_region
    _
  $region53: #{mlp_block.1} parent=0 // pred_fallthru
    _

</llo_original>
